<compile_context>
chip_gen: v5e
topology: v5e:2x2
jax: 0.10.0
libtpu: 0.0.40
codegen_flags: <defaults>
</compile_context>

<pallas_src>
import functools

import jax
import jax.numpy as jnp
from jax.experimental import pallas as pl
from jax.experimental.pallas import tpu as pltpu

N = 81          # channels out of the last conv == Linear in-features
CP = 128        # lane-padded channel width used for all conv outputs
H1 = W1 = 16    # input spatial size
H2 = W2 = 8     # after pool 1
H3 = W3 = 4     # after pool 2
HP = WP = 2     # after pool 3 (head reduces over these 4 positions)


def _buf_rows(H, W):
    # flattened activation rows plus (W+1) zero rows of padding on each side,
    # enough for any 3x3 tap shift s = dy*W + dx, |s| <= W+1.
    return H * W + 2 * (W + 1)


ROWS1 = _buf_rows(H1, W1)   # 290
ROWS2 = _buf_rows(H2, W2)   # 82
ROWS3 = _buf_rows(H3, W3)   # 26


# ----------------------------------------------------------------------------
# In-kernel helpers (operate on VMEM refs / values only)
# ----------------------------------------------------------------------------
def _conv3x3_relu(buf, H, W, mask_cols, tap_fn, bias_row):
    """3x3 same-pad conv + bias + ReLU on a flattened (h*W+w, C) activation.

    buf holds the activation at rows [W+1, W+1+H*W) with zero padding around
    it.  For tap (dy, dx) the shifted input is a contiguous row slice; the
    horizontal (dx) image-border wrap is removed with a per-row mask.
    tap_fn(t, shifted) returns that tap's (H*W, CP) contribution.
    """
    HW = H * W
    P0 = W + 1
    r = jax.lax.broadcasted_iota(jnp.int32, (HW, mask_cols), 0)
    wcol = r & (W - 1)                       # W is a power of two
    mask = {-1: wcol > 0, 0: None, 1: wcol < (W - 1)}

    acc = jnp.zeros((HW, CP), jnp.float32)
    t = 0
    for dy in (-1, 0, 1):
        for dx in (-1, 0, 1):
            shifted = buf[pl.ds(P0 + dy * W + dx, HW), :]   # (HW, mask_cols)
            if mask[dx] is not None:
                shifted = jnp.where(mask[dx], shifted, 0.0)
            acc = acc + tap_fn(t, shifted)
            t += 1
    return jnp.maximum(acc + bias_row, 0.0)


def _maxpool2x2(v, H, W):
    """2x2 / stride-2 max pool of a flattened (H*W, CP) activation.

    max over the 4 window offsets is done with exact 0/1 selection matmuls
    (MXU does the row gather), followed by element-wise maxima.
    """
    HW = H * W
    Ho, Wo = H // 2, W // 2
    HWo = Ho * Wo
    wo_bits = Wo.bit_length() - 1            # Wo is a power of two
    k = jax.lax.broadcasted_iota(jnp.int32, (HWo, HW), 0)
    j = jax.lax.broadcasted_iota(jnp.int32, (HWo, HW), 1)
    base = 2 * (k >> wo_bits) * W + 2 * (k & (Wo - 1))

    def sel(off):
        s_mat = (j == base + off).astype(jnp.float32)
        return jnp.dot(s_mat, v, preferred_element_type=jnp.float32)

    return jnp.maximum(jnp.maximum(sel(0), sel(1)),
                       jnp.maximum(sel(W), sel(W + 1)))


# ----------------------------------------------------------------------------
# Fused network kernel (one grid step == one batch element)
# ----------------------------------------------------------------------------
def _network_kernel(x_ref, w1_ref, b1_ref, w2_ref, b2_ref, w3_ref, b3_ref,
                    wl_ref, bl_ref, o_ref, buf1, buf2, buf3, *, mean_pooling):
    # Zero the padded staging buffers (pad rows must read as 0 for the conv).
    buf1[...] = jnp.zeros_like(buf1)
    buf2[...] = jnp.zeros_like(buf2)
    buf3[...] = jnp.zeros_like(buf3)

    # Stage the input image (rows are h*W1 + w) into buf1's interior.
    buf1[pl.ds(W1 + 1, H1 * W1), :] = x_ref[0]           # (256, 1)

    # ---- layer 1: conv 1->16 (padded to 128 lanes) + ReLU + pool ----
    def tap1(t, shifted):                                # shifted: (256, 1)
        return shifted * w1_ref[pl.ds(t, 1), :]          # (256,1)*(1,128)
    v1 = _conv3x3_relu(buf1, H1, W1, 1, tap1, b1_ref[...])
    p1 = _maxpool2x2(v1, H1, W1)                         # (64, 128)
    buf2[pl.ds(W2 + 1, H2 * W2), :] = p1

    # ---- layer 2: conv 16->32 + ReLU + pool ----
    def tap2(t, shifted):                                # (64, 128)
        return jnp.dot(shifted, w2_ref[t], preferred_element_type=jnp.float32)
    v2 = _conv3x3_relu(buf2, H2, W2, CP, tap2, b2_ref[...])
    p2 = _maxpool2x2(v2, H2, W2)                         # (16, 128)
    buf3[pl.ds(W3 + 1, H3 * W3), :] = p2

    # ---- layer 3: conv 32->81 + ReLU + pool ----
    def tap3(t, shifted):                                # (16, 128)
        return jnp.dot(shifted, w3_ref[t], preferred_element_type=jnp.float32)
    v3 = _conv3x3_relu(buf3, H3, W3, CP, tap3, b3_ref[...])
    p3 = _maxpool2x2(v3, H3, W3)                         # (4, 128)

    # ---- head: adaptive mean/max over the 2x2 spatial grid + Linear ----
    r0 = p3[0:1, :]
    r1 = p3[1:2, :]
    r2 = p3[2:3, :]
    r3 = p3[3:4, :]
    if mean_pooling:
        feat = (r0 + r1 + r2 + r3) * (1.0 / (HP * WP))   # constant 1/S multiply
    else:
        feat = jnp.maximum(jnp.maximum(r0, r1), jnp.maximum(r2, r3))
    out = jnp.dot(feat, wl_ref[...], preferred_element_type=jnp.float32)
    o_ref[0] = (out + bl_ref[...]).astype(o_ref.dtype)   # (1, 10)


# ----------------------------------------------------------------------------
# Wrapper: parameter padding (zeros -> results unchanged) + single pallas_call
# ----------------------------------------------------------------------------
def network_forward(x_nchw, params, mean_pooling):
    f32 = jnp.float32
    B = x_nchw.shape[0]
    # NCHW (B,1,16,16) -> flattened rows (B, H*W, 1); with Cin=1 this is a
    # pure metadata reshape.
    x_flat = x_nchw.reshape(B, H1 * W1, 1).astype(f32)

    # Lane-pad weights / biases to CP=128; padded rows and columns are zero so
    # the padded channels stay exactly 0 through ReLU/pool and contribute
    # nothing to the Linear output.
    w1p = jnp.zeros((9, CP), f32).at[:, :16].set(
        params["w1"].reshape(9, 16).astype(f32))
    b1p = jnp.zeros((1, CP), f32).at[:, :16].set(
        params["b1"].reshape(1, 16).astype(f32))
    w2p = jnp.zeros((9, CP, CP), f32).at[:, :16, :32].set(
        params["w2"].reshape(9, 16, 32).astype(f32))
    b2p = jnp.zeros((1, CP), f32).at[:, :32].set(
        params["b2"].reshape(1, 32).astype(f32))
    w3p = jnp.zeros((9, CP, CP), f32).at[:, :32, :N].set(
        params["w3"].reshape(9, 32, N).astype(f32))
    b3p = jnp.zeros((1, CP), f32).at[:, :N].set(
        params["b3"].reshape(1, N).astype(f32))
    wlp = jnp.zeros((CP, 10), f32).at[:N, :].set(params["wl"].astype(f32))
    blp = params["bl"].reshape(1, 10).astype(f32)

    kernel = functools.partial(_network_kernel, mean_pooling=mean_pooling)
    out = pl.pallas_call(
        kernel,
        out_shape=jax.ShapeDtypeStruct((B, 1, 10), f32),
        grid=(B,),
        in_specs=[
            pl.BlockSpec((1, H1 * W1, 1), lambda b: (b, 0, 0)),   # image
            pl.BlockSpec((9, CP), lambda b: (0, 0)),              # w1
            pl.BlockSpec((1, CP), lambda b: (0, 0)),              # b1
            pl.BlockSpec((9, CP, CP), lambda b: (0, 0, 0)),       # w2
            pl.BlockSpec((1, CP), lambda b: (0, 0)),              # b2
            pl.BlockSpec((9, CP, CP), lambda b: (0, 0, 0)),       # w3
            pl.BlockSpec((1, CP), lambda b: (0, 0)),              # b3
            pl.BlockSpec((CP, 10), lambda b: (0, 0)),             # linear w
            pl.BlockSpec((1, 10), lambda b: (0, 0)),              # linear b
        ],
        out_specs=pl.BlockSpec((1, 1, 10), lambda b: (b, 0, 0)),
        scratch_shapes=[
            pltpu.VMEM((ROWS1, 1), f32),     # padded flat input image
            pltpu.VMEM((ROWS2, CP), f32),    # padded flat layer-2 input
            pltpu.VMEM((ROWS3, CP), f32),    # padded flat layer-3 input
        ],
        compiler_params=pltpu.CompilerParams(
            dimension_semantics=("parallel",)),   # batch split across cores
    )(x_flat, w1p, b1p, w2p, b2p, w3p, b3p, wlp, blp)
    return out.reshape(B, 10)


# ----------------------------------------------------------------------------
# Params + pure-JAX reference for sanity checking
# ----------------------------------------------------------------------------
def init_params(key):
    ks = jax.random.split(key, 4)

    def conv_w(k, cin, cout):
        return 0.1 * jax.random.normal(k, (3, 3, cin, cout), jnp.float32)

    return {
        "w1": conv_w(ks[0], 1, 16),  "b1": 0.01 * jnp.ones((16,), jnp.float32),
        "w2": conv_w(ks[1], 16, 32), "b2": 0.01 * jnp.ones((32,), jnp.float32),
        "w3": conv_w(ks[2], 32, N),  "b3": 0.01 * jnp.ones((N,), jnp.float32),
        "wl": 0.1 * jax.random.normal(ks[3], (N, 10), jnp.float32),
        "bl": 0.01 * jnp.ones((10,), jnp.float32),
    }


def network_reference(x_nchw, params, mean_pooling):
    x = jnp.transpose(x_nchw, (0, 2, 3, 1))

    def conv(x, w, b):
        y = jax.lax.conv_general_dilated(
            x, w, window_strides=(1, 1), padding="SAME",
            dimension_numbers=("NHWC", "HWIO", "NHWC"))
        return jax.nn.relu(y + b)

    def pool(x):
        B, H, W, C = x.shape
        return jnp.max(x.reshape(B, H // 2, 2, W // 2, 2, C), axis=(2, 4))

    x = pool(conv(x, params["w1"], params["b1"]))
    x = pool(conv(x, params["w2"], params["b2"]))
    x = pool(conv(x, params["w3"], params["b3"]))
    if mean_pooling:
        feat = jnp.mean(x, axis=(1, 2))
    else:
        feat = jnp.max(x, axis=(1, 2))
    return feat @ params["wl"] + params["bl"]


if __name__ == "__main__":
    key = jax.random.PRNGKey(0)
    pkey, xkey = jax.random.split(key)
    params = init_params(pkey)

    # batch=2, 1 input channel, 16x16 spatial (NCHW), as the module implies
    x = jax.random.normal(xkey, (2, 1, 16, 16), jnp.float32)

    for mean_pooling in (True, False):
        out = network_forward(x, params, mean_pooling)
        out = jax.block_until_ready(out)
        assert out.shape == (2, 10), out.shape
        ref = network_reference(x, params, mean_pooling)
        assert jnp.allclose(out, ref, rtol=2e-4, atol=2e-4), (
            "mismatch vs reference")

    print("KERNEL_OK")
</pallas_src>

<mosaic_0001>
module attributes {stable_mosaic.version = 11 : i64} {
  func.func @_network_kernel(%arg0: i32, %arg1: memref<1x256x1xf32, #tpu.memory_space<vmem>>, %arg2: memref<9x128xf32, #tpu.memory_space<vmem>>, %arg3: memref<1x128xf32, #tpu.memory_space<vmem>>, %arg4: memref<9x128x128xf32, #tpu.memory_space<vmem>>, %arg5: memref<1x128xf32, #tpu.memory_space<vmem>>, %arg6: memref<9x128x128xf32, #tpu.memory_space<vmem>>, %arg7: memref<1x128xf32, #tpu.memory_space<vmem>>, %arg8: memref<128x10xf32, #tpu.memory_space<vmem>>, %arg9: memref<1x10xf32, #tpu.memory_space<vmem>>, %arg10: memref<1x1x10xf32, #tpu.memory_space<vmem>>, %arg11: memref<290x1xf32, #tpu.memory_space<vmem>>, %arg12: memref<82x128xf32, #tpu.memory_space<vmem>>, %arg13: memref<26x128xf32, #tpu.memory_space<vmem>>) attributes {dimension_semantics = [#tpu.dimension_semantics<parallel>], iteration_bounds = array<i64: 2>, scalar_prefetch = 0 : i64, scratch_operands = 3 : i64, tpu.core_type = #tpu.core_type<tc>, window_params = [{transform_indices = @transform_0, window_bounds = array<i64: 1, 256, 1>}, {pipeline_mode = #tpu.pipeline_mode<synchronous>, transform_indices = @transform_1, window_bounds = array<i64: 9, 128>}, {pipeline_mode = #tpu.pipeline_mode<synchronous>, transform_indices = @transform_2, window_bounds = array<i64: 1, 128>}, {pipeline_mode = #tpu.pipeline_mode<synchronous>, transform_indices = @transform_3, window_bounds = array<i64: 9, 128, 128>}, {pipeline_mode = #tpu.pipeline_mode<synchronous>, transform_indices = @transform_4, window_bounds = array<i64: 1, 128>}, {pipeline_mode = #tpu.pipeline_mode<synchronous>, transform_indices = @transform_5, window_bounds = array<i64: 9, 128, 128>}, {pipeline_mode = #tpu.pipeline_mode<synchronous>, transform_indices = @transform_6, window_bounds = array<i64: 1, 128>}, {pipeline_mode = #tpu.pipeline_mode<synchronous>, transform_indices = @transform_7, window_bounds = array<i64: 128, 10>}, {pipeline_mode = #tpu.pipeline_mode<synchronous>, transform_indices = @transform_8, window_bounds = array<i64: 1, 10>}, {transform_indices = @transform_9, window_bounds = array<i64: 1, 1, 10>}]} {
    %cst = arith.constant 0.000000e+00 : f32
    %0 = vector.broadcast %cst : f32 to vector<290x1xf32>
    %c0 = arith.constant 0 : index
    %c0_0 = arith.constant 0 : index
    %1 = vector.load %arg11[%c0, %c0_0] : memref<290x1xf32, #tpu.memory_space<vmem>>, vector<290x1xf32>
    tpu.vector_store %arg11[%c0, %c0_0], %0 {strides = array<i32>} : memref<290x1xf32, #tpu.memory_space<vmem>>, vector<290x1xf32>,
    %cst_1 = arith.constant 0.000000e+00 : f32
    %2 = vector.broadcast %cst_1 : f32 to vector<82x128xf32>
    %c0_2 = arith.constant 0 : index
    %c0_3 = arith.constant 0 : index
    %3 = vector.load %arg12[%c0_2, %c0_3] : memref<82x128xf32, #tpu.memory_space<vmem>>, vector<82x128xf32>
    tpu.vector_store %arg12[%c0_2, %c0_3], %2 {strides = array<i32>} : memref<82x128xf32, #tpu.memory_space<vmem>>, vector<82x128xf32>,
    %cst_4 = arith.constant 0.000000e+00 : f32
    %4 = vector.broadcast %cst_4 : f32 to vector<26x128xf32>
    %c0_5 = arith.constant 0 : index
    %c0_6 = arith.constant 0 : index
    %5 = vector.load %arg13[%c0_5, %c0_6] : memref<26x128xf32, #tpu.memory_space<vmem>>, vector<26x128xf32>
    tpu.vector_store %arg13[%c0_5, %c0_6], %4 {strides = array<i32>} : memref<26x128xf32, #tpu.memory_space<vmem>>, vector<26x128xf32>,
    %c0_7 = arith.constant 0 : index
    %c0_8 = arith.constant 0 : index
    %c0_9 = arith.constant 0 : index
    %6 = vector.load %arg1[%c0_7, %c0_8, %c0_9] : memref<1x256x1xf32, #tpu.memory_space<vmem>>, vector<1x256x1xf32>
    %7 = vector.shape_cast %6 : vector<1x256x1xf32> to vector<256x1xf32>
    %c17 = arith.constant 17 : index
    %c0_10 = arith.constant 0 : index
    %8 = vector.load %arg11[%c17, %c0_10] : memref<290x1xf32, #tpu.memory_space<vmem>>, vector<256x1xf32>
    tpu.vector_store %arg11[%c17, %c0_10], %7 {strides = array<i32>} : memref<290x1xf32, #tpu.memory_space<vmem>>, vector<256x1xf32>,
    %c0_11 = arith.constant 0 : index
    %c0_12 = arith.constant 0 : index
    %9 = vector.load %arg3[%c0_11, %c0_12] : memref<1x128xf32, #tpu.memory_space<vmem>>, vector<1x128xf32>
    %10 = tpu.iota {dimensions = array<i32: 0>} : vector<256x1xi32>
    %c15_i32 = arith.constant 15 : i32
    %11 = vector.broadcast %c15_i32 : i32 to vector<256x1xi32>
    %12 = arith.andi %10, %11 : vector<256x1xi32>
    %c0_i32 = arith.constant 0 : i32
    %13 = vector.broadcast %c0_i32 : i32 to vector<256x1xi32>
    %14 = arith.cmpi sgt, %12, %13 : vector<256x1xi32>
    %c15_i32_13 = arith.constant 15 : i32
    %15 = vector.broadcast %c15_i32_13 : i32 to vector<256x1xi32>
    %16 = arith.cmpi slt, %12, %15 : vector<256x1xi32>
    %cst_14 = arith.constant 0.000000e+00 : f32
    %17 = vector.broadcast %cst_14 : f32 to vector<256x128xf32>
    %c0_15 = arith.constant 0 : index
    %c0_16 = arith.constant 0 : index
    %18 = vector.load %arg11[%c0_15, %c0_16] : memref<290x1xf32, #tpu.memory_space<vmem>>, vector<256x1xf32>
    %cst_17 = arith.constant 0.000000e+00 : f32
    %19 = vector.broadcast %cst_17 : f32 to vector<256x1xf32>
    %20 = arith.select %14, %18, %19 : vector<256x1xi1>, vector<256x1xf32>
    %c0_18 = arith.constant 0 : index
    %c0_19 = arith.constant 0 : index
    %21 = vector.load %arg2[%c0_18, %c0_19] : memref<9x128xf32, #tpu.memory_space<vmem>>, vector<1x128xf32>
    %22 = vector.broadcast %20 : vector<256x1xf32> to vector<256x128xf32>
    %23 = vector.broadcast %21 : vector<1x128xf32> to vector<256x128xf32>
    %24 = arith.mulf %22, %23 : vector<256x128xf32>
    %25 = arith.addf %17, %24 : vector<256x128xf32>
    %c1 = arith.constant 1 : index
    %c0_20 = arith.constant 0 : index
    %26 = vector.load %arg11[%c1, %c0_20] : memref<290x1xf32, #tpu.memory_space<vmem>>, vector<256x1xf32>
    %c1_21 = arith.constant 1 : index
    %c0_22 = arith.constant 0 : index
    %27 = vector.load %arg2[%c1_21, %c0_22] : memref<9x128xf32, #tpu.memory_space<vmem>>, vector<1x128xf32>
    %28 = vector.broadcast %26 : vector<256x1xf32> to vector<256x128xf32>
    %29 = vector.broadcast %27 : vector<1x128xf32> to vector<256x128xf32>
    %30 = arith.mulf %28, %29 : vector<256x128xf32>
    %31 = arith.addf %25, %30 : vector<256x128xf32>
    %c2 = arith.constant 2 : index
    %c0_23 = arith.constant 0 : index
    %32 = vector.load %arg11[%c2, %c0_23] : memref<290x1xf32, #tpu.memory_space<vmem>>, vector<256x1xf32>
    %cst_24 = arith.constant 0.000000e+00 : f32
    %33 = vector.broadcast %cst_24 : f32 to vector<256x1xf32>
    %34 = arith.select %16, %32, %33 : vector<256x1xi1>, vector<256x1xf32>
    %c2_25 = arith.constant 2 : index
    %c0_26 = arith.constant 0 : index
    %35 = vector.load %arg2[%c2_25, %c0_26] : memref<9x128xf32, #tpu.memory_space<vmem>>, vector<1x128xf32>
    %36 = vector.broadcast %34 : vector<256x1xf32> to vector<256x128xf32>
    %37 = vector.broadcast %35 : vector<1x128xf32> to vector<256x128xf32>
    %38 = arith.mulf %36, %37 : vector<256x128xf32>
    %39 = arith.addf %31, %38 : vector<256x128xf32>
    %c16 = arith.constant 16 : index
    %c0_27 = arith.constant 0 : index
    %40 = vector.load %arg11[%c16, %c0_27] : memref<290x1xf32, #tpu.memory_space<vmem>>, vector<256x1xf32>
    %cst_28 = arith.constant 0.000000e+00 : f32
    %41 = vector.broadcast %cst_28 : f32 to vector<256x1xf32>
    %42 = arith.select %14, %40, %41 : vector<256x1xi1>, vector<256x1xf32>
    %c3 = arith.constant 3 : index
    %c0_29 = arith.constant 0 : index
    %43 = vector.load %arg2[%c3, %c0_29] : memref<9x128xf32, #tpu.memory_space<vmem>>, vector<1x128xf32>
    %44 = vector.broadcast %42 : vector<256x1xf32> to vector<256x128xf32>
    %45 = vector.broadcast %43 : vector<1x128xf32> to vector<256x128xf32>
    %46 = arith.mulf %44, %45 : vector<256x128xf32>
    %47 = arith.addf %39, %46 : vector<256x128xf32>
    %c17_30 = arith.constant 17 : index
    %c0_31 = arith.constant 0 : index
    %48 = vector.load %arg11[%c17_30, %c0_31] : memref<290x1xf32, #tpu.memory_space<vmem>>, vector<256x1xf32>
    %c4 = arith.constant 4 : index
    %c0_32 = arith.constant 0 : index
    %49 = vector.load %arg2[%c4, %c0_32] : memref<9x128xf32, #tpu.memory_space<vmem>>, vector<1x128xf32>
    %50 = vector.broadcast %48 : vector<256x1xf32> to vector<256x128xf32>
    %51 = vector.broadcast %49 : vector<1x128xf32> to vector<256x128xf32>
    %52 = arith.mulf %50, %51 : vector<256x128xf32>
    %53 = arith.addf %47, %52 : vector<256x128xf32>
    %c18 = arith.constant 18 : index
    %c0_33 = arith.constant 0 : index
    %54 = vector.load %arg11[%c18, %c0_33] : memref<290x1xf32, #tpu.memory_space<vmem>>, vector<256x1xf32>
    %cst_34 = arith.constant 0.000000e+00 : f32
    %55 = vector.broadcast %cst_34 : f32 to vector<256x1xf32>
    %56 = arith.select %16, %54, %55 : vector<256x1xi1>, vector<256x1xf32>
    %c5 = arith.constant 5 : index
    %c0_35 = arith.constant 0 : index
    %57 = vector.load %arg2[%c5, %c0_35] : memref<9x128xf32, #tpu.memory_space<vmem>>, vector<1x128xf32>
    %58 = vector.broadcast %56 : vector<256x1xf32> to vector<256x128xf32>
    %59 = vector.broadcast %57 : vector<1x128xf32> to vector<256x128xf32>
    %60 = arith.mulf %58, %59 : vector<256x128xf32>
    %61 = arith.addf %53, %60 : vector<256x128xf32>
    %c32 = arith.constant 32 : index
    %c0_36 = arith.constant 0 : index
    %62 = vector.load %arg11[%c32, %c0_36] : memref<290x1xf32, #tpu.memory_space<vmem>>, vector<256x1xf32>
    %cst_37 = arith.constant 0.000000e+00 : f32
    %63 = vector.broadcast %cst_37 : f32 to vector<256x1xf32>
    %64 = arith.select %14, %62, %63 : vector<256x1xi1>, vector<256x1xf32>
    %c6 = arith.constant 6 : index
    %c0_38 = arith.constant 0 : index
    %65 = vector.load %arg2[%c6, %c0_38] : memref<9x128xf32, #tpu.memory_space<vmem>>, vector<1x128xf32>
    %66 = vector.broadcast %64 : vector<256x1xf32> to vector<256x128xf32>
    %67 = vector.broadcast %65 : vector<1x128xf32> to vector<256x128xf32>
    %68 = arith.mulf %66, %67 : vector<256x128xf32>
    %69 = arith.addf %61, %68 : vector<256x128xf32>
    %c33 = arith.constant 33 : index
    %c0_39 = arith.constant 0 : index
    %70 = vector.load %arg11[%c33, %c0_39] : memref<290x1xf32, #tpu.memory_space<vmem>>, vector<256x1xf32>
    %c7 = arith.constant 7 : index
    %c0_40 = arith.constant 0 : index
    %71 = vector.load %arg2[%c7, %c0_40] : memref<9x128xf32, #tpu.memory_space<vmem>>, vector<1x128xf32>
    %72 = vector.broadcast %70 : vector<256x1xf32> to vector<256x128xf32>
    %73 = vector.broadcast %71 : vector<1x128xf32> to vector<256x128xf32>
    %74 = arith.mulf %72, %73 : vector<256x128xf32>
    %75 = arith.addf %69, %74 : vector<256x128xf32>
    %c34 = arith.constant 34 : index
    %c0_41 = arith.constant 0 : index
    %76 = vector.load %arg11[%c34, %c0_41] : memref<290x1xf32, #tpu.memory_space<vmem>>, vector<256x1xf32>
    %cst_42 = arith.constant 0.000000e+00 : f32
    %77 = vector.broadcast %cst_42 : f32 to vector<256x1xf32>
    %78 = arith.select %16, %76, %77 : vector<256x1xi1>, vector<256x1xf32>
    %c8 = arith.constant 8 : index
    %c0_43 = arith.constant 0 : index
    %79 = vector.load %arg2[%c8, %c0_43] : memref<9x128xf32, #tpu.memory_space<vmem>>, vector<1x128xf32>
    %80 = vector.broadcast %78 : vector<256x1xf32> to vector<256x128xf32>
    %81 = vector.broadcast %79 : vector<1x128xf32> to vector<256x128xf32>
    %82 = arith.mulf %80, %81 : vector<256x128xf32>
    %83 = arith.addf %75, %82 : vector<256x128xf32>
    %84 = vector.broadcast %9 : vector<1x128xf32> to vector<256x128xf32>
    %85 = arith.addf %83, %84 : vector<256x128xf32>
    %cst_44 = arith.constant 0.000000e+00 : f32
    %86 = vector.broadcast %cst_44 : f32 to vector<256x128xf32>
    %87 = arith.maximumf %85, %86 : vector<256x128xf32>
    %88 = tpu.iota {dimensions = array<i32: 0>} : vector<64x256xi32>
    %89 = tpu.iota {dimensions = array<i32: 1>} : vector<64x256xi32>
    %c3_i32 = arith.constant 3 : i32
    %90 = vector.broadcast %c3_i32 : i32 to vector<64x256xi32>
    %91 = arith.shrsi %88, %90 : vector<64x256xi32>
    %c2_i32 = arith.constant 2 : i32
    %92 = vector.broadcast %c2_i32 : i32 to vector<64x256xi32>
    %93 = arith.muli %92, %91 : vector<64x256xi32>
    %c16_i32 = arith.constant 16 : i32
    %94 = vector.broadcast %c16_i32 : i32 to vector<64x256xi32>
    %95 = arith.muli %93, %94 : vector<64x256xi32>
    %c7_i32 = arith.constant 7 : i32
    %96 = vector.broadcast %c7_i32 : i32 to vector<64x256xi32>
    %97 = arith.andi %88, %96 : vector<64x256xi32>
    %c2_i32_45 = arith.constant 2 : i32
    %98 = vector.broadcast %c2_i32_45 : i32 to vector<64x256xi32>
    %99 = arith.muli %98, %97 : vector<64x256xi32>
    %100 = arith.addi %95, %99 : vector<64x256xi32>
    %c0_i32_46 = arith.constant 0 : i32
    %101 = vector.broadcast %c0_i32_46 : i32 to vector<64x256xi32>
    %102 = arith.addi %100, %101 : vector<64x256xi32>
    %103 = arith.cmpi eq, %89, %102 : vector<64x256xi32>
    %104 = arith.extui %103 : vector<64x256xi1> to vector<64x256xi32>
    %105 = arith.sitofp %104 : vector<64x256xi32> to vector<64x256xf32>
    %cst_47 = arith.constant dense<0.000000e+00> : vector<64x128xf32>
    %106 = tpu.matmul %105, %87, %cst_47 {dimension_numbers = #tpu.dot_dimension_numbers<[1], [0], [0], [1], [0, 0, 1, 1], [], []>} : vector<64x256xf32>, vector<256x128xf32>, vector<64x128xf32> -> vector<64x128xf32>
    %c1_i32 = arith.constant 1 : i32
    %107 = vector.broadcast %c1_i32 : i32 to vector<64x256xi32>
    %108 = arith.addi %100, %107 : vector<64x256xi32>
    %109 = arith.cmpi eq, %89, %108 : vector<64x256xi32>
    %110 = arith.extui %109 : vector<64x256xi1> to vector<64x256xi32>
    %111 = arith.sitofp %110 : vector<64x256xi32> to vector<64x256xf32>
    %cst_48 = arith.constant dense<0.000000e+00> : vector<64x128xf32>
    %112 = tpu.matmul %111, %87, %cst_48 {dimension_numbers = #tpu.dot_dimension_numbers<[1], [0], [0], [1], [0, 0, 1, 1], [], []>} : vector<64x256xf32>, vector<256x128xf32>, vector<64x128xf32> -> vector<64x128xf32>
    %113 = arith.maximumf %106, %112 : vector<64x128xf32>
    %c16_i32_49 = arith.constant 16 : i32
    %114 = vector.broadcast %c16_i32_49 : i32 to vector<64x256xi32>
    %115 = arith.addi %100, %114 : vector<64x256xi32>
    %116 = arith.cmpi eq, %89, %115 : vector<64x256xi32>
    %117 = arith.extui %116 : vector<64x256xi1> to vector<64x256xi32>
    %118 = arith.sitofp %117 : vector<64x256xi32> to vector<64x256xf32>
    %cst_50 = arith.constant dense<0.000000e+00> : vector<64x128xf32>
    %119 = tpu.matmul %118, %87, %cst_50 {dimension_numbers = #tpu.dot_dimension_numbers<[1], [0], [0], [1], [0, 0, 1, 1], [], []>} : vector<64x256xf32>, vector<256x128xf32>, vector<64x128xf32> -> vector<64x128xf32>
    %c17_i32 = arith.constant 17 : i32
    %120 = vector.broadcast %c17_i32 : i32 to vector<64x256xi32>
    %121 = arith.addi %100, %120 : vector<64x256xi32>
    %122 = arith.cmpi eq, %89, %121 : vector<64x256xi32>
    %123 = arith.extui %122 : vector<64x256xi1> to vector<64x256xi32>
    %124 = arith.sitofp %123 : vector<64x256xi32> to vector<64x256xf32>
    %cst_51 = arith.constant dense<0.000000e+00> : vector<64x128xf32>
    %125 = tpu.matmul %124, %87, %cst_51 {dimension_numbers = #tpu.dot_dimension_numbers<[1], [0], [0], [1], [0, 0, 1, 1], [], []>} : vector<64x256xf32>, vector<256x128xf32>, vector<64x128xf32> -> vector<64x128xf32>
    %126 = arith.maximumf %119, %125 : vector<64x128xf32>
    %127 = arith.maximumf %113, %126 : vector<64x128xf32>
    %c9 = arith.constant 9 : index
    %c0_52 = arith.constant 0 : index
    %128 = vector.load %arg12[%c9, %c0_52] : memref<82x128xf32, #tpu.memory_space<vmem>>, vector<64x128xf32>
    tpu.vector_store %arg12[%c9, %c0_52], %127 {strides = array<i32>} : memref<82x128xf32, #tpu.memory_space<vmem>>, vector<64x128xf32>,
    %c0_53 = arith.constant 0 : index
    %c0_54 = arith.constant 0 : index
    %129 = vector.load %arg5[%c0_53, %c0_54] : memref<1x128xf32, #tpu.memory_space<vmem>>, vector<1x128xf32>
    %130 = tpu.iota {dimensions = array<i32: 0>} : vector<64x128xi32>
    %c7_i32_55 = arith.constant 7 : i32
    %131 = vector.broadcast %c7_i32_55 : i32 to vector<64x128xi32>
    %132 = arith.andi %130, %131 : vector<64x128xi32>
    %c0_i32_56 = arith.constant 0 : i32
    %133 = vector.broadcast %c0_i32_56 : i32 to vector<64x128xi32>
    %134 = arith.cmpi sgt, %132, %133 : vector<64x128xi32>
    %c7_i32_57 = arith.constant 7 : i32
    %135 = vector.broadcast %c7_i32_57 : i32 to vector<64x128xi32>
    %136 = arith.cmpi slt, %132, %135 : vector<64x128xi32>
    %cst_58 = arith.constant 0.000000e+00 : f32
    %137 = vector.broadcast %cst_58 : f32 to vector<64x128xf32>
    %c0_59 = arith.constant 0 : index
    %c0_60 = arith.constant 0 : index
    %138 = vector.load %arg12[%c0_59, %c0_60] : memref<82x128xf32, #tpu.memory_space<vmem>>, vector<64x128xf32>
    %cst_61 = arith.constant 0.000000e+00 : f32
    %139 = vector.broadcast %cst_61 : f32 to vector<64x128xf32>
    %140 = arith.select %134, %138, %139 : vector<64x128xi1>, vector<64x128xf32>
    %c0_62 = arith.constant 0 : index
    %c0_63 = arith.constant 0 : index
    %c0_64 = arith.constant 0 : index
    %141 = vector.load %arg4[%c0_62, %c0_63, %c0_64] : memref<9x128x128xf32, #tpu.memory_space<vmem>>, vector<1x128x128xf32>
    %142 = vector.shape_cast %141 : vector<1x128x128xf32> to vector<128x128xf32>
    %cst_65 = arith.constant dense<0.000000e+00> : vector<64x128xf32>
    %143 = tpu.matmul %140, %142, %cst_65 {dimension_numbers = #tpu.dot_dimension_numbers<[1], [0], [0], [1], [0, 0, 1, 1], [], []>} : vector<64x128xf32>, vector<128x128xf32>, vector<64x128xf32> -> vector<64x128xf32>
    %144 = arith.addf %137, %143 : vector<64x128xf32>
    %c1_66 = arith.constant 1 : index
    %c0_67 = arith.constant 0 : index
    %145 = vector.load %arg12[%c1_66, %c0_67] : memref<82x128xf32, #tpu.memory_space<vmem>>, vector<64x128xf32>
    %c1_68 = arith.constant 1 : index
    %c0_69 = arith.constant 0 : index
    %c0_70 = arith.constant 0 : index
    %146 = vector.load %arg4[%c1_68, %c0_69, %c0_70] : memref<9x128x128xf32, #tpu.memory_space<vmem>>, vector<1x128x128xf32>
    %147 = vector.shape_cast %146 : vector<1x128x128xf32> to vector<128x128xf32>
    %cst_71 = arith.constant dense<0.000000e+00> : vector<64x128xf32>
    %148 = tpu.matmul %145, %147, %cst_71 {dimension_numbers = #tpu.dot_dimension_numbers<[1], [0], [0], [1], [0, 0, 1, 1], [], []>} : vector<64x128xf32>, vector<128x128xf32>, vector<64x128xf32> -> vector<64x128xf32>
    %149 = arith.addf %144, %148 : vector<64x128xf32>
    %c2_72 = arith.constant 2 : index
    %c0_73 = arith.constant 0 : index
    %150 = vector.load %arg12[%c2_72, %c0_73] : memref<82x128xf32, #tpu.memory_space<vmem>>, vector<64x128xf32>
    %cst_74 = arith.constant 0.000000e+00 : f32
    %151 = vector.broadcast %cst_74 : f32 to vector<64x128xf32>
    %152 = arith.select %136, %150, %151 : vector<64x128xi1>, vector<64x128xf32>
    %c2_75 = arith.constant 2 : index
    %c0_76 = arith.constant 0 : index
    %c0_77 = arith.constant 0 : index
    %153 = vector.load %arg4[%c2_75, %c0_76, %c0_77] : memref<9x128x128xf32, #tpu.memory_space<vmem>>, vector<1x128x128xf32>
    %154 = vector.shape_cast %153 : vector<1x128x128xf32> to vector<128x128xf32>
    %cst_78 = arith.constant dense<0.000000e+00> : vector<64x128xf32>
    %155 = tpu.matmul %152, %154, %cst_78 {dimension_numbers = #tpu.dot_dimension_numbers<[1], [0], [0], [1], [0, 0, 1, 1], [], []>} : vector<64x128xf32>, vector<128x128xf32>, vector<64x128xf32> -> vector<64x128xf32>
    %156 = arith.addf %149, %155 : vector<64x128xf32>
    %c8_79 = arith.constant 8 : index
    %c0_80 = arith.constant 0 : index
    %157 = vector.load %arg12[%c8_79, %c0_80] : memref<82x128xf32, #tpu.memory_space<vmem>>, vector<64x128xf32>
    %cst_81 = arith.constant 0.000000e+00 : f32
    %158 = vector.broadcast %cst_81 : f32 to vector<64x128xf32>
    %159 = arith.select %134, %157, %158 : vector<64x128xi1>, vector<64x128xf32>
    %c3_82 = arith.constant 3 : index
    %c0_83 = arith.constant 0 : index
    %c0_84 = arith.constant 0 : index
    %160 = vector.load %arg4[%c3_82, %c0_83, %c0_84] : memref<9x128x128xf32, #tpu.memory_space<vmem>>, vector<1x128x128xf32>
    %161 = vector.shape_cast %160 : vector<1x128x128xf32> to vector<128x128xf32>
    %cst_85 = arith.constant dense<0.000000e+00> : vector<64x128xf32>
    %162 = tpu.matmul %159, %161, %cst_85 {dimension_numbers = #tpu.dot_dimension_numbers<[1], [0], [0], [1], [0, 0, 1, 1], [], []>} : vector<64x128xf32>, vector<128x128xf32>, vector<64x128xf32> -> vector<64x128xf32>
    %163 = arith.addf %156, %162 : vector<64x128xf32>
    %c9_86 = arith.constant 9 : index
    %c0_87 = arith.constant 0 : index
    %164 = vector.load %arg12[%c9_86, %c0_87] : memref<82x128xf32, #tpu.memory_space<vmem>>, vector<64x128xf32>
    %c4_88 = arith.constant 4 : index
    %c0_89 = arith.constant 0 : index
    %c0_90 = arith.constant 0 : index
    %165 = vector.load %arg4[%c4_88, %c0_89, %c0_90] : memref<9x128x128xf32, #tpu.memory_space<vmem>>, vector<1x128x128xf32>
    %166 = vector.shape_cast %165 : vector<1x128x128xf32> to vector<128x128xf32>
    %cst_91 = arith.constant dense<0.000000e+00> : vector<64x128xf32>
    %167 = tpu.matmul %164, %166, %cst_91 {dimension_numbers = #tpu.dot_dimension_numbers<[1], [0], [0], [1], [0, 0, 1, 1], [], []>} : vector<64x128xf32>, vector<128x128xf32>, vector<64x128xf32> -> vector<64x128xf32>
    %168 = arith.addf %163, %167 : vector<64x128xf32>
    %c10 = arith.constant 10 : index
    %c0_92 = arith.constant 0 : index
    %169 = vector.load %arg12[%c10, %c0_92] : memref<82x128xf32, #tpu.memory_space<vmem>>, vector<64x128xf32>
    %cst_93 = arith.constant 0.000000e+00 : f32
    %170 = vector.broadcast %cst_93 : f32 to vector<64x128xf32>
    %171 = arith.select %136, %169, %170 : vector<64x128xi1>, vector<64x128xf32>
    %c5_94 = arith.constant 5 : index
    %c0_95 = arith.constant 0 : index
    %c0_96 = arith.constant 0 : index
    %172 = vector.load %arg4[%c5_94, %c0_95, %c0_96] : memref<9x128x128xf32, #tpu.memory_space<vmem>>, vector<1x128x128xf32>
    %173 = vector.shape_cast %172 : vector<1x128x128xf32> to vector<128x128xf32>
    %cst_97 = arith.constant dense<0.000000e+00> : vector<64x128xf32>
    %174 = tpu.matmul %171, %173, %cst_97 {dimension_numbers = #tpu.dot_dimension_numbers<[1], [0], [0], [1], [0, 0, 1, 1], [], []>} : vector<64x128xf32>, vector<128x128xf32>, vector<64x128xf32> -> vector<64x128xf32>
    %175 = arith.addf %168, %174 : vector<64x128xf32>
    %c16_98 = arith.constant 16 : index
    %c0_99 = arith.constant 0 : index
    %176 = vector.load %arg12[%c16_98, %c0_99] : memref<82x128xf32, #tpu.memory_space<vmem>>, vector<64x128xf32>
    %cst_100 = arith.constant 0.000000e+00 : f32
    %177 = vector.broadcast %cst_100 : f32 to vector<64x128xf32>
    %178 = arith.select %134, %176, %177 : vector<64x128xi1>, vector<64x128xf32>
    %c6_101 = arith.constant 6 : index
    %c0_102 = arith.constant 0 : index
    %c0_103 = arith.constant 0 : index
    %179 = vector.load %arg4[%c6_101, %c0_102, %c0_103] : memref<9x128x128xf32, #tpu.memory_space<vmem>>, vector<1x128x128xf32>
    %180 = vector.shape_cast %179 : vector<1x128x128xf32> to vector<128x128xf32>
    %cst_104 = arith.constant dense<0.000000e+00> : vector<64x128xf32>
    %181 = tpu.matmul %178, %180, %cst_104 {dimension_numbers = #tpu.dot_dimension_numbers<[1], [0], [0], [1], [0, 0, 1, 1], [], []>} : vector<64x128xf32>, vector<128x128xf32>, vector<64x128xf32> -> vector<64x128xf32>
    %182 = arith.addf %175, %181 : vector<64x128xf32>
    %c17_105 = arith.constant 17 : index
    %c0_106 = arith.constant 0 : index
    %183 = vector.load %arg12[%c17_105, %c0_106] : memref<82x128xf32, #tpu.memory_space<vmem>>, vector<64x128xf32>
    %c7_107 = arith.constant 7 : index
    %c0_108 = arith.constant 0 : index
    %c0_109 = arith.constant 0 : index
    %184 = vector.load %arg4[%c7_107, %c0_108, %c0_109] : memref<9x128x128xf32, #tpu.memory_space<vmem>>, vector<1x128x128xf32>
    %185 = vector.shape_cast %184 : vector<1x128x128xf32> to vector<128x128xf32>
    %cst_110 = arith.constant dense<0.000000e+00> : vector<64x128xf32>
    %186 = tpu.matmul %183, %185, %cst_110 {dimension_numbers = #tpu.dot_dimension_numbers<[1], [0], [0], [1], [0, 0, 1, 1], [], []>} : vector<64x128xf32>, vector<128x128xf32>, vector<64x128xf32> -> vector<64x128xf32>
    %187 = arith.addf %182, %186 : vector<64x128xf32>
    %c18_111 = arith.constant 18 : index
    %c0_112 = arith.constant 0 : index
    %188 = vector.load %arg12[%c18_111, %c0_112] : memref<82x128xf32, #tpu.memory_space<vmem>>, vector<64x128xf32>
    %cst_113 = arith.constant 0.000000e+00 : f32
    %189 = vector.broadcast %cst_113 : f32 to vector<64x128xf32>
    %190 = arith.select %136, %188, %189 : vector<64x128xi1>, vector<64x128xf32>
    %c8_114 = arith.constant 8 : index
    %c0_115 = arith.constant 0 : index
    %c0_116 = arith.constant 0 : index
    %191 = vector.load %arg4[%c8_114, %c0_115, %c0_116] : memref<9x128x128xf32, #tpu.memory_space<vmem>>, vector<1x128x128xf32>
    %192 = vector.shape_cast %191 : vector<1x128x128xf32> to vector<128x128xf32>
    %cst_117 = arith.constant dense<0.000000e+00> : vector<64x128xf32>
    %193 = tpu.matmul %190, %192, %cst_117 {dimension_numbers = #tpu.dot_dimension_numbers<[1], [0], [0], [1], [0, 0, 1, 1], [], []>} : vector<64x128xf32>, vector<128x128xf32>, vector<64x128xf32> -> vector<64x128xf32>
    %194 = arith.addf %187, %193 : vector<64x128xf32>
    %195 = vector.broadcast %129 : vector<1x128xf32> to vector<64x128xf32>
    %196 = arith.addf %194, %195 : vector<64x128xf32>
    %cst_118 = arith.constant 0.000000e+00 : f32
    %197 = vector.broadcast %cst_118 : f32 to vector<64x128xf32>
    %198 = arith.maximumf %196, %197 : vector<64x128xf32>
    %199 = tpu.iota {dimensions = array<i32: 0>} : vector<16x64xi32>
    %200 = tpu.iota {dimensions = array<i32: 1>} : vector<16x64xi32>
    %c2_i32_119 = arith.constant 2 : i32
    %201 = vector.broadcast %c2_i32_119 : i32 to vector<16x64xi32>
    %202 = arith.shrsi %199, %201 : vector<16x64xi32>
    %c2_i32_120 = arith.constant 2 : i32
    %203 = vector.broadcast %c2_i32_120 : i32 to vector<16x64xi32>
    %204 = arith.muli %203, %202 : vector<16x64xi32>
    %c8_i32 = arith.constant 8 : i32
    %205 = vector.broadcast %c8_i32 : i32 to vector<16x64xi32>
    %206 = arith.muli %204, %205 : vector<16x64xi32>
    %c3_i32_121 = arith.constant 3 : i32
    %207 = vector.broadcast %c3_i32_121 : i32 to vector<16x64xi32>
    %208 = arith.andi %199, %207 : vector<16x64xi32>
    %c2_i32_122 = arith.constant 2 : i32
    %209 = vector.broadcast %c2_i32_122 : i32 to vector<16x64xi32>
    %210 = arith.muli %209, %208 : vector<16x64xi32>
    %211 = arith.addi %206, %210 : vector<16x64xi32>
    %c0_i32_123 = arith.constant 0 : i32
    %212 = vector.broadcast %c0_i32_123 : i32 to vector<16x64xi32>
    %213 = arith.addi %211, %212 : vector<16x64xi32>
    %214 = arith.cmpi eq, %200, %213 : vector<16x64xi32>
    %215 = arith.extui %214 : vector<16x64xi1> to vector<16x64xi32>
    %216 = arith.sitofp %215 : vector<16x64xi32> to vector<16x64xf32>
    %cst_124 = arith.constant dense<0.000000e+00> : vector<16x128xf32>
    %217 = tpu.matmul %216, %198, %cst_124 {dimension_numbers = #tpu.dot_dimension_numbers<[1], [0], [0], [1], [0, 0, 1, 1], [], []>} : vector<16x64xf32>, vector<64x128xf32>, vector<16x128xf32> -> vector<16x128xf32>
    %c1_i32_125 = arith.constant 1 : i32
    %218 = vector.broadcast %c1_i32_125 : i32 to vector<16x64xi32>
    %219 = arith.addi %211, %218 : vector<16x64xi32>
    %220 = arith.cmpi eq, %200, %219 : vector<16x64xi32>
    %221 = arith.extui %220 : vector<16x64xi1> to vector<16x64xi32>
    %222 = arith.sitofp %221 : vector<16x64xi32> to vector<16x64xf32>
    %cst_126 = arith.constant dense<0.000000e+00> : vector<16x128xf32>
    %223 = tpu.matmul %222, %198, %cst_126 {dimension_numbers = #tpu.dot_dimension_numbers<[1], [0], [0], [1], [0, 0, 1, 1], [], []>} : vector<16x64xf32>, vector<64x128xf32>, vector<16x128xf32> -> vector<16x128xf32>
    %224 = arith.maximumf %217, %223 : vector<16x128xf32>
    %c8_i32_127 = arith.constant 8 : i32
    %225 = vector.broadcast %c8_i32_127 : i32 to vector<16x64xi32>
    %226 = arith.addi %211, %225 : vector<16x64xi32>
    %227 = arith.cmpi eq, %200, %226 : vector<16x64xi32>
    %228 = arith.extui %227 : vector<16x64xi1> to vector<16x64xi32>
    %229 = arith.sitofp %228 : vector<16x64xi32> to vector<16x64xf32>
    %cst_128 = arith.constant dense<0.000000e+00> : vector<16x128xf32>
    %230 = tpu.matmul %229, %198, %cst_128 {dimension_numbers = #tpu.dot_dimension_numbers<[1], [0], [0], [1], [0, 0, 1, 1], [], []>} : vector<16x64xf32>, vector<64x128xf32>, vector<16x128xf32> -> vector<16x128xf32>
    %c9_i32 = arith.constant 9 : i32
    %231 = vector.broadcast %c9_i32 : i32 to vector<16x64xi32>
    %232 = arith.addi %211, %231 : vector<16x64xi32>
    %233 = arith.cmpi eq, %200, %232 : vector<16x64xi32>
    %234 = arith.extui %233 : vector<16x64xi1> to vector<16x64xi32>
    %235 = arith.sitofp %234 : vector<16x64xi32> to vector<16x64xf32>
    %cst_129 = arith.constant dense<0.000000e+00> : vector<16x128xf32>
    %236 = tpu.matmul %235, %198, %cst_129 {dimension_numbers = #tpu.dot_dimension_numbers<[1], [0], [0], [1], [0, 0, 1, 1], [], []>} : vector<16x64xf32>, vector<64x128xf32>, vector<16x128xf32> -> vector<16x128xf32>
    %237 = arith.maximumf %230, %236 : vector<16x128xf32>
    %238 = arith.maximumf %224, %237 : vector<16x128xf32>
    %c5_130 = arith.constant 5 : index
    %c0_131 = arith.constant 0 : index
    %239 = vector.load %arg13[%c5_130, %c0_131] : memref<26x128xf32, #tpu.memory_space<vmem>>, vector<16x128xf32>
    tpu.vector_store %arg13[%c5_130, %c0_131], %238 {strides = array<i32>} : memref<26x128xf32, #tpu.memory_space<vmem>>, vector<16x128xf32>,
    %c0_132 = arith.constant 0 : index
    %c0_133 = arith.constant 0 : index
    %240 = vector.load %arg7[%c0_132, %c0_133] : memref<1x128xf32, #tpu.memory_space<vmem>>, vector<1x128xf32>
    %241 = tpu.iota {dimensions = array<i32: 0>} : vector<16x128xi32>
    %c3_i32_134 = arith.constant 3 : i32
    %242 = vector.broadcast %c3_i32_134 : i32 to vector<16x128xi32>
    %243 = arith.andi %241, %242 : vector<16x128xi32>
    %c0_i32_135 = arith.constant 0 : i32
    %244 = vector.broadcast %c0_i32_135 : i32 to vector<16x128xi32>
    %245 = arith.cmpi sgt, %243, %244 : vector<16x128xi32>
    %c3_i32_136 = arith.constant 3 : i32
    %246 = vector.broadcast %c3_i32_136 : i32 to vector<16x128xi32>
    %247 = arith.cmpi slt, %243, %246 : vector<16x128xi32>
    %cst_137 = arith.constant 0.000000e+00 : f32
    %248 = vector.broadcast %cst_137 : f32 to vector<16x128xf32>
    %c0_138 = arith.constant 0 : index
    %c0_139 = arith.constant 0 : index
    %249 = vector.load %arg13[%c0_138, %c0_139] : memref<26x128xf32, #tpu.memory_space<vmem>>, vector<16x128xf32>
    %cst_140 = arith.constant 0.000000e+00 : f32
    %250 = vector.broadcast %cst_140 : f32 to vector<16x128xf32>
    %251 = arith.select %245, %249, %250 : vector<16x128xi1>, vector<16x128xf32>
    %c0_141 = arith.constant 0 : index
    %c0_142 = arith.constant 0 : index
    %c0_143 = arith.constant 0 : index
    %252 = vector.load %arg6[%c0_141, %c0_142, %c0_143] : memref<9x128x128xf32, #tpu.memory_space<vmem>>, vector<1x128x128xf32>
    %253 = vector.shape_cast %252 : vector<1x128x128xf32> to vector<128x128xf32>
    %cst_144 = arith.constant dense<0.000000e+00> : vector<16x128xf32>
    %254 = tpu.matmul %251, %253, %cst_144 {dimension_numbers = #tpu.dot_dimension_numbers<[1], [0], [0], [1], [0, 0, 1, 1], [], []>} : vector<16x128xf32>, vector<128x128xf32>, vector<16x128xf32> -> vector<16x128xf32>
    %255 = arith.addf %248, %254 : vector<16x128xf32>
    %c1_145 = arith.constant 1 : index
    %c0_146 = arith.constant 0 : index
    %256 = vector.load %arg13[%c1_145, %c0_146] : memref<26x128xf32, #tpu.memory_space<vmem>>, vector<16x128xf32>
    %c1_147 = arith.constant 1 : index
    %c0_148 = arith.constant 0 : index
    %c0_149 = arith.constant 0 : index
    %257 = vector.load %arg6[%c1_147, %c0_148, %c0_149] : memref<9x128x128xf32, #tpu.memory_space<vmem>>, vector<1x128x128xf32>
    %258 = vector.shape_cast %257 : vector<1x128x128xf32> to vector<128x128xf32>
    %cst_150 = arith.constant dense<0.000000e+00> : vector<16x128xf32>
    %259 = tpu.matmul %256, %258, %cst_150 {dimension_numbers = #tpu.dot_dimension_numbers<[1], [0], [0], [1], [0, 0, 1, 1], [], []>} : vector<16x128xf32>, vector<128x128xf32>, vector<16x128xf32> -> vector<16x128xf32>
    %260 = arith.addf %255, %259 : vector<16x128xf32>
    %c2_151 = arith.constant 2 : index
    %c0_152 = arith.constant 0 : index
    %261 = vector.load %arg13[%c2_151, %c0_152] : memref<26x128xf32, #tpu.memory_space<vmem>>, vector<16x128xf32>
    %cst_153 = arith.constant 0.000000e+00 : f32
    %262 = vector.broadcast %cst_153 : f32 to vector<16x128xf32>
    %263 = arith.select %247, %261, %262 : vector<16x128xi1>, vector<16x128xf32>
    %c2_154 = arith.constant 2 : index
    %c0_155 = arith.constant 0 : index
    %c0_156 = arith.constant 0 : index
    %264 = vector.load %arg6[%c2_154, %c0_155, %c0_156] : memref<9x128x128xf32, #tpu.memory_space<vmem>>, vector<1x128x128xf32>
    %265 = vector.shape_cast %264 : vector<1x128x128xf32> to vector<128x128xf32>
    %cst_157 = arith.constant dense<0.000000e+00> : vector<16x128xf32>
    %266 = tpu.matmul %263, %265, %cst_157 {dimension_numbers = #tpu.dot_dimension_numbers<[1], [0], [0], [1], [0, 0, 1, 1], [], []>} : vector<16x128xf32>, vector<128x128xf32>, vector<16x128xf32> -> vector<16x128xf32>
    %267 = arith.addf %260, %266 : vector<16x128xf32>
    %c4_158 = arith.constant 4 : index
    %c0_159 = arith.constant 0 : index
    %268 = vector.load %arg13[%c4_158, %c0_159] : memref<26x128xf32, #tpu.memory_space<vmem>>, vector<16x128xf32>
    %cst_160 = arith.constant 0.000000e+00 : f32
    %269 = vector.broadcast %cst_160 : f32 to vector<16x128xf32>
    %270 = arith.select %245, %268, %269 : vector<16x128xi1>, vector<16x128xf32>
    %c3_161 = arith.constant 3 : index
    %c0_162 = arith.constant 0 : index
    %c0_163 = arith.constant 0 : index
    %271 = vector.load %arg6[%c3_161, %c0_162, %c0_163] : memref<9x128x128xf32, #tpu.memory_space<vmem>>, vector<1x128x128xf32>
    %272 = vector.shape_cast %271 : vector<1x128x128xf32> to vector<128x128xf32>
    %cst_164 = arith.constant dense<0.000000e+00> : vector<16x128xf32>
    %273 = tpu.matmul %270, %272, %cst_164 {dimension_numbers = #tpu.dot_dimension_numbers<[1], [0], [0], [1], [0, 0, 1, 1], [], []>} : vector<16x128xf32>, vector<128x128xf32>, vector<16x128xf32> -> vector<16x128xf32>
    %274 = arith.addf %267, %273 : vector<16x128xf32>
    %c5_165 = arith.constant 5 : index
    %c0_166 = arith.constant 0 : index
    %275 = vector.load %arg13[%c5_165, %c0_166] : memref<26x128xf32, #tpu.memory_space<vmem>>, vector<16x128xf32>
    %c4_167 = arith.constant 4 : index
    %c0_168 = arith.constant 0 : index
    %c0_169 = arith.constant 0 : index
    %276 = vector.load %arg6[%c4_167, %c0_168, %c0_169] : memref<9x128x128xf32, #tpu.memory_space<vmem>>, vector<1x128x128xf32>
    %277 = vector.shape_cast %276 : vector<1x128x128xf32> to vector<128x128xf32>
    %cst_170 = arith.constant dense<0.000000e+00> : vector<16x128xf32>
    %278 = tpu.matmul %275, %277, %cst_170 {dimension_numbers = #tpu.dot_dimension_numbers<[1], [0], [0], [1], [0, 0, 1, 1], [], []>} : vector<16x128xf32>, vector<128x128xf32>, vector<16x128xf32> -> vector<16x128xf32>
    %279 = arith.addf %274, %278 : vector<16x128xf32>
    %c6_171 = arith.constant 6 : index
    %c0_172 = arith.constant 0 : index
    %280 = vector.load %arg13[%c6_171, %c0_172] : memref<26x128xf32, #tpu.memory_space<vmem>>, vector<16x128xf32>
    %cst_173 = arith.constant 0.000000e+00 : f32
    %281 = vector.broadcast %cst_173 : f32 to vector<16x128xf32>
    %282 = arith.select %247, %280, %281 : vector<16x128xi1>, vector<16x128xf32>
    %c5_174 = arith.constant 5 : index
    %c0_175 = arith.constant 0 : index
    %c0_176 = arith.constant 0 : index
    %283 = vector.load %arg6[%c5_174, %c0_175, %c0_176] : memref<9x128x128xf32, #tpu.memory_space<vmem>>, vector<1x128x128xf32>
    %284 = vector.shape_cast %283 : vector<1x128x128xf32> to vector<128x128xf32>
    %cst_177 = arith.constant dense<0.000000e+00> : vector<16x128xf32>
    %285 = tpu.matmul %282, %284, %cst_177 {dimension_numbers = #tpu.dot_dimension_numbers<[1], [0], [0], [1], [0, 0, 1, 1], [], []>} : vector<16x128xf32>, vector<128x128xf32>, vector<16x128xf32> -> vector<16x128xf32>
    %286 = arith.addf %279, %285 : vector<16x128xf32>
    %c8_178 = arith.constant 8 : index
    %c0_179 = arith.constant 0 : index
    %287 = vector.load %arg13[%c8_178, %c0_179] : memref<26x128xf32, #tpu.memory_space<vmem>>, vector<16x128xf32>
    %cst_180 = arith.constant 0.000000e+00 : f32
    %288 = vector.broadcast %cst_180 : f32 to vector<16x128xf32>
    %289 = arith.select %245, %287, %288 : vector<16x128xi1>, vector<16x128xf32>
    %c6_181 = arith.constant 6 : index
    %c0_182 = arith.constant 0 : index
    %c0_183 = arith.constant 0 : index
    %290 = vector.load %arg6[%c6_181, %c0_182, %c0_183] : memref<9x128x128xf32, #tpu.memory_space<vmem>>, vector<1x128x128xf32>
    %291 = vector.shape_cast %290 : vector<1x128x128xf32> to vector<128x128xf32>
    %cst_184 = arith.constant dense<0.000000e+00> : vector<16x128xf32>
    %292 = tpu.matmul %289, %291, %cst_184 {dimension_numbers = #tpu.dot_dimension_numbers<[1], [0], [0], [1], [0, 0, 1, 1], [], []>} : vector<16x128xf32>, vector<128x128xf32>, vector<16x128xf32> -> vector<16x128xf32>
    %293 = arith.addf %286, %292 : vector<16x128xf32>
    %c9_185 = arith.constant 9 : index
    %c0_186 = arith.constant 0 : index
    %294 = vector.load %arg13[%c9_185, %c0_186] : memref<26x128xf32, #tpu.memory_space<vmem>>, vector<16x128xf32>
    %c7_187 = arith.constant 7 : index
    %c0_188 = arith.constant 0 : index
    %c0_189 = arith.constant 0 : index
    %295 = vector.load %arg6[%c7_187, %c0_188, %c0_189] : memref<9x128x128xf32, #tpu.memory_space<vmem>>, vector<1x128x128xf32>
    %296 = vector.shape_cast %295 : vector<1x128x128xf32> to vector<128x128xf32>
    %cst_190 = arith.constant dense<0.000000e+00> : vector<16x128xf32>
    %297 = tpu.matmul %294, %296, %cst_190 {dimension_numbers = #tpu.dot_dimension_numbers<[1], [0], [0], [1], [0, 0, 1, 1], [], []>} : vector<16x128xf32>, vector<128x128xf32>, vector<16x128xf32> -> vector<16x128xf32>
    %298 = arith.addf %293, %297 : vector<16x128xf32>
    %c10_191 = arith.constant 10 : index
    %c0_192 = arith.constant 0 : index
    %299 = vector.load %arg13[%c10_191, %c0_192] : memref<26x128xf32, #tpu.memory_space<vmem>>, vector<16x128xf32>
    %cst_193 = arith.constant 0.000000e+00 : f32
    %300 = vector.broadcast %cst_193 : f32 to vector<16x128xf32>
    %301 = arith.select %247, %299, %300 : vector<16x128xi1>, vector<16x128xf32>
    %c8_194 = arith.constant 8 : index
    %c0_195 = arith.constant 0 : index
    %c0_196 = arith.constant 0 : index
    %302 = vector.load %arg6[%c8_194, %c0_195, %c0_196] : memref<9x128x128xf32, #tpu.memory_space<vmem>>, vector<1x128x128xf32>
    %303 = vector.shape_cast %302 : vector<1x128x128xf32> to vector<128x128xf32>
    %cst_197 = arith.constant dense<0.000000e+00> : vector<16x128xf32>
    %304 = tpu.matmul %301, %303, %cst_197 {dimension_numbers = #tpu.dot_dimension_numbers<[1], [0], [0], [1], [0, 0, 1, 1], [], []>} : vector<16x128xf32>, vector<128x128xf32>, vector<16x128xf32> -> vector<16x128xf32>
    %305 = arith.addf %298, %304 : vector<16x128xf32>
    %306 = vector.broadcast %240 : vector<1x128xf32> to vector<16x128xf32>
    %307 = arith.addf %305, %306 : vector<16x128xf32>
    %cst_198 = arith.constant 0.000000e+00 : f32
    %308 = vector.broadcast %cst_198 : f32 to vector<16x128xf32>
    %309 = arith.maximumf %307, %308 : vector<16x128xf32>
    %310 = tpu.iota {dimensions = array<i32: 0>} : vector<4x16xi32>
    %311 = tpu.iota {dimensions = array<i32: 1>} : vector<4x16xi32>
    %c1_i32_199 = arith.constant 1 : i32
    %312 = vector.broadcast %c1_i32_199 : i32 to vector<4x16xi32>
    %313 = arith.shrsi %310, %312 : vector<4x16xi32>
    %c2_i32_200 = arith.constant 2 : i32
    %314 = vector.broadcast %c2_i32_200 : i32 to vector<4x16xi32>
    %315 = arith.muli %314, %313 : vector<4x16xi32>
    %c4_i32 = arith.constant 4 : i32
    %316 = vector.broadcast %c4_i32 : i32 to vector<4x16xi32>
    %317 = arith.muli %315, %316 : vector<4x16xi32>
    %c1_i32_201 = arith.constant 1 : i32
    %318 = vector.broadcast %c1_i32_201 : i32 to vector<4x16xi32>
    %319 = arith.andi %310, %318 : vector<4x16xi32>
    %c2_i32_202 = arith.constant 2 : i32
    %320 = vector.broadcast %c2_i32_202 : i32 to vector<4x16xi32>
    %321 = arith.muli %320, %319 : vector<4x16xi32>
    %322 = arith.addi %317, %321 : vector<4x16xi32>
    %c0_i32_203 = arith.constant 0 : i32
    %323 = vector.broadcast %c0_i32_203 : i32 to vector<4x16xi32>
    %324 = arith.addi %322, %323 : vector<4x16xi32>
    %325 = arith.cmpi eq, %311, %324 : vector<4x16xi32>
    %326 = arith.extui %325 : vector<4x16xi1> to vector<4x16xi32>
    %327 = arith.sitofp %326 : vector<4x16xi32> to vector<4x16xf32>
    %cst_204 = arith.constant dense<0.000000e+00> : vector<4x128xf32>
    %328 = tpu.matmul %327, %309, %cst_204 {dimension_numbers = #tpu.dot_dimension_numbers<[1], [0], [0], [1], [0, 0, 1, 1], [], []>} : vector<4x16xf32>, vector<16x128xf32>, vector<4x128xf32> -> vector<4x128xf32>
    %c1_i32_205 = arith.constant 1 : i32
    %329 = vector.broadcast %c1_i32_205 : i32 to vector<4x16xi32>
    %330 = arith.addi %322, %329 : vector<4x16xi32>
    %331 = arith.cmpi eq, %311, %330 : vector<4x16xi32>
    %332 = arith.extui %331 : vector<4x16xi1> to vector<4x16xi32>
    %333 = arith.sitofp %332 : vector<4x16xi32> to vector<4x16xf32>
    %cst_206 = arith.constant dense<0.000000e+00> : vector<4x128xf32>
    %334 = tpu.matmul %333, %309, %cst_206 {dimension_numbers = #tpu.dot_dimension_numbers<[1], [0], [0], [1], [0, 0, 1, 1], [], []>} : vector<4x16xf32>, vector<16x128xf32>, vector<4x128xf32> -> vector<4x128xf32>
    %335 = arith.maximumf %328, %334 : vector<4x128xf32>
    %c4_i32_207 = arith.constant 4 : i32
    %336 = vector.broadcast %c4_i32_207 : i32 to vector<4x16xi32>
    %337 = arith.addi %322, %336 : vector<4x16xi32>
    %338 = arith.cmpi eq, %311, %337 : vector<4x16xi32>
    %339 = arith.extui %338 : vector<4x16xi1> to vector<4x16xi32>
    %340 = arith.sitofp %339 : vector<4x16xi32> to vector<4x16xf32>
    %cst_208 = arith.constant dense<0.000000e+00> : vector<4x128xf32>
    %341 = tpu.matmul %340, %309, %cst_208 {dimension_numbers = #tpu.dot_dimension_numbers<[1], [0], [0], [1], [0, 0, 1, 1], [], []>} : vector<4x16xf32>, vector<16x128xf32>, vector<4x128xf32> -> vector<4x128xf32>
    %c5_i32 = arith.constant 5 : i32
    %342 = vector.broadcast %c5_i32 : i32 to vector<4x16xi32>
    %343 = arith.addi %322, %342 : vector<4x16xi32>
    %344 = arith.cmpi eq, %311, %343 : vector<4x16xi32>
    %345 = arith.extui %344 : vector<4x16xi1> to vector<4x16xi32>
    %346 = arith.sitofp %345 : vector<4x16xi32> to vector<4x16xf32>
    %cst_209 = arith.constant dense<0.000000e+00> : vector<4x128xf32>
    %347 = tpu.matmul %346, %309, %cst_209 {dimension_numbers = #tpu.dot_dimension_numbers<[1], [0], [0], [1], [0, 0, 1, 1], [], []>} : vector<4x16xf32>, vector<16x128xf32>, vector<4x128xf32> -> vector<4x128xf32>
    %348 = arith.maximumf %341, %347 : vector<4x128xf32>
    %349 = arith.maximumf %335, %348 : vector<4x128xf32>
    %350 = vector.extract_strided_slice %349 {offsets = [0, 0], sizes = [1, 128], strides = [1, 1]} : vector<4x128xf32> to vector<1x128xf32>
    %351 = vector.extract_strided_slice %349 {offsets = [1, 0], sizes = [1, 128], strides = [1, 1]} : vector<4x128xf32> to vector<1x128xf32>
    %352 = vector.extract_strided_slice %349 {offsets = [2, 0], sizes = [1, 128], strides = [1, 1]} : vector<4x128xf32> to vector<1x128xf32>
    %353 = vector.extract_strided_slice %349 {offsets = [3, 0], sizes = [1, 128], strides = [1, 1]} : vector<4x128xf32> to vector<1x128xf32>
    %354 = arith.addf %350, %351 : vector<1x128xf32>
    %355 = arith.addf %354, %352 : vector<1x128xf32>
    %356 = arith.addf %355, %353 : vector<1x128xf32>
    %cst_210 = arith.constant 2.500000e-01 : f32
    %357 = vector.broadcast %cst_210 : f32 to vector<1x128xf32>
    %358 = arith.mulf %356, %357 : vector<1x128xf32>
    %c0_211 = arith.constant 0 : index
    %c0_212 = arith.constant 0 : index
    %359 = vector.load %arg8[%c0_211, %c0_212] : memref<128x10xf32, #tpu.memory_space<vmem>>, vector<128x10xf32>
    %cst_213 = arith.constant dense<0.000000e+00> : vector<1x10xf32>
    %360 = tpu.matmul %358, %359, %cst_213 {dimension_numbers = #tpu.dot_dimension_numbers<[1], [0], [0], [1], [0, 0, 1, 1], [], []>} : vector<1x128xf32>, vector<128x10xf32>, vector<1x10xf32> -> vector<1x10xf32>
    %c0_214 = arith.constant 0 : index
    %c0_215 = arith.constant 0 : index
    %361 = vector.load %arg9[%c0_214, %c0_215] : memref<1x10xf32, #tpu.memory_space<vmem>>, vector<1x10xf32>
    %362 = arith.addf %360, %361 : vector<1x10xf32>
    %c0_216 = arith.constant 0 : index
    %c0_217 = arith.constant 0 : index
    %c0_218 = arith.constant 0 : index
    %363 = vector.load %arg10[%c0_216, %c0_217, %c0_218] : memref<1x1x10xf32, #tpu.memory_space<vmem>>, vector<1x1x10xf32>
    %364 = vector.shape_cast %363 : vector<1x1x10xf32> to vector<1x10xf32>
    %365 = vector.shape_cast %362 : vector<1x10xf32> to vector<1x1x10xf32>
    tpu.vector_store %arg10[%c0_216, %c0_217, %c0_218], %365 {strides = array<i32>} : memref<1x1x10xf32, #tpu.memory_space<vmem>>, vector<1x1x10xf32>,
    return
  }
  func.func @transform_0(%arg0: i32) -> (i32, i32, i32) {
    %c0_i32 = arith.constant 0 : i32
    %c0_i32_0 = arith.constant 0 : i32
    %c0_i32_1 = arith.constant 0 : i32
    return %arg0, %c0_i32, %c0_i32_0 : i32, i32, i32
  }
  func.func @transform_1(%arg0: i32) -> (i32, i32) {
    %c0_i32 = arith.constant 0 : i32
    %c0_i32_0 = arith.constant 0 : i32
    %c0_i32_1 = arith.constant 0 : i32
    return %c0_i32, %c0_i32_0 : i32, i32
  }
  func.func @transform_2(%arg0: i32) -> (i32, i32) {
    %c0_i32 = arith.constant 0 : i32
    %c0_i32_0 = arith.constant 0 : i32
    %c0_i32_1 = arith.constant 0 : i32
    return %c0_i32, %c0_i32_0 : i32, i32
  }
  func.func @transform_3(%arg0: i32) -> (i32, i32, i32) {
    %c0_i32 = arith.constant 0 : i32
    %c0_i32_0 = arith.constant 0 : i32
    %c0_i32_1 = arith.constant 0 : i32
    %c0_i32_2 = arith.constant 0 : i32
    return %c0_i32, %c0_i32_0, %c0_i32_1 : i32, i32, i32
  }
  func.func @transform_4(%arg0: i32) -> (i32, i32) {
    %c0_i32 = arith.constant 0 : i32
    %c0_i32_0 = arith.constant 0 : i32
    %c0_i32_1 = arith.constant 0 : i32
    return %c0_i32, %c0_i32_0 : i32, i32
  }
  func.func @transform_5(%arg0: i32) -> (i32, i32, i32) {
    %c0_i32 = arith.constant 0 : i32
    %c0_i32_0 = arith.constant 0 : i32
    %c0_i32_1 = arith.constant 0 : i32
    %c0_i32_2 = arith.constant 0 : i32
    return %c0_i32, %c0_i32_0, %c0_i32_1 : i32, i32, i32
  }
  func.func @transform_6(%arg0: i32) -> (i32, i32) {
    %c0_i32 = arith.constant 0 : i32
    %c0_i32_0 = arith.constant 0 : i32
    %c0_i32_1 = arith.constant 0 : i32
    return %c0_i32, %c0_i32_0 : i32, i32
  }
  func.func @transform_7(%arg0: i32) -> (i32, i32) {
    %c0_i32 = arith.constant 0 : i32
    %c0_i32_0 = arith.constant 0 : i32
    %c0_i32_1 = arith.constant 0 : i32
    return %c0_i32, %c0_i32_0 : i32, i32
  }
  func.func @transform_8(%arg0: i32) -> (i32, i32) {
    %c0_i32 = arith.constant 0 : i32
    %c0_i32_0 = arith.constant 0 : i32
    %c0_i32_1 = arith.constant 0 : i32
    return %c0_i32, %c0_i32_0 : i32, i32
  }
  func.func @transform_9(%arg0: i32) -> (i32, i32, i32) {
    %c0_i32 = arith.constant 0 : i32
    %c0_i32_0 = arith.constant 0 : i32
    %c0_i32_1 = arith.constant 0 : i32
    return %arg0, %c0_i32, %c0_i32_0 : i32, i32, i32
  }
}

</mosaic_0001>

<llo_original>
// kernel: tpu_custom_call.1
$region0: #{tpu_custom_call.1}
  #allocation0 [shape = 'u32[]', space=smem, size = 0x4, offset = 0x4, fixed_abs, tag = 'smem constant byte address 0x4 - core index']
  #allocation1 [shape = 'u32[72,128]{1,0:T(1,128)}', space=vmem, size = 0x9000, scoped, tag = 'internal scratch']
  #allocation2 [shape = 'f32[290,1]{1,0:T(8,128)}', space=vmem, size = 0x25000, scoped, tag = 'scratch operand']
  #allocation3 [shape = 'f32[82,128]{1,0:T(8,128)}', space=vmem, size = 0xb000, scoped, tag = 'scratch operand']
  #allocation4 [shape = 'f32[26,128]{1,0:T(8,128)}', space=vmem, size = 0x4000, scoped, tag = 'scratch operand']
  %s0 = inlined_call_operand.vmem [shape: f32[2,256,1], index: 0, kind: input, shape index: {}]
  %s1 = inlined_call_operand.vmem [shape: f32[9,128], index: 1, kind: input, shape index: {}]
  %s2 = inlined_call_operand.vmem [shape: f32[1,128], index: 2, kind: input, shape index: {}]
  %s3 = inlined_call_operand.hbm [shape: f32[9,128,128], index: 3, kind: input, shape index: {}]
  %s4 = inlined_call_operand.vmem [shape: f32[1,128], index: 4, kind: input, shape index: {}]
  %s5 = inlined_call_operand.hbm [shape: f32[9,128,128], index: 5, kind: input, shape index: {}]
  %s6 = inlined_call_operand.vmem [shape: f32[1,128], index: 6, kind: input, shape index: {}]
  %s7 = inlined_call_operand.vmem [shape: f32[128,10], index: 7, kind: input, shape index: {}]
  %s8 = inlined_call_operand.vmem [shape: f32[1,10], index: 8, kind: input, shape index: {}]
  %s9 = inlined_call_operand.hbm [shape: f32[2,1,10], index: 9, kind: output, shape index: {}]
  %s10 = sld [smem:[#allocation0]]
  $region77: #{tpu_custom_call.1} parent=0
    _
  %s12 = ssub.s32 1, %s10
  %s13 = scalar_select 0, %s12, %s10
  $region1: #{tpu_custom_call.1} parent=0
    #allocation5 [shape = 'u8[589824]{0}', space=vmem, size = 0x90000, scoped, tag = 'input window, operand 3, single buffered']
    #allocation6 [shape = 's32[2]{0}', space=sflag, size = 0x8, scoped, tag = 'scoped memory for tpu_custom_call.1']
    #allocation7 [shape = 's32[2]{0}', space=sflag, size = 0x8, scoped, tag = 'scoped memory for tpu_custom_call.1']
    #allocation8 [shape = 'u8[589824]{0}', space=vmem, size = 0x90000, scoped, tag = 'input window, operand 5, single buffered']
    #allocation9 [shape = 's32[1]{0}', space=sflag, size = 0x4, scoped, tag = 'scoped memory for tpu_custom_call.1']
    #allocation10 [shape = 'u8[1024]{0}', space=vmem, size = 0x400, scoped, tag = 'output window, operand 0']
    %14 = vsyncpa [#allocation6], 0
    %15 = vsyncpa [#allocation9], 0
    %16 = vsyncpa [#allocation7], 0
    %s17 = scalar_lea.sflag [#allocation7], 1
    %18 = vsyncpa %s17, 0
    loop: start=0, step=1, limit=4
    $region2: #{tpu_custom_call.1} parent=1 // loop_pre_header
      _
    $region3: #{tpu_custom_call.1} parent=1 // loop_header
      %s20 = sphi 0, %s24
      %p21 = scmp.ge.s32.totalorder %s20, 4
      %s30 = sphi 0, %s32
      %s33 = sphi 0, %s30
      %s34 = sphi 0, %s33
      %s50 = sphi 0, %s34
      %s54 = sphi 0, %s54
      %s56 = sphi 0, %s54
      %s57 = sphi 0, %s56
      %s71 = sphi 0, %s57
      %s75 = sphi 0, %s75
      %s77 = sphi 0, %s75
      %s78 = sphi 0, %s77
      %s92 = sphi 0, %s78
      %s96 = sphi 0, %s96
      %s98 = sphi 0, %s96
      %s99 = sphi 0, %s98
      %s113 = sphi 0, %s99
      %s117 = sphi 0, %s117
      %s119 = sphi 0, %s117
      %s120 = sphi 0, %s119
      %s134 = sphi 0, %s120
      %s138 = sphi 0, %s138
      %s140 = sphi 0, %s138
      %s141 = sphi 0, %s140
      %s155 = sphi 0, %s141
      %s159 = sphi 0, %s159
      %s161 = sphi 0, %s159
      %s162 = sphi 0, %s161
      %s176 = sphi 0, %s162
      %s180 = sphi 0, %s180
      %s182 = sphi 0, %s180
      %s183 = sphi 0, %s182
      %s197 = sphi 0, %s183
      %s201 = sphi 0, %s201
      %s203 = sphi 0, %s201
      %s204 = sphi 0, %s203
      %s218 = sphi 0, %s204
      %s224 = sphi 0, %s226
      %s227 = sphi 0, %s224
      %s228 = sphi 0, %s227
      %s244 = sphi 0, %s228
    $region4: #{tpu_custom_call.1} parent=1 // loop_header_branch
      %23 = sbr.rel (%p21) target = $region8
    $region5: #{tpu_custom_call.1} parent=1 // loop_body
      %s25 = ssub.s32 %s20, 1
      %s26 = ssub.s32 %s20, 2
      %s27 = sadd.s32 %s20, 1
      %s28 = ssub.s32 %s20, %s27
      %p29 = scmp.eq.s32.totalorder %s28, 0
      %s31 = sadd.s32 %s30, 1
      %s32 = scalar_select %p29, %s30, %s31
      %p35 = pneg %p29
      %p36 = scmp.eq.s32.totalorder %s20, 1
      %p37 = por %p35, %p36
      %p38 = scmp.ne.s32.totalorder %s30, %s33
      %p39 = scmp.eq.s32.totalorder %s20, 0
      %p40 = por %p38, %p39
      %p41 = scmp.ne.s32.totalorder %s30, %s33
      %p42 = scmp.eq.s32.totalorder %s25, 1
      %p43 = por %p41, %p42
      %p44 = scmp.ne.s32.totalorder %s33, %s34
      %p45 = scmp.eq.s32.totalorder %s25, 0
      %p46 = por %p44, %p45
      %p47 = scmp.ne.s32.totalorder %s33, %s34
      %p48 = scmp.eq.s32.totalorder %s26, 1
      %p49 = por %p47, %p48
      %p51 = scmp.ne.s32.totalorder %s34, %s50
      %p52 = scmp.eq.s32.totalorder %s26, 0
      %p53 = por %p51, %p52
      %s55 = sadd.s32 %s54, 1
      %p58 = scmp.eq.s32.totalorder %s20, 1
      %p59 = scmp.ne.s32.totalorder %s54, %s56
      %p60 = scmp.eq.s32.totalorder %s20, 0
      %p61 = por %p59, %p60
      %p62 = scmp.ne.s32.totalorder %s54, %s56
      %p63 = scmp.eq.s32.totalorder %s25, 1
      %p64 = por %p62, %p63
      %p65 = scmp.ne.s32.totalorder %s56, %s57
      %p66 = scmp.eq.s32.totalorder %s25, 0
      %p67 = por %p65, %p66
      %p68 = scmp.ne.s32.totalorder %s56, %s57
      %p69 = scmp.eq.s32.totalorder %s26, 1
      %p70 = por %p68, %p69
      %p72 = scmp.ne.s32.totalorder %s57, %s71
      %p73 = scmp.eq.s32.totalorder %s26, 0
      %p74 = por %p72, %p73
      %s76 = sadd.s32 %s75, 1
      %p79 = scmp.eq.s32.totalorder %s20, 1
      %p80 = scmp.ne.s32.totalorder %s75, %s77
      %p81 = scmp.eq.s32.totalorder %s20, 0
      %p82 = por %p80, %p81
      %p83 = scmp.ne.s32.totalorder %s75, %s77
      %p84 = scmp.eq.s32.totalorder %s25, 1
      %p85 = por %p83, %p84
      %p86 = scmp.ne.s32.totalorder %s77, %s78
      %p87 = scmp.eq.s32.totalorder %s25, 0
      %p88 = por %p86, %p87
      %p89 = scmp.ne.s32.totalorder %s77, %s78
      %p90 = scmp.eq.s32.totalorder %s26, 1
      %p91 = por %p89, %p90
      %p93 = scmp.ne.s32.totalorder %s78, %s92
      %p94 = scmp.eq.s32.totalorder %s26, 0
      %p95 = por %p93, %p94
      %s97 = sadd.s32 %s96, 1
      %p100 = scmp.eq.s32.totalorder %s20, 1
      %p101 = scmp.ne.s32.totalorder %s96, %s98
      %p102 = scmp.eq.s32.totalorder %s20, 0
      %p103 = por %p101, %p102
      %p104 = scmp.ne.s32.totalorder %s96, %s98
      %p105 = scmp.eq.s32.totalorder %s25, 1
      %p106 = por %p104, %p105
      %p107 = scmp.ne.s32.totalorder %s98, %s99
      %p108 = scmp.eq.s32.totalorder %s25, 0
      %p109 = por %p107, %p108
      %p110 = scmp.ne.s32.totalorder %s98, %s99
      %p111 = scmp.eq.s32.totalorder %s26, 1
      %p112 = por %p110, %p111
      %p114 = scmp.ne.s32.totalorder %s99, %s113
      %p115 = scmp.eq.s32.totalorder %s26, 0
      %p116 = por %p114, %p115
      %s118 = sadd.s32 %s117, 1
      %p121 = scmp.eq.s32.totalorder %s20, 1
      %p122 = scmp.ne.s32.totalorder %s117, %s119
      %p123 = scmp.eq.s32.totalorder %s20, 0
      %p124 = por %p122, %p123
      %p125 = scmp.ne.s32.totalorder %s117, %s119
      %p126 = scmp.eq.s32.totalorder %s25, 1
      %p127 = por %p125, %p126
      %p128 = scmp.ne.s32.totalorder %s119, %s120
      %p129 = scmp.eq.s32.totalorder %s25, 0
      %p130 = por %p128, %p129
      %p131 = scmp.ne.s32.totalorder %s119, %s120
      %p132 = scmp.eq.s32.totalorder %s26, 1
      %p133 = por %p131, %p132
      %p135 = scmp.ne.s32.totalorder %s120, %s134
      %p136 = scmp.eq.s32.totalorder %s26, 0
      %p137 = por %p135, %p136
      %s139 = sadd.s32 %s138, 1
      %p142 = scmp.eq.s32.totalorder %s20, 1
      %p143 = scmp.ne.s32.totalorder %s138, %s140
      %p144 = scmp.eq.s32.totalorder %s20, 0
      %p145 = por %p143, %p144
      %p146 = scmp.ne.s32.totalorder %s138, %s140
      %p147 = scmp.eq.s32.totalorder %s25, 1
      %p148 = por %p146, %p147
      %p149 = scmp.ne.s32.totalorder %s140, %s141
      %p150 = scmp.eq.s32.totalorder %s25, 0
      %p151 = por %p149, %p150
      %p152 = scmp.ne.s32.totalorder %s140, %s141
      %p153 = scmp.eq.s32.totalorder %s26, 1
      %p154 = por %p152, %p153
      %p156 = scmp.ne.s32.totalorder %s141, %s155
      %p157 = scmp.eq.s32.totalorder %s26, 0
      %p158 = por %p156, %p157
      %s160 = sadd.s32 %s159, 1
      %p163 = scmp.eq.s32.totalorder %s20, 1
      %p164 = scmp.ne.s32.totalorder %s159, %s161
      %p165 = scmp.eq.s32.totalorder %s20, 0
      %p166 = por %p164, %p165
      %p167 = scmp.ne.s32.totalorder %s159, %s161
      %p168 = scmp.eq.s32.totalorder %s25, 1
      %p169 = por %p167, %p168
      %p170 = scmp.ne.s32.totalorder %s161, %s162
      %p171 = scmp.eq.s32.totalorder %s25, 0
      %p172 = por %p170, %p171
      %p173 = scmp.ne.s32.totalorder %s161, %s162
      %p174 = scmp.eq.s32.totalorder %s26, 1
      %p175 = por %p173, %p174
      %p177 = scmp.ne.s32.totalorder %s162, %s176
      %p178 = scmp.eq.s32.totalorder %s26, 0
      %p179 = por %p177, %p178
      %s181 = sadd.s32 %s180, 1
      %p184 = scmp.eq.s32.totalorder %s20, 1
      %p185 = scmp.ne.s32.totalorder %s180, %s182
      %p186 = scmp.eq.s32.totalorder %s20, 0
      %p187 = por %p185, %p186
      %p188 = scmp.ne.s32.totalorder %s180, %s182
      %p189 = scmp.eq.s32.totalorder %s25, 1
      %p190 = por %p188, %p189
      %p191 = scmp.ne.s32.totalorder %s182, %s183
      %p192 = scmp.eq.s32.totalorder %s25, 0
      %p193 = por %p191, %p192
      %p194 = scmp.ne.s32.totalorder %s182, %s183
      %p195 = scmp.eq.s32.totalorder %s26, 1
      %p196 = por %p194, %p195
      %p198 = scmp.ne.s32.totalorder %s183, %s197
      %p199 = scmp.eq.s32.totalorder %s26, 0
      %p200 = por %p198, %p199
      %s202 = sadd.s32 %s201, 1
      %p205 = scmp.eq.s32.totalorder %s20, 1
      %p206 = scmp.ne.s32.totalorder %s201, %s203
      %p207 = scmp.eq.s32.totalorder %s20, 0
      %p208 = por %p206, %p207
      %p209 = scmp.ne.s32.totalorder %s201, %s203
      %p210 = scmp.eq.s32.totalorder %s25, 1
      %p211 = por %p209, %p210
      %p212 = scmp.ne.s32.totalorder %s203, %s204
      %p213 = scmp.eq.s32.totalorder %s25, 0
      %p214 = por %p212, %p213
      %p215 = scmp.ne.s32.totalorder %s203, %s204
      %p216 = scmp.eq.s32.totalorder %s26, 1
      %p217 = por %p215, %p216
      %p219 = scmp.ne.s32.totalorder %s204, %s218
      %p220 = scmp.eq.s32.totalorder %s26, 0
      %p221 = por %p219, %p220
      %s222 = ssub.s32 %s20, %s27
      %p223 = scmp.eq.s32.totalorder %s222, 0
      %s225 = sadd.s32 %s224, 1
      %s226 = scalar_select %p223, %s224, %s225
      %p229 = pneg %p223
      %p230 = scmp.eq.s32.totalorder %s20, 1
      %p231 = por %p229, %p230
      %p232 = scmp.ne.s32.totalorder %s224, %s227
      %p233 = scmp.eq.s32.totalorder %s20, 0
      %p234 = por %p232, %p233
      %p235 = scmp.ne.s32.totalorder %s224, %s227
      %p236 = scmp.eq.s32.totalorder %s25, 1
      %p237 = por %p235, %p236
      %p238 = scmp.ne.s32.totalorder %s227, %s228
      %p239 = scmp.eq.s32.totalorder %s25, 0
      %p240 = por %p238, %p239
      %p241 = scmp.ne.s32.totalorder %s227, %s228
      %p242 = scmp.eq.s32.totalorder %s26, 1
      %p243 = por %p241, %p242
      %p245 = scmp.ne.s32.totalorder %s228, %s244
      %p246 = scmp.eq.s32.totalorder %s26, 0
      %p247 = por %p245, %p246
      %p248 = scmp.le.s32.totalorder 1, %s20
      %p249 = scmp.lt.s32.totalorder %s20, 3
      %p250 = pnand %p248, %p249
      %p251 = pneg %p250
      // Predicated region
      $region9: #{tpu_custom_call.1} parent=5 // pred_check
        _
      $region10: #{tpu_custom_call.1} parent=5 // pred_check_branch
        %253 = sbr.rel (%p250) target = $region12
      $region11: #{tpu_custom_call.1} parent=5 // pred_region
        %s254 = ssub.s32 %s20, 1
        // Predicated region
        $region13: #{tpu_custom_call.1} parent=11 // pred_check
          %p255 = pneg %p67
        $region14: #{tpu_custom_call.1} parent=11 // pred_check_branch
          %257 = sbr.rel (%p255) target = $region16
        $region15: #{tpu_custom_call.1} parent=11 // pred_region
          _
        $region16: #{tpu_custom_call.1} parent=11 // pred_fallthru
          _
        // Predicated region
        $region17: #{tpu_custom_call.1} parent=11 // pred_check
          %p258 = pneg %p88
        $region18: #{tpu_custom_call.1} parent=11 // pred_check_branch
          %260 = sbr.rel (%p258) target = $region20
        $region19: #{tpu_custom_call.1} parent=11 // pred_region
          _
        $region20: #{tpu_custom_call.1} parent=11 // pred_fallthru
          _
        // Predicated region
        $region21: #{tpu_custom_call.1} parent=11 // pred_check
          %p261 = pneg %p109
        $region22: #{tpu_custom_call.1} parent=11 // pred_check_branch
          %263 = sbr.rel (%p261) target = $region24
        $region23: #{tpu_custom_call.1} parent=11 // pred_region
          %265 = vsyncadd [#allocation6], 0
          %s266 = sshll.u32 %s3, 4
          %s267 = int_to_ptr.hbm [resolvable:$true] %s266
          %s268 = sshll.u32 [#allocation5], 4
          %s269 = int_to_ptr.vmem [resolvable:$true] %s268
          %274 = dma.hbm_to_vmem [thread:$0]  %s267, 18432, %s269, [#allocation6], 128, 128, 8
        $region24: #{tpu_custom_call.1} parent=11 // pred_fallthru
          _
        // Predicated region
        $region25: #{tpu_custom_call.1} parent=11 // pred_check
          %p275 = pneg %p130
        $region26: #{tpu_custom_call.1} parent=11 // pred_check_branch
          %277 = sbr.rel (%p275) target = $region28
        $region27: #{tpu_custom_call.1} parent=11 // pred_region
          _
        $region28: #{tpu_custom_call.1} parent=11 // pred_fallthru
          _
        // Predicated region
        $region29: #{tpu_custom_call.1} parent=11 // pred_check
          %p278 = pneg %p151
        $region30: #{tpu_custom_call.1} parent=11 // pred_check_branch
          %280 = sbr.rel (%p278) target = $region32
        $region31: #{tpu_custom_call.1} parent=11 // pred_region
          %282 = vsyncadd [#allocation9], 0
          %s283 = sshll.u32 %s5, 4
          %s284 = int_to_ptr.hbm [resolvable:$true] %s283
          %s285 = sshll.u32 [#allocation8], 4
          %s286 = int_to_ptr.vmem [resolvable:$true] %s285
          %291 = dma.hbm_to_vmem [thread:$0]  %s284, 18432, %s286, [#allocation9], 128, 128, 8
        $region32: #{tpu_custom_call.1} parent=11 // pred_fallthru
          _
        // Predicated region
        $region33: #{tpu_custom_call.1} parent=11 // pred_check
          %p292 = pneg %p172
        $region34: #{tpu_custom_call.1} parent=11 // pred_check_branch
          %294 = sbr.rel (%p292) target = $region36
        $region35: #{tpu_custom_call.1} parent=11 // pred_region
          _
        $region36: #{tpu_custom_call.1} parent=11 // pred_fallthru
          _
        // Predicated region
        $region37: #{tpu_custom_call.1} parent=11 // pred_check
          %p295 = pneg %p193
        $region38: #{tpu_custom_call.1} parent=11 // pred_check_branch
          %297 = sbr.rel (%p295) target = $region40
        $region39: #{tpu_custom_call.1} parent=11 // pred_region
          _
        $region40: #{tpu_custom_call.1} parent=11 // pred_fallthru
          _
        // Predicated region
        $region41: #{tpu_custom_call.1} parent=11 // pred_check
          %p298 = pneg %p214
        $region42: #{tpu_custom_call.1} parent=11 // pred_check_branch
          %300 = sbr.rel (%p298) target = $region44
        $region43: #{tpu_custom_call.1} parent=11 // pred_region
          _
        $region44: #{tpu_custom_call.1} parent=11 // pred_fallthru
          _
      $region12: #{tpu_custom_call.1} parent=5 // pred_fallthru
        _
      %p301 = scmp.lt.s32.totalorder %s20, 2
      // Predicated region
      $region45: #{tpu_custom_call.1} parent=5 // pred_check
        %p302 = pneg %p301
      $region46: #{tpu_custom_call.1} parent=5 // pred_check_branch
        %304 = sbr.rel (%p302) target = $region48
      $region47: #{tpu_custom_call.1} parent=5 // pred_region
        // Predicated region
        $region49: #{tpu_custom_call.1} parent=47 // pred_check
          %p305 = pneg %p40
        $region50: #{tpu_custom_call.1} parent=47 // pred_check_branch
          %307 = sbr.rel (%p305) target = $region52
        $region51: #{tpu_custom_call.1} parent=47 // pred_region
          %p308 = scmp.lt.s32.totalorder %s20, 1
          %s309 = scalar_select %p308, %s20, 1
          %s310 = smul.addr %s309, 32
          %s311 = smul.addr %s310, 8
          %s312 = scalar_lea.vmem %s0, %s311
        $region52: #{tpu_custom_call.1} parent=47 // pred_fallthru
          _
      $region48: #{tpu_custom_call.1} parent=5 // pred_fallthru
        _
      %p313 = scmp.le.s32.totalorder 1, %s20
      %p314 = scmp.lt.s32.totalorder %s20, 3
      %p315 = pnand %p313, %p314
      %p316 = pneg %p315
      // Predicated region
      $region53: #{tpu_custom_call.1} parent=5 // pred_check
        _
      $region54: #{tpu_custom_call.1} parent=5 // pred_check_branch
        %318 = sbr.rel (%p315) target = $region56
      $region55: #{tpu_custom_call.1} parent=5 // pred_region
        %s319 = ssub.s32 %s20, 1
        // Predicated region
        $region57: #{tpu_custom_call.1} parent=55 // pred_check
          %p320 = pneg %p109
        $region58: #{tpu_custom_call.1} parent=55 // pred_check_branch
          %322 = sbr.rel (%p320) target = $region60
        $region59: #{tpu_custom_call.1} parent=55 // pred_region
          %324 = dma.done [#allocation6], 18432
        $region60: #{tpu_custom_call.1} parent=55 // pred_fallthru
          _
        // Predicated region
        $region61: #{tpu_custom_call.1} parent=55 // pred_check
          %p325 = pneg %p151
        $region62: #{tpu_custom_call.1} parent=55 // pred_check_branch
          %327 = sbr.rel (%p325) target = $region64
        $region63: #{tpu_custom_call.1} parent=55 // pred_region
          %329 = dma.done [#allocation9], 18432
        $region64: #{tpu_custom_call.1} parent=55 // pred_fallthru
          _
        %p330 = scmp.lt.s32.totalorder %s25, 1
        %s331 = scalar_select %p330, %s25, 1
        %s332 = smul.addr %s331, 32
        %s333 = smul.addr %s332, 8
        %s334 = scalar_lea.vmem %s0, %s333
        %p335 = pneg %p46
        %p336 = pneg %p43
        %p337 = pneg %p67
        %p338 = pneg %p64
        %p339 = pneg %p88
        %p340 = pneg %p85
        %p341 = pneg %p109
        %p342 = pneg %p106
        %p343 = pneg %p130
        %p344 = pneg %p127
        %p345 = pneg %p151
        %p346 = pneg %p148
        %p347 = pneg %p172
        %p348 = pneg %p169
        %p349 = pneg %p193
        %p350 = pneg %p190
        %p351 = pneg %p214
        %p352 = pneg %p211
        %p353 = pneg %p240
        %p354 = pneg %p237
        %s355 = sand.u32 %s227, 1
        %s356 = scalar_lea.sflag [#allocation7], %s355
        %s357 = sand.u32 %s227, 1
        %s358 = scalar_lea.vmem [#allocation10], %s357
        %p359 = scmp.lt.s32.totalorder %s25, 1
        %s360 = scalar_select %p359, %s25, 1
        %s361 = smul.addr %s360, 32
        %s362 = smul.addr %s361, 8
        %s363 = scalar_lea.vmem %s0, %s362
        %vm364 = vcmask 7168
        %365 = vst.msk [vmem:[#allocation2] sm:$0xff] %vm364, 0.0
        %366 = vst.msk [vmem:[#allocation2 + $0x8] sm:$0xff] %vm364, 0.0
        %367 = vst.msk [vmem:[#allocation2 + $0x10] sm:$0xff] %vm364, 0.0
        %368 = vst.msk [vmem:[#allocation2 + $0x18] sm:$0xff] %vm364, 0.0
        %369 = vst.msk [vmem:[#allocation2 + $0x20] sm:$0xff] %vm364, 0.0
        %370 = vst.msk [vmem:[#allocation2 + $0x28] sm:$0xff] %vm364, 0.0
        %371 = vst.msk [vmem:[#allocation2 + $0x30] sm:$0xff] %vm364, 0.0
        %372 = vst.msk [vmem:[#allocation2 + $0x38] sm:$0xff] %vm364, 0.0
        %373 = vst.msk [vmem:[#allocation2 + $0x40] sm:$0xff] %vm364, 0.0
        %374 = vst.msk [vmem:[#allocation2 + $0x48] sm:$0xff] %vm364, 0.0
        %375 = vst.msk [vmem:[#allocation2 + $0x50] sm:$0xff] %vm364, 0.0
        %376 = vst.msk [vmem:[#allocation2 + $0x58] sm:$0xff] %vm364, 0.0
        %377 = vst.msk [vmem:[#allocation2 + $0x60] sm:$0xff] %vm364, 0.0
        %378 = vst.msk [vmem:[#allocation2 + $0x68] sm:$0xff] %vm364, 0.0
        %379 = vst.msk [vmem:[#allocation2 + $0x70] sm:$0xff] %vm364, 0.0
        %380 = vst.msk [vmem:[#allocation2 + $0x78] sm:$0xff] %vm364, 0.0
        %381 = vst.msk [vmem:[#allocation2 + $0x80] sm:$0xff] %vm364, 0.0
        %382 = vst.msk [vmem:[#allocation2 + $0x88] sm:$0xff] %vm364, 0.0
        %383 = vst.msk [vmem:[#allocation2 + $0x90] sm:$0xff] %vm364, 0.0
        %384 = vst.msk [vmem:[#allocation2 + $0x98] sm:$0xff] %vm364, 0.0
        %385 = vst.msk [vmem:[#allocation2 + $0xa0] sm:$0xff] %vm364, 0.0
        %386 = vst.msk [vmem:[#allocation2 + $0xa8] sm:$0xff] %vm364, 0.0
        %387 = vst.msk [vmem:[#allocation2 + $0xb0] sm:$0xff] %vm364, 0.0
        %388 = vst.msk [vmem:[#allocation2 + $0xb8] sm:$0xff] %vm364, 0.0
        %389 = vst.msk [vmem:[#allocation2 + $0xc0] sm:$0xff] %vm364, 0.0
        %390 = vst.msk [vmem:[#allocation2 + $0xc8] sm:$0xff] %vm364, 0.0
        %391 = vst.msk [vmem:[#allocation2 + $0xd0] sm:$0xff] %vm364, 0.0
        %392 = vst.msk [vmem:[#allocation2 + $0xd8] sm:$0xff] %vm364, 0.0
        %393 = vst.msk [vmem:[#allocation2 + $0xe0] sm:$0xff] %vm364, 0.0
        %394 = vst.msk [vmem:[#allocation2 + $0xe8] sm:$0xff] %vm364, 0.0
        %395 = vst.msk [vmem:[#allocation2 + $0xf0] sm:$0xff] %vm364, 0.0
        %396 = vst.msk [vmem:[#allocation2 + $0xf8] sm:$0xff] %vm364, 0.0
        %397 = vst.msk [vmem:[#allocation2 + $0x100] sm:$0xff] %vm364, 0.0
        %398 = vst.msk [vmem:[#allocation2 + $0x108] sm:$0xff] %vm364, 0.0
        %399 = vst.msk [vmem:[#allocation2 + $0x110] sm:$0xff] %vm364, 0.0
        %400 = vst.msk [vmem:[#allocation2 + $0x118] sm:$0xff] %vm364, 0.0
        %vm401 = vcmask 1024
        %402 = vst.msk [vmem:[#allocation2 + $0x120] sm:$0x3] %vm401, 0.0
        %403 = vst [vmem:[#allocation3] sm:$0xff] 0.0
        %404 = vst [vmem:[#allocation3 + $0x8] sm:$0xff] 0.0
        %405 = vst [vmem:[#allocation3 + $0x10] sm:$0xff] 0.0
        %406 = vst [vmem:[#allocation3 + $0x18] sm:$0xff] 0.0
        %407 = vst [vmem:[#allocation3 + $0x20] sm:$0xff] 0.0
        %408 = vst [vmem:[#allocation3 + $0x28] sm:$0xff] 0.0
        %409 = vst [vmem:[#allocation3 + $0x30] sm:$0xff] 0.0
        %410 = vst [vmem:[#allocation3 + $0x38] sm:$0xff] 0.0
        %411 = vst [vmem:[#allocation3 + $0x40] sm:$0xff] 0.0
        %412 = vst [vmem:[#allocation3 + $0x48] sm:$0xff] 0.0
        %413 = vst [vmem:[#allocation3 + $0x50] sm:$0x3] 0.0
        %414 = vst [vmem:[#allocation4] sm:$0xff] 0.0
        %415 = vst [vmem:[#allocation4 + $0x8] sm:$0xff] 0.0
        %416 = vst [vmem:[#allocation4 + $0x10] sm:$0xff] 0.0
        %417 = vst [vmem:[#allocation4 + $0x18] sm:$0x3] 0.0
        %v418 = vld [vmem:[%s363] sm:$0xff]
        %v419 = vld [vmem:[%s363 + $0x8] sm:$0xff]
        %v420 = vld [vmem:[%s363 + $0x10] sm:$0xff]
        %v421 = vld [vmem:[%s363 + $0x18] sm:$0xff]
        %v422 = vld [vmem:[%s363 + $0x20] sm:$0xff]
        %v423 = vld [vmem:[%s363 + $0x28] sm:$0xff]
        %v424 = vld [vmem:[%s363 + $0x30] sm:$0xff]
        %v425 = vld [vmem:[%s363 + $0x38] sm:$0xff]
        %v426 = vld [vmem:[%s363 + $0x40] sm:$0xff]
        %v427 = vld [vmem:[%s363 + $0x48] sm:$0xff]
        %v428 = vld [vmem:[%s363 + $0x50] sm:$0xff]
        %v429 = vld [vmem:[%s363 + $0x58] sm:$0xff]
        %v430 = vld [vmem:[%s363 + $0x60] sm:$0xff]
        %v431 = vld [vmem:[%s363 + $0x68] sm:$0xff]
        %v432 = vld [vmem:[%s363 + $0x70] sm:$0xff]
        %v433 = vld [vmem:[%s363 + $0x78] sm:$0xff]
        %v434 = vld [vmem:[%s363 + $0x80] sm:$0xff]
        %v435 = vld [vmem:[%s363 + $0x88] sm:$0xff]
        %v436 = vld [vmem:[%s363 + $0x90] sm:$0xff]
        %v437 = vld [vmem:[%s363 + $0x98] sm:$0xff]
        %v438 = vld [vmem:[%s363 + $0xa0] sm:$0xff]
        %v439 = vld [vmem:[%s363 + $0xa8] sm:$0xff]
        %v440 = vld [vmem:[%s363 + $0xb0] sm:$0xff]
        %v441 = vld [vmem:[%s363 + $0xb8] sm:$0xff]
        %v442 = vld [vmem:[%s363 + $0xc0] sm:$0xff]
        %v443 = vld [vmem:[%s363 + $0xc8] sm:$0xff]
        %v444 = vld [vmem:[%s363 + $0xd0] sm:$0xff]
        %v445 = vld [vmem:[%s363 + $0xd8] sm:$0xff]
        %v446 = vld [vmem:[%s363 + $0xe0] sm:$0xff]
        %v447 = vld [vmem:[%s363 + $0xe8] sm:$0xff]
        %v448 = vld [vmem:[%s363 + $0xf0] sm:$0xff]
        %v449 = vld [vmem:[%s363 + $0xf8] sm:$0xff]
        %450 = vst.msk [vmem:[#allocation2 + $0x11] sm:$0xff] %vm364, %v418
        %451 = vst.msk [vmem:[#allocation2 + $0x19] sm:$0xff] %vm364, %v419
        %452 = vst.msk [vmem:[#allocation2 + $0x21] sm:$0xff] %vm364, %v420
        %453 = vst.msk [vmem:[#allocation2 + $0x29] sm:$0xff] %vm364, %v421
        %454 = vst.msk [vmem:[#allocation2 + $0x31] sm:$0xff] %vm364, %v422
        %455 = vst.msk [vmem:[#allocation2 + $0x39] sm:$0xff] %vm364, %v423
        %456 = vst.msk [vmem:[#allocation2 + $0x41] sm:$0xff] %vm364, %v424
        %457 = vst.msk [vmem:[#allocation2 + $0x49] sm:$0xff] %vm364, %v425
        %458 = vst.msk [vmem:[#allocation2 + $0x51] sm:$0xff] %vm364, %v426
        %459 = vst.msk [vmem:[#allocation2 + $0x59] sm:$0xff] %vm364, %v427
        %460 = vst.msk [vmem:[#allocation2 + $0x61] sm:$0xff] %vm364, %v428
        %461 = vst.msk [vmem:[#allocation2 + $0x69] sm:$0xff] %vm364, %v429
        %462 = vst.msk [vmem:[#allocation2 + $0x71] sm:$0xff] %vm364, %v430
        %463 = vst.msk [vmem:[#allocation2 + $0x79] sm:$0xff] %vm364, %v431
        %464 = vst.msk [vmem:[#allocation2 + $0x81] sm:$0xff] %vm364, %v432
        %465 = vst.msk [vmem:[#allocation2 + $0x89] sm:$0xff] %vm364, %v433
        %466 = vst.msk [vmem:[#allocation2 + $0x91] sm:$0xff] %vm364, %v434
        %467 = vst.msk [vmem:[#allocation2 + $0x99] sm:$0xff] %vm364, %v435
        %468 = vst.msk [vmem:[#allocation2 + $0xa1] sm:$0xff] %vm364, %v436
        %469 = vst.msk [vmem:[#allocation2 + $0xa9] sm:$0xff] %vm364, %v437
        %470 = vst.msk [vmem:[#allocation2 + $0xb1] sm:$0xff] %vm364, %v438
        %471 = vst.msk [vmem:[#allocation2 + $0xb9] sm:$0xff] %vm364, %v439
        %472 = vst.msk [vmem:[#allocation2 + $0xc1] sm:$0xff] %vm364, %v440
        %473 = vst.msk [vmem:[#allocation2 + $0xc9] sm:$0xff] %vm364, %v441
        %474 = vst.msk [vmem:[#allocation2 + $0xd1] sm:$0xff] %vm364, %v442
        %475 = vst.msk [vmem:[#allocation2 + $0xd9] sm:$0xff] %vm364, %v443
        %476 = vst.msk [vmem:[#allocation2 + $0xe1] sm:$0xff] %vm364, %v444
        %477 = vst.msk [vmem:[#allocation2 + $0xe9] sm:$0xff] %vm364, %v445
        %478 = vst.msk [vmem:[#allocation2 + $0xf1] sm:$0xff] %vm364, %v446
        %479 = vst.msk [vmem:[#allocation2 + $0xf9] sm:$0xff] %vm364, %v447
        %480 = vst.msk [vmem:[#allocation2 + $0x101] sm:$0xff] %vm364, %v448
        %481 = vst.msk [vmem:[#allocation2 + $0x109] sm:$0xff] %vm364, %v449
        %v482 = vld [vmem:[%s2] sm:$0x1]
        %v483 = vlaneseq
        %v484 = vshrl.u32 %v483, 7
        %v485 = vadd.s32 %v484, 8
        %v486 = vadd.s32 %v484, 16
        %v487 = vadd.s32 %v484, 24
        %v488 = vadd.s32 %v484, 32
        %v489 = vadd.s32 %v484, 40
        %v490 = vadd.s32 %v484, 48
        %v491 = vadd.s32 %v484, 56
        %v492 = vadd.s32 %v484, 64
        %v493 = vadd.s32 %v484, 72
        %v494 = vadd.s32 %v484, 80
        %v495 = vadd.s32 %v484, 88
        %v496 = vadd.s32 %v484, 96
        %v497 = vadd.s32 %v484, 104
        %v498 = vadd.s32 %v484, 112
        %v499 = vadd.s32 %v484, 120
        %v500 = vadd.s32 %v484, 128
        %v501 = vadd.s32 %v484, 136
        %v502 = vadd.s32 %v484, 144
        %v503 = vadd.s32 %v484, 152
        %v504 = vadd.s32 %v484, 160
        %v505 = vadd.s32 %v484, 168
        %v506 = vadd.s32 %v484, 176
        %v507 = vadd.s32 %v484, 184
        %v508 = vadd.s32 %v484, 192
        %v509 = vadd.s32 %v484, 200
        %v510 = vadd.s32 %v484, 208
        %v511 = vadd.s32 %v484, 216
        %v512 = vadd.s32 %v484, 224
        %v513 = vadd.s32 %v484, 232
        %v514 = vadd.s32 %v484, 240
        %v515 = vadd.s32 %v484, 248
        %v516 = vand.u32 %v484, 15
        %v517 = vand.u32 %v485, 15
        %v518 = vand.u32 %v486, 15
        %v519 = vand.u32 %v487, 15
        %v520 = vand.u32 %v488, 15
        %v521 = vand.u32 %v489, 15
        %v522 = vand.u32 %v490, 15
        %v523 = vand.u32 %v491, 15
        %v524 = vand.u32 %v492, 15
        %v525 = vand.u32 %v493, 15
        %v526 = vand.u32 %v494, 15
        %v527 = vand.u32 %v495, 15
        %v528 = vand.u32 %v496, 15
        %v529 = vand.u32 %v497, 15
        %v530 = vand.u32 %v498, 15
        %v531 = vand.u32 %v499, 15
        %v532 = vand.u32 %v500, 15
        %v533 = vand.u32 %v501, 15
        %v534 = vand.u32 %v502, 15
        %v535 = vand.u32 %v503, 15
        %v536 = vand.u32 %v504, 15
        %v537 = vand.u32 %v505, 15
        %v538 = vand.u32 %v506, 15
        %v539 = vand.u32 %v507, 15
        %v540 = vand.u32 %v508, 15
        %v541 = vand.u32 %v509, 15
        %v542 = vand.u32 %v510, 15
        %v543 = vand.u32 %v511, 15
        %v544 = vand.u32 %v512, 15
        %v545 = vand.u32 %v513, 15
        %v546 = vand.u32 %v514, 15
        %v547 = vand.u32 %v515, 15
        %vm548 = vcmp.gt.s32.totalorder %v516, 0
        %vm549 = vcmp.gt.s32.totalorder %v517, 0
        %vm550 = vcmp.gt.s32.totalorder %v518, 0
        %vm551 = vcmp.gt.s32.totalorder %v519, 0
        %vm552 = vcmp.gt.s32.totalorder %v520, 0
        %vm553 = vcmp.gt.s32.totalorder %v521, 0
        %vm554 = vcmp.gt.s32.totalorder %v522, 0
        %vm555 = vcmp.gt.s32.totalorder %v523, 0
        %vm556 = vcmp.gt.s32.totalorder %v524, 0
        %vm557 = vcmp.gt.s32.totalorder %v525, 0
        %vm558 = vcmp.gt.s32.totalorder %v526, 0
        %vm559 = vcmp.gt.s32.totalorder %v527, 0
        %vm560 = vcmp.gt.s32.totalorder %v528, 0
        %vm561 = vcmp.gt.s32.totalorder %v529, 0
        %vm562 = vcmp.gt.s32.totalorder %v530, 0
        %vm563 = vcmp.gt.s32.totalorder %v531, 0
        %vm564 = vcmp.gt.s32.totalorder %v532, 0
        %vm565 = vcmp.gt.s32.totalorder %v533, 0
        %vm566 = vcmp.gt.s32.totalorder %v534, 0
        %vm567 = vcmp.gt.s32.totalorder %v535, 0
        %vm568 = vcmp.gt.s32.totalorder %v536, 0
        %vm569 = vcmp.gt.s32.totalorder %v537, 0
        %vm570 = vcmp.gt.s32.totalorder %v538, 0
        %vm571 = vcmp.gt.s32.totalorder %v539, 0
        %vm572 = vcmp.gt.s32.totalorder %v540, 0
        %vm573 = vcmp.gt.s32.totalorder %v541, 0
        %vm574 = vcmp.gt.s32.totalorder %v542, 0
        %vm575 = vcmp.gt.s32.totalorder %v543, 0
        %vm576 = vcmp.gt.s32.totalorder %v544, 0
        %vm577 = vcmp.gt.s32.totalorder %v545, 0
        %vm578 = vcmp.gt.s32.totalorder %v546, 0
        %vm579 = vcmp.gt.s32.totalorder %v547, 0
        %vm580 = vcmp.lt.s32.totalorder %v516, 15
        %vm581 = vcmp.lt.s32.totalorder %v517, 15
        %vm582 = vcmp.lt.s32.totalorder %v518, 15
        %vm583 = vcmp.lt.s32.totalorder %v519, 15
        %vm584 = vcmp.lt.s32.totalorder %v520, 15
        %vm585 = vcmp.lt.s32.totalorder %v521, 15
        %vm586 = vcmp.lt.s32.totalorder %v522, 15
        %vm587 = vcmp.lt.s32.totalorder %v523, 15
        %vm588 = vcmp.lt.s32.totalorder %v524, 15
        %vm589 = vcmp.lt.s32.totalorder %v525, 15
        %vm590 = vcmp.lt.s32.totalorder %v526, 15
        %vm591 = vcmp.lt.s32.totalorder %v527, 15
        %vm592 = vcmp.lt.s32.totalorder %v528, 15
        %vm593 = vcmp.lt.s32.totalorder %v529, 15
        %vm594 = vcmp.lt.s32.totalorder %v530, 15
        %vm595 = vcmp.lt.s32.totalorder %v531, 15
        %vm596 = vcmp.lt.s32.totalorder %v532, 15
        %vm597 = vcmp.lt.s32.totalorder %v533, 15
        %vm598 = vcmp.lt.s32.totalorder %v534, 15
        %vm599 = vcmp.lt.s32.totalorder %v535, 15
        %vm600 = vcmp.lt.s32.totalorder %v536, 15
        %vm601 = vcmp.lt.s32.totalorder %v537, 15
        %vm602 = vcmp.lt.s32.totalorder %v538, 15
        %vm603 = vcmp.lt.s32.totalorder %v539, 15
        %vm604 = vcmp.lt.s32.totalorder %v540, 15
        %vm605 = vcmp.lt.s32.totalorder %v541, 15
        %vm606 = vcmp.lt.s32.totalorder %v542, 15
        %vm607 = vcmp.lt.s32.totalorder %v543, 15
        %vm608 = vcmp.lt.s32.totalorder %v544, 15
        %vm609 = vcmp.lt.s32.totalorder %v545, 15
        %vm610 = vcmp.lt.s32.totalorder %v546, 15
        %vm611 = vcmp.lt.s32.totalorder %v547, 15
        %v612 = vld [vmem:[#allocation2] sm:$0xff]
        %v613 = vld [vmem:[#allocation2 + $0x8] sm:$0xff]
        %v614 = vld [vmem:[#allocation2 + $0x10] sm:$0xff]
        %v615 = vld [vmem:[#allocation2 + $0x18] sm:$0xff]
        %v616 = vld [vmem:[#allocation2 + $0x20] sm:$0xff]
        %v617 = vld [vmem:[#allocation2 + $0x28] sm:$0xff]
        %v618 = vld [vmem:[#allocation2 + $0x30] sm:$0xff]
        %v619 = vld [vmem:[#allocation2 + $0x38] sm:$0xff]
        %v620 = vld [vmem:[#allocation2 + $0x40] sm:$0xff]
        %v621 = vld [vmem:[#allocation2 + $0x48] sm:$0xff]
        %v622 = vld [vmem:[#allocation2 + $0x50] sm:$0xff]
        %v623 = vld [vmem:[#allocation2 + $0x58] sm:$0xff]
        %v624 = vld [vmem:[#allocation2 + $0x60] sm:$0xff]
        %v625 = vld [vmem:[#allocation2 + $0x68] sm:$0xff]
        %v626 = vld [vmem:[#allocation2 + $0x70] sm:$0xff]
        %v627 = vld [vmem:[#allocation2 + $0x78] sm:$0xff]
        %v628 = vld [vmem:[#allocation2 + $0x80] sm:$0xff]
        %v629 = vld [vmem:[#allocation2 + $0x88] sm:$0xff]
        %v630 = vld [vmem:[#allocation2 + $0x90] sm:$0xff]
        %v631 = vld [vmem:[#allocation2 + $0x98] sm:$0xff]
        %v632 = vld [vmem:[#allocation2 + $0xa0] sm:$0xff]
        %v633 = vld [vmem:[#allocation2 + $0xa8] sm:$0xff]
        %v634 = vld [vmem:[#allocation2 + $0xb0] sm:$0xff]
        %v635 = vld [vmem:[#allocation2 + $0xb8] sm:$0xff]
        %v636 = vld [vmem:[#allocation2 + $0xc0] sm:$0xff]
        %v637 = vld [vmem:[#allocation2 + $0xc8] sm:$0xff]
        %v638 = vld [vmem:[#allocation2 + $0xd0] sm:$0xff]
        %v639 = vld [vmem:[#allocation2 + $0xd8] sm:$0xff]
        %v640 = vld [vmem:[#allocation2 + $0xe0] sm:$0xff]
        %v641 = vld [vmem:[#allocation2 + $0xe8] sm:$0xff]
        %v642 = vld [vmem:[#allocation2 + $0xf0] sm:$0xff]
        %v643 = vld [vmem:[#allocation2 + $0xf8] sm:$0xff]
        %v644 = vsel %vm548, %v612, 0.0
        %v645 = vsel %vm549, %v613, 0.0
        %v646 = vsel %vm550, %v614, 0.0
        %v647 = vsel %vm551, %v615, 0.0
        %v648 = vsel %vm552, %v616, 0.0
        %v649 = vsel %vm553, %v617, 0.0
        %v650 = vsel %vm554, %v618, 0.0
        %v651 = vsel %vm555, %v619, 0.0
        %v652 = vsel %vm556, %v620, 0.0
        %v653 = vsel %vm557, %v621, 0.0
        %v654 = vsel %vm558, %v622, 0.0
        %v655 = vsel %vm559, %v623, 0.0
        %v656 = vsel %vm560, %v624, 0.0
        %v657 = vsel %vm561, %v625, 0.0
        %v658 = vsel %vm562, %v626, 0.0
        %v659 = vsel %vm563, %v627, 0.0
        %v660 = vsel %vm564, %v628, 0.0
        %v661 = vsel %vm565, %v629, 0.0
        %v662 = vsel %vm566, %v630, 0.0
        %v663 = vsel %vm567, %v631, 0.0
        %v664 = vsel %vm568, %v632, 0.0
        %v665 = vsel %vm569, %v633, 0.0
        %v666 = vsel %vm570, %v634, 0.0
        %v667 = vsel %vm571, %v635, 0.0
        %v668 = vsel %vm572, %v636, 0.0
        %v669 = vsel %vm573, %v637, 0.0
        %v670 = vsel %vm574, %v638, 0.0
        %v671 = vsel %vm575, %v639, 0.0
        %v672 = vsel %vm576, %v640, 0.0
        %v673 = vsel %vm577, %v641, 0.0
        %v674 = vsel %vm578, %v642, 0.0
        %v675 = vsel %vm579, %v643, 0.0
        %v676 = vld [vmem:[%s1] sm:$0x1]
        %678 = vset.pattern.permute.xlu0 0
        %679 = vperm.xlu0 %678, %v644
        %v680 = vpop.permute.xlu0 %679
        %683 = vset.pattern.permute.xlu0 0
        %684 = vperm.xlu0 %683, %v645
        %v685 = vpop.permute.xlu0 %684
        %688 = vset.pattern.permute.xlu0 0
        %689 = vperm.xlu0 %688, %v646
        %v690 = vpop.permute.xlu0 %689
        %693 = vset.pattern.permute.xlu0 0
        %694 = vperm.xlu0 %693, %v647
        %v695 = vpop.permute.xlu0 %694
        %698 = vset.pattern.permute.xlu0 0
        %699 = vperm.xlu0 %698, %v648
        %v700 = vpop.permute.xlu0 %699
        %703 = vset.pattern.permute.xlu0 0
        %704 = vperm.xlu0 %703, %v649
        %v705 = vpop.permute.xlu0 %704
        %708 = vset.pattern.permute.xlu0 0
        %709 = vperm.xlu0 %708, %v650
        %v710 = vpop.permute.xlu0 %709
        %713 = vset.pattern.permute.xlu0 0
        %714 = vperm.xlu0 %713, %v651
        %v715 = vpop.permute.xlu0 %714
        %718 = vset.pattern.permute.xlu0 0
        %719 = vperm.xlu0 %718, %v652
        %v720 = vpop.permute.xlu0 %719
        %723 = vset.pattern.permute.xlu0 0
        %724 = vperm.xlu0 %723, %v653
        %v725 = vpop.permute.xlu0 %724
        %728 = vset.pattern.permute.xlu0 0
        %729 = vperm.xlu0 %728, %v654
        %v730 = vpop.permute.xlu0 %729
        %733 = vset.pattern.permute.xlu0 0
        %734 = vperm.xlu0 %733, %v655
        %v735 = vpop.permute.xlu0 %734
        %738 = vset.pattern.permute.xlu0 0
        %739 = vperm.xlu0 %738, %v656
        %v740 = vpop.permute.xlu0 %739
        %743 = vset.pattern.permute.xlu0 0
        %744 = vperm.xlu0 %743, %v657
        %v745 = vpop.permute.xlu0 %744
        %748 = vset.pattern.permute.xlu0 0
        %749 = vperm.xlu0 %748, %v658
        %v750 = vpop.permute.xlu0 %749
        %753 = vset.pattern.permute.xlu0 0
        %754 = vperm.xlu0 %753, %v659
        %v755 = vpop.permute.xlu0 %754
        %758 = vset.pattern.permute.xlu0 0
        %759 = vperm.xlu0 %758, %v660
        %v760 = vpop.permute.xlu0 %759
        %763 = vset.pattern.permute.xlu0 0
        %764 = vperm.xlu0 %763, %v661
        %v765 = vpop.permute.xlu0 %764
        %768 = vset.pattern.permute.xlu0 0
        %769 = vperm.xlu0 %768, %v662
        %v770 = vpop.permute.xlu0 %769
        %773 = vset.pattern.permute.xlu0 0
        %774 = vperm.xlu0 %773, %v663
        %v775 = vpop.permute.xlu0 %774
        %778 = vset.pattern.permute.xlu0 0
        %779 = vperm.xlu0 %778, %v664
        %v780 = vpop.permute.xlu0 %779
        %783 = vset.pattern.permute.xlu0 0
        %784 = vperm.xlu0 %783, %v665
        %v785 = vpop.permute.xlu0 %784
        %788 = vset.pattern.permute.xlu0 0
        %789 = vperm.xlu0 %788, %v666
        %v790 = vpop.permute.xlu0 %789
        %793 = vset.pattern.permute.xlu0 0
        %794 = vperm.xlu0 %793, %v667
        %v795 = vpop.permute.xlu0 %794
        %798 = vset.pattern.permute.xlu0 0
        %799 = vperm.xlu0 %798, %v668
        %v800 = vpop.permute.xlu0 %799
        %803 = vset.pattern.permute.xlu0 0
        %804 = vperm.xlu0 %803, %v669
        %v805 = vpop.permute.xlu0 %804
        %808 = vset.pattern.permute.xlu0 0
        %809 = vperm.xlu0 %808, %v670
        %v810 = vpop.permute.xlu0 %809
        %813 = vset.pattern.permute.xlu0 0
        %814 = vperm.xlu0 %813, %v671
        %v815 = vpop.permute.xlu0 %814
        %818 = vset.pattern.permute.xlu0 0
        %819 = vperm.xlu0 %818, %v672
        %v820 = vpop.permute.xlu0 %819
        %823 = vset.pattern.permute.xlu0 0
        %824 = vperm.xlu0 %823, %v673
        %v825 = vpop.permute.xlu0 %824
        %828 = vset.pattern.permute.xlu0 0
        %829 = vperm.xlu0 %828, %v674
        %v830 = vpop.permute.xlu0 %829
        %833 = vset.pattern.permute.xlu0 0
        %834 = vperm.xlu0 %833, %v675
        %v835 = vpop.permute.xlu0 %834
        %v837 = vperm.slane %v676, 0
        %v838 = vmul.f32 %v680, %v837
        %v839 = vmul.f32 %v685, %v837
        %v840 = vmul.f32 %v690, %v837
        %v841 = vmul.f32 %v695, %v837
        %v842 = vmul.f32 %v700, %v837
        %v843 = vmul.f32 %v705, %v837
        %v844 = vmul.f32 %v710, %v837
        %v845 = vmul.f32 %v715, %v837
        %v846 = vmul.f32 %v720, %v837
        %v847 = vmul.f32 %v725, %v837
        %v848 = vmul.f32 %v730, %v837
        %v849 = vmul.f32 %v735, %v837
        %v850 = vmul.f32 %v740, %v837
        %v851 = vmul.f32 %v745, %v837
        %v852 = vmul.f32 %v750, %v837
        %v853 = vmul.f32 %v755, %v837
        %v854 = vmul.f32 %v760, %v837
        %v855 = vmul.f32 %v765, %v837
        %v856 = vmul.f32 %v770, %v837
        %v857 = vmul.f32 %v775, %v837
        %v858 = vmul.f32 %v780, %v837
        %v859 = vmul.f32 %v785, %v837
        %v860 = vmul.f32 %v790, %v837
        %v861 = vmul.f32 %v795, %v837
        %v862 = vmul.f32 %v800, %v837
        %v863 = vmul.f32 %v805, %v837
        %v864 = vmul.f32 %v810, %v837
        %v865 = vmul.f32 %v815, %v837
        %v866 = vmul.f32 %v820, %v837
        %v867 = vmul.f32 %v825, %v837
        %v868 = vmul.f32 %v830, %v837
        %v869 = vmul.f32 %v835, %v837
        %v870 = vadd.f32 %v838, 0.0
        %v871 = vadd.f32 %v839, 0.0
        %v872 = vadd.f32 %v840, 0.0
        %v873 = vadd.f32 %v841, 0.0
        %v874 = vadd.f32 %v842, 0.0
        %v875 = vadd.f32 %v843, 0.0
        %v876 = vadd.f32 %v844, 0.0
        %v877 = vadd.f32 %v845, 0.0
        %v878 = vadd.f32 %v846, 0.0
        %v879 = vadd.f32 %v847, 0.0
        %v880 = vadd.f32 %v848, 0.0
        %v881 = vadd.f32 %v849, 0.0
        %v882 = vadd.f32 %v850, 0.0
        %v883 = vadd.f32 %v851, 0.0
        %v884 = vadd.f32 %v852, 0.0
        %v885 = vadd.f32 %v853, 0.0
        %v886 = vadd.f32 %v854, 0.0
        %v887 = vadd.f32 %v855, 0.0
        %v888 = vadd.f32 %v856, 0.0
        %v889 = vadd.f32 %v857, 0.0
        %v890 = vadd.f32 %v858, 0.0
        %v891 = vadd.f32 %v859, 0.0
        %v892 = vadd.f32 %v860, 0.0
        %v893 = vadd.f32 %v861, 0.0
        %v894 = vadd.f32 %v862, 0.0
        %v895 = vadd.f32 %v863, 0.0
        %v896 = vadd.f32 %v864, 0.0
        %v897 = vadd.f32 %v865, 0.0
        %v898 = vadd.f32 %v866, 0.0
        %v899 = vadd.f32 %v867, 0.0
        %v900 = vadd.f32 %v868, 0.0
        %v901 = vadd.f32 %v869, 0.0
        %v902 = vld [vmem:[#allocation2 + $0x1] sm:$0xff]
        %v903 = vld [vmem:[#allocation2 + $0x9] sm:$0xff]
        %v904 = vld [vmem:[#allocation2 + $0x11] sm:$0xff]
        %v905 = vld [vmem:[#allocation2 + $0x19] sm:$0xff]
        %v906 = vld [vmem:[#allocation2 + $0x21] sm:$0xff]
        %v907 = vld [vmem:[#allocation2 + $0x29] sm:$0xff]
        %v908 = vld [vmem:[#allocation2 + $0x31] sm:$0xff]
        %v909 = vld [vmem:[#allocation2 + $0x39] sm:$0xff]
        %v910 = vld [vmem:[#allocation2 + $0x41] sm:$0xff]
        %v911 = vld [vmem:[#allocation2 + $0x49] sm:$0xff]
        %v912 = vld [vmem:[#allocation2 + $0x51] sm:$0xff]
        %v913 = vld [vmem:[#allocation2 + $0x59] sm:$0xff]
        %v914 = vld [vmem:[#allocation2 + $0x61] sm:$0xff]
        %v915 = vld [vmem:[#allocation2 + $0x69] sm:$0xff]
        %v916 = vld [vmem:[#allocation2 + $0x71] sm:$0xff]
        %v917 = vld [vmem:[#allocation2 + $0x79] sm:$0xff]
        %v918 = vld [vmem:[#allocation2 + $0x81] sm:$0xff]
        %v919 = vld [vmem:[#allocation2 + $0x89] sm:$0xff]
        %v920 = vld [vmem:[#allocation2 + $0x91] sm:$0xff]
        %v921 = vld [vmem:[#allocation2 + $0x99] sm:$0xff]
        %v922 = vld [vmem:[#allocation2 + $0xa1] sm:$0xff]
        %v923 = vld [vmem:[#allocation2 + $0xa9] sm:$0xff]
        %v924 = vld [vmem:[#allocation2 + $0xb1] sm:$0xff]
        %v925 = vld [vmem:[#allocation2 + $0xb9] sm:$0xff]
        %v926 = vld [vmem:[#allocation2 + $0xc1] sm:$0xff]
        %v927 = vld [vmem:[#allocation2 + $0xc9] sm:$0xff]
        %v928 = vld [vmem:[#allocation2 + $0xd1] sm:$0xff]
        %v929 = vld [vmem:[#allocation2 + $0xd9] sm:$0xff]
        %v930 = vld [vmem:[#allocation2 + $0xe1] sm:$0xff]
        %v931 = vld [vmem:[#allocation2 + $0xe9] sm:$0xff]
        %v932 = vld [vmem:[#allocation2 + $0xf1] sm:$0xff]
        %v933 = vld [vmem:[#allocation2 + $0xf9] sm:$0xff]
        %v934 = vld [vmem:[%s1 + $0x1] sm:$0x1]
        %936 = vset.pattern.permute.xlu0 0
        %937 = vperm.xlu0 %936, %v902
        %v938 = vpop.permute.xlu0 %937
        %941 = vset.pattern.permute.xlu0 0
        %942 = vperm.xlu0 %941, %v903
        %v943 = vpop.permute.xlu0 %942
        %946 = vset.pattern.permute.xlu0 0
        %947 = vperm.xlu0 %946, %v904
        %v948 = vpop.permute.xlu0 %947
        %951 = vset.pattern.permute.xlu0 0
        %952 = vperm.xlu0 %951, %v905
        %v953 = vpop.permute.xlu0 %952
        %956 = vset.pattern.permute.xlu0 0
        %957 = vperm.xlu0 %956, %v906
        %v958 = vpop.permute.xlu0 %957
        %961 = vset.pattern.permute.xlu0 0
        %962 = vperm.xlu0 %961, %v907
        %v963 = vpop.permute.xlu0 %962
        %966 = vset.pattern.permute.xlu0 0
        %967 = vperm.xlu0 %966, %v908
        %v968 = vpop.permute.xlu0 %967
        %971 = vset.pattern.permute.xlu0 0
        %972 = vperm.xlu0 %971, %v909
        %v973 = vpop.permute.xlu0 %972
        %976 = vset.pattern.permute.xlu0 0
        %977 = vperm.xlu0 %976, %v910
        %v978 = vpop.permute.xlu0 %977
        %981 = vset.pattern.permute.xlu0 0
        %982 = vperm.xlu0 %981, %v911
        %v983 = vpop.permute.xlu0 %982
        %986 = vset.pattern.permute.xlu0 0
        %987 = vperm.xlu0 %986, %v912
        %v988 = vpop.permute.xlu0 %987
        %991 = vset.pattern.permute.xlu0 0
        %992 = vperm.xlu0 %991, %v913
        %v993 = vpop.permute.xlu0 %992
        %996 = vset.pattern.permute.xlu0 0
        %997 = vperm.xlu0 %996, %v914
        %v998 = vpop.permute.xlu0 %997
        %1001 = vset.pattern.permute.xlu0 0
        %1002 = vperm.xlu0 %1001, %v915
        %v1003 = vpop.permute.xlu0 %1002
        %1006 = vset.pattern.permute.xlu0 0
        %1007 = vperm.xlu0 %1006, %v916
        %v1008 = vpop.permute.xlu0 %1007
        %1011 = vset.pattern.permute.xlu0 0
        %1012 = vperm.xlu0 %1011, %v917
        %v1013 = vpop.permute.xlu0 %1012
        %1016 = vset.pattern.permute.xlu0 0
        %1017 = vperm.xlu0 %1016, %v918
        %v1018 = vpop.permute.xlu0 %1017
        %1021 = vset.pattern.permute.xlu0 0
        %1022 = vperm.xlu0 %1021, %v919
        %v1023 = vpop.permute.xlu0 %1022
        %1026 = vset.pattern.permute.xlu0 0
        %1027 = vperm.xlu0 %1026, %v920
        %v1028 = vpop.permute.xlu0 %1027
        %1031 = vset.pattern.permute.xlu0 0
        %1032 = vperm.xlu0 %1031, %v921
        %v1033 = vpop.permute.xlu0 %1032
        %1036 = vset.pattern.permute.xlu0 0
        %1037 = vperm.xlu0 %1036, %v922
        %v1038 = vpop.permute.xlu0 %1037
        %1041 = vset.pattern.permute.xlu0 0
        %1042 = vperm.xlu0 %1041, %v923
        %v1043 = vpop.permute.xlu0 %1042
        %1046 = vset.pattern.permute.xlu0 0
        %1047 = vperm.xlu0 %1046, %v924
        %v1048 = vpop.permute.xlu0 %1047
        %1051 = vset.pattern.permute.xlu0 0
        %1052 = vperm.xlu0 %1051, %v925
        %v1053 = vpop.permute.xlu0 %1052
        %1056 = vset.pattern.permute.xlu0 0
        %1057 = vperm.xlu0 %1056, %v926
        %v1058 = vpop.permute.xlu0 %1057
        %1061 = vset.pattern.permute.xlu0 0
        %1062 = vperm.xlu0 %1061, %v927
        %v1063 = vpop.permute.xlu0 %1062
        %1066 = vset.pattern.permute.xlu0 0
        %1067 = vperm.xlu0 %1066, %v928
        %v1068 = vpop.permute.xlu0 %1067
        %1071 = vset.pattern.permute.xlu0 0
        %1072 = vperm.xlu0 %1071, %v929
        %v1073 = vpop.permute.xlu0 %1072
        %1076 = vset.pattern.permute.xlu0 0
        %1077 = vperm.xlu0 %1076, %v930
        %v1078 = vpop.permute.xlu0 %1077
        %1081 = vset.pattern.permute.xlu0 0
        %1082 = vperm.xlu0 %1081, %v931
        %v1083 = vpop.permute.xlu0 %1082
        %1086 = vset.pattern.permute.xlu0 0
        %1087 = vperm.xlu0 %1086, %v932
        %v1088 = vpop.permute.xlu0 %1087
        %1091 = vset.pattern.permute.xlu0 0
        %1092 = vperm.xlu0 %1091, %v933
        %v1093 = vpop.permute.xlu0 %1092
        %v1095 = vperm.slane %v934, 0
        %v1096 = vmul.f32 %v938, %v1095
        %v1097 = vmul.f32 %v943, %v1095
        %v1098 = vmul.f32 %v948, %v1095
        %v1099 = vmul.f32 %v953, %v1095
        %v1100 = vmul.f32 %v958, %v1095
        %v1101 = vmul.f32 %v963, %v1095
        %v1102 = vmul.f32 %v968, %v1095
        %v1103 = vmul.f32 %v973, %v1095
        %v1104 = vmul.f32 %v978, %v1095
        %v1105 = vmul.f32 %v983, %v1095
        %v1106 = vmul.f32 %v988, %v1095
        %v1107 = vmul.f32 %v993, %v1095
        %v1108 = vmul.f32 %v998, %v1095
        %v1109 = vmul.f32 %v1003, %v1095
        %v1110 = vmul.f32 %v1008, %v1095
        %v1111 = vmul.f32 %v1013, %v1095
        %v1112 = vmul.f32 %v1018, %v1095
        %v1113 = vmul.f32 %v1023, %v1095
        %v1114 = vmul.f32 %v1028, %v1095
        %v1115 = vmul.f32 %v1033, %v1095
        %v1116 = vmul.f32 %v1038, %v1095
        %v1117 = vmul.f32 %v1043, %v1095
        %v1118 = vmul.f32 %v1048, %v1095
        %v1119 = vmul.f32 %v1053, %v1095
        %v1120 = vmul.f32 %v1058, %v1095
        %v1121 = vmul.f32 %v1063, %v1095
        %v1122 = vmul.f32 %v1068, %v1095
        %v1123 = vmul.f32 %v1073, %v1095
        %v1124 = vmul.f32 %v1078, %v1095
        %v1125 = vmul.f32 %v1083, %v1095
        %v1126 = vmul.f32 %v1088, %v1095
        %v1127 = vmul.f32 %v1093, %v1095
        %v1128 = vadd.f32 %v870, %v1096
        %v1129 = vadd.f32 %v871, %v1097
        %v1130 = vadd.f32 %v872, %v1098
        %v1131 = vadd.f32 %v873, %v1099
        %v1132 = vadd.f32 %v874, %v1100
        %v1133 = vadd.f32 %v875, %v1101
        %v1134 = vadd.f32 %v876, %v1102
        %v1135 = vadd.f32 %v877, %v1103
        %v1136 = vadd.f32 %v878, %v1104
        %v1137 = vadd.f32 %v879, %v1105
        %v1138 = vadd.f32 %v880, %v1106
        %v1139 = vadd.f32 %v881, %v1107
        %v1140 = vadd.f32 %v882, %v1108
        %v1141 = vadd.f32 %v883, %v1109
        %v1142 = vadd.f32 %v884, %v1110
        %v1143 = vadd.f32 %v885, %v1111
        %v1144 = vadd.f32 %v886, %v1112
        %v1145 = vadd.f32 %v887, %v1113
        %v1146 = vadd.f32 %v888, %v1114
        %v1147 = vadd.f32 %v889, %v1115
        %v1148 = vadd.f32 %v890, %v1116
        %v1149 = vadd.f32 %v891, %v1117
        %v1150 = vadd.f32 %v892, %v1118
        %v1151 = vadd.f32 %v893, %v1119
        %v1152 = vadd.f32 %v894, %v1120
        %v1153 = vadd.f32 %v895, %v1121
        %v1154 = vadd.f32 %v896, %v1122
        %v1155 = vadd.f32 %v897, %v1123
        %v1156 = vadd.f32 %v898, %v1124
        %v1157 = vadd.f32 %v899, %v1125
        %v1158 = vadd.f32 %v900, %v1126
        %v1159 = vadd.f32 %v901, %v1127
        %v1160 = vld [vmem:[#allocation2 + $0x2] sm:$0xff]
        %v1161 = vld [vmem:[#allocation2 + $0xa] sm:$0xff]
        %v1162 = vld [vmem:[#allocation2 + $0x12] sm:$0xff]
        %v1163 = vld [vmem:[#allocation2 + $0x1a] sm:$0xff]
        %v1164 = vld [vmem:[#allocation2 + $0x22] sm:$0xff]
        %v1165 = vld [vmem:[#allocation2 + $0x2a] sm:$0xff]
        %v1166 = vld [vmem:[#allocation2 + $0x32] sm:$0xff]
        %v1167 = vld [vmem:[#allocation2 + $0x3a] sm:$0xff]
        %v1168 = vld [vmem:[#allocation2 + $0x42] sm:$0xff]
        %v1169 = vld [vmem:[#allocation2 + $0x4a] sm:$0xff]
        %v1170 = vld [vmem:[#allocation2 + $0x52] sm:$0xff]
        %v1171 = vld [vmem:[#allocation2 + $0x5a] sm:$0xff]
        %v1172 = vld [vmem:[#allocation2 + $0x62] sm:$0xff]
        %v1173 = vld [vmem:[#allocation2 + $0x6a] sm:$0xff]
        %v1174 = vld [vmem:[#allocation2 + $0x72] sm:$0xff]
        %v1175 = vld [vmem:[#allocation2 + $0x7a] sm:$0xff]
        %v1176 = vld [vmem:[#allocation2 + $0x82] sm:$0xff]
        %v1177 = vld [vmem:[#allocation2 + $0x8a] sm:$0xff]
        %v1178 = vld [vmem:[#allocation2 + $0x92] sm:$0xff]
        %v1179 = vld [vmem:[#allocation2 + $0x9a] sm:$0xff]
        %v1180 = vld [vmem:[#allocation2 + $0xa2] sm:$0xff]
        %v1181 = vld [vmem:[#allocation2 + $0xaa] sm:$0xff]
        %v1182 = vld [vmem:[#allocation2 + $0xb2] sm:$0xff]
        %v1183 = vld [vmem:[#allocation2 + $0xba] sm:$0xff]
        %v1184 = vld [vmem:[#allocation2 + $0xc2] sm:$0xff]
        %v1185 = vld [vmem:[#allocation2 + $0xca] sm:$0xff]
        %v1186 = vld [vmem:[#allocation2 + $0xd2] sm:$0xff]
        %v1187 = vld [vmem:[#allocation2 + $0xda] sm:$0xff]
        %v1188 = vld [vmem:[#allocation2 + $0xe2] sm:$0xff]
        %v1189 = vld [vmem:[#allocation2 + $0xea] sm:$0xff]
        %v1190 = vld [vmem:[#allocation2 + $0xf2] sm:$0xff]
        %v1191 = vld [vmem:[#allocation2 + $0xfa] sm:$0xff]
        %v1192 = vsel %vm580, %v1160, 0.0
        %v1193 = vsel %vm581, %v1161, 0.0
        %v1194 = vsel %vm582, %v1162, 0.0
        %v1195 = vsel %vm583, %v1163, 0.0
        %v1196 = vsel %vm584, %v1164, 0.0
        %v1197 = vsel %vm585, %v1165, 0.0
        %v1198 = vsel %vm586, %v1166, 0.0
        %v1199 = vsel %vm587, %v1167, 0.0
        %v1200 = vsel %vm588, %v1168, 0.0
        %v1201 = vsel %vm589, %v1169, 0.0
        %v1202 = vsel %vm590, %v1170, 0.0
        %v1203 = vsel %vm591, %v1171, 0.0
        %v1204 = vsel %vm592, %v1172, 0.0
        %v1205 = vsel %vm593, %v1173, 0.0
        %v1206 = vsel %vm594, %v1174, 0.0
        %v1207 = vsel %vm595, %v1175, 0.0
        %v1208 = vsel %vm596, %v1176, 0.0
        %v1209 = vsel %vm597, %v1177, 0.0
        %v1210 = vsel %vm598, %v1178, 0.0
        %v1211 = vsel %vm599, %v1179, 0.0
        %v1212 = vsel %vm600, %v1180, 0.0
        %v1213 = vsel %vm601, %v1181, 0.0
        %v1214 = vsel %vm602, %v1182, 0.0
        %v1215 = vsel %vm603, %v1183, 0.0
        %v1216 = vsel %vm604, %v1184, 0.0
        %v1217 = vsel %vm605, %v1185, 0.0
        %v1218 = vsel %vm606, %v1186, 0.0
        %v1219 = vsel %vm607, %v1187, 0.0
        %v1220 = vsel %vm608, %v1188, 0.0
        %v1221 = vsel %vm609, %v1189, 0.0
        %v1222 = vsel %vm610, %v1190, 0.0
        %v1223 = vsel %vm611, %v1191, 0.0
        %v1224 = vld [vmem:[%s1 + $0x2] sm:$0x1]
        %1226 = vset.pattern.permute.xlu0 0
        %1227 = vperm.xlu0 %1226, %v1192
        %v1228 = vpop.permute.xlu0 %1227
        %1231 = vset.pattern.permute.xlu0 0
        %1232 = vperm.xlu0 %1231, %v1193
        %v1233 = vpop.permute.xlu0 %1232
        %1236 = vset.pattern.permute.xlu0 0
        %1237 = vperm.xlu0 %1236, %v1194
        %v1238 = vpop.permute.xlu0 %1237
        %1241 = vset.pattern.permute.xlu0 0
        %1242 = vperm.xlu0 %1241, %v1195
        %v1243 = vpop.permute.xlu0 %1242
        %1246 = vset.pattern.permute.xlu0 0
        %1247 = vperm.xlu0 %1246, %v1196
        %v1248 = vpop.permute.xlu0 %1247
        %1251 = vset.pattern.permute.xlu0 0
        %1252 = vperm.xlu0 %1251, %v1197
        %v1253 = vpop.permute.xlu0 %1252
        %1256 = vset.pattern.permute.xlu0 0
        %1257 = vperm.xlu0 %1256, %v1198
        %v1258 = vpop.permute.xlu0 %1257
        %1261 = vset.pattern.permute.xlu0 0
        %1262 = vperm.xlu0 %1261, %v1199
        %v1263 = vpop.permute.xlu0 %1262
        %1266 = vset.pattern.permute.xlu0 0
        %1267 = vperm.xlu0 %1266, %v1200
        %v1268 = vpop.permute.xlu0 %1267
        %1271 = vset.pattern.permute.xlu0 0
        %1272 = vperm.xlu0 %1271, %v1201
        %v1273 = vpop.permute.xlu0 %1272
        %1276 = vset.pattern.permute.xlu0 0
        %1277 = vperm.xlu0 %1276, %v1202
        %v1278 = vpop.permute.xlu0 %1277
        %1281 = vset.pattern.permute.xlu0 0
        %1282 = vperm.xlu0 %1281, %v1203
        %v1283 = vpop.permute.xlu0 %1282
        %1286 = vset.pattern.permute.xlu0 0
        %1287 = vperm.xlu0 %1286, %v1204
        %v1288 = vpop.permute.xlu0 %1287
        %1291 = vset.pattern.permute.xlu0 0
        %1292 = vperm.xlu0 %1291, %v1205
        %v1293 = vpop.permute.xlu0 %1292
        %1296 = vset.pattern.permute.xlu0 0
        %1297 = vperm.xlu0 %1296, %v1206
        %v1298 = vpop.permute.xlu0 %1297
        %1301 = vset.pattern.permute.xlu0 0
        %1302 = vperm.xlu0 %1301, %v1207
        %v1303 = vpop.permute.xlu0 %1302
        %1306 = vset.pattern.permute.xlu0 0
        %1307 = vperm.xlu0 %1306, %v1208
        %v1308 = vpop.permute.xlu0 %1307
        %1311 = vset.pattern.permute.xlu0 0
        %1312 = vperm.xlu0 %1311, %v1209
        %v1313 = vpop.permute.xlu0 %1312
        %1316 = vset.pattern.permute.xlu0 0
        %1317 = vperm.xlu0 %1316, %v1210
        %v1318 = vpop.permute.xlu0 %1317
        %1321 = vset.pattern.permute.xlu0 0
        %1322 = vperm.xlu0 %1321, %v1211
        %v1323 = vpop.permute.xlu0 %1322
        %1326 = vset.pattern.permute.xlu0 0
        %1327 = vperm.xlu0 %1326, %v1212
        %v1328 = vpop.permute.xlu0 %1327
        %1331 = vset.pattern.permute.xlu0 0
        %1332 = vperm.xlu0 %1331, %v1213
        %v1333 = vpop.permute.xlu0 %1332
        %1336 = vset.pattern.permute.xlu0 0
        %1337 = vperm.xlu0 %1336, %v1214
        %v1338 = vpop.permute.xlu0 %1337
        %1341 = vset.pattern.permute.xlu0 0
        %1342 = vperm.xlu0 %1341, %v1215
        %v1343 = vpop.permute.xlu0 %1342
        %1346 = vset.pattern.permute.xlu0 0
        %1347 = vperm.xlu0 %1346, %v1216
        %v1348 = vpop.permute.xlu0 %1347
        %1351 = vset.pattern.permute.xlu0 0
        %1352 = vperm.xlu0 %1351, %v1217
        %v1353 = vpop.permute.xlu0 %1352
        %1356 = vset.pattern.permute.xlu0 0
        %1357 = vperm.xlu0 %1356, %v1218
        %v1358 = vpop.permute.xlu0 %1357
        %1361 = vset.pattern.permute.xlu0 0
        %1362 = vperm.xlu0 %1361, %v1219
        %v1363 = vpop.permute.xlu0 %1362
        %1366 = vset.pattern.permute.xlu0 0
        %1367 = vperm.xlu0 %1366, %v1220
        %v1368 = vpop.permute.xlu0 %1367
        %1371 = vset.pattern.permute.xlu0 0
        %1372 = vperm.xlu0 %1371, %v1221
        %v1373 = vpop.permute.xlu0 %1372
        %1376 = vset.pattern.permute.xlu0 0
        %1377 = vperm.xlu0 %1376, %v1222
        %v1378 = vpop.permute.xlu0 %1377
        %1381 = vset.pattern.permute.xlu0 0
        %1382 = vperm.xlu0 %1381, %v1223
        %v1383 = vpop.permute.xlu0 %1382
        %v1385 = vperm.slane %v1224, 0
        %v1386 = vmul.f32 %v1228, %v1385
        %v1387 = vmul.f32 %v1233, %v1385
        %v1388 = vmul.f32 %v1238, %v1385
        %v1389 = vmul.f32 %v1243, %v1385
        %v1390 = vmul.f32 %v1248, %v1385
        %v1391 = vmul.f32 %v1253, %v1385
        %v1392 = vmul.f32 %v1258, %v1385
        %v1393 = vmul.f32 %v1263, %v1385
        %v1394 = vmul.f32 %v1268, %v1385
        %v1395 = vmul.f32 %v1273, %v1385
        %v1396 = vmul.f32 %v1278, %v1385
        %v1397 = vmul.f32 %v1283, %v1385
        %v1398 = vmul.f32 %v1288, %v1385
        %v1399 = vmul.f32 %v1293, %v1385
        %v1400 = vmul.f32 %v1298, %v1385
        %v1401 = vmul.f32 %v1303, %v1385
        %v1402 = vmul.f32 %v1308, %v1385
        %v1403 = vmul.f32 %v1313, %v1385
        %v1404 = vmul.f32 %v1318, %v1385
        %v1405 = vmul.f32 %v1323, %v1385
        %v1406 = vmul.f32 %v1328, %v1385
        %v1407 = vmul.f32 %v1333, %v1385
        %v1408 = vmul.f32 %v1338, %v1385
        %v1409 = vmul.f32 %v1343, %v1385
        %v1410 = vmul.f32 %v1348, %v1385
        %v1411 = vmul.f32 %v1353, %v1385
        %v1412 = vmul.f32 %v1358, %v1385
        %v1413 = vmul.f32 %v1363, %v1385
        %v1414 = vmul.f32 %v1368, %v1385
        %v1415 = vmul.f32 %v1373, %v1385
        %v1416 = vmul.f32 %v1378, %v1385
        %v1417 = vmul.f32 %v1383, %v1385
        %v1418 = vadd.f32 %v1128, %v1386
        %v1419 = vadd.f32 %v1129, %v1387
        %v1420 = vadd.f32 %v1130, %v1388
        %v1421 = vadd.f32 %v1131, %v1389
        %v1422 = vadd.f32 %v1132, %v1390
        %v1423 = vadd.f32 %v1133, %v1391
        %v1424 = vadd.f32 %v1134, %v1392
        %v1425 = vadd.f32 %v1135, %v1393
        %v1426 = vadd.f32 %v1136, %v1394
        %v1427 = vadd.f32 %v1137, %v1395
        %v1428 = vadd.f32 %v1138, %v1396
        %v1429 = vadd.f32 %v1139, %v1397
        %v1430 = vadd.f32 %v1140, %v1398
        %v1431 = vadd.f32 %v1141, %v1399
        %v1432 = vadd.f32 %v1142, %v1400
        %v1433 = vadd.f32 %v1143, %v1401
        %v1434 = vadd.f32 %v1144, %v1402
        %v1435 = vadd.f32 %v1145, %v1403
        %v1436 = vadd.f32 %v1146, %v1404
        %v1437 = vadd.f32 %v1147, %v1405
        %v1438 = vadd.f32 %v1148, %v1406
        %v1439 = vadd.f32 %v1149, %v1407
        %v1440 = vadd.f32 %v1150, %v1408
        %v1441 = vadd.f32 %v1151, %v1409
        %v1442 = vadd.f32 %v1152, %v1410
        %v1443 = vadd.f32 %v1153, %v1411
        %v1444 = vadd.f32 %v1154, %v1412
        %v1445 = vadd.f32 %v1155, %v1413
        %v1446 = vadd.f32 %v1156, %v1414
        %v1447 = vadd.f32 %v1157, %v1415
        %v1448 = vadd.f32 %v1158, %v1416
        %v1449 = vadd.f32 %v1159, %v1417
        %v1450 = vld [vmem:[#allocation2 + $0x10] sm:$0xff]
        %v1451 = vld [vmem:[#allocation2 + $0x18] sm:$0xff]
        %v1452 = vld [vmem:[#allocation2 + $0x20] sm:$0xff]
        %v1453 = vld [vmem:[#allocation2 + $0x28] sm:$0xff]
        %v1454 = vld [vmem:[#allocation2 + $0x30] sm:$0xff]
        %v1455 = vld [vmem:[#allocation2 + $0x38] sm:$0xff]
        %v1456 = vld [vmem:[#allocation2 + $0x40] sm:$0xff]
        %v1457 = vld [vmem:[#allocation2 + $0x48] sm:$0xff]
        %v1458 = vld [vmem:[#allocation2 + $0x50] sm:$0xff]
        %v1459 = vld [vmem:[#allocation2 + $0x58] sm:$0xff]
        %v1460 = vld [vmem:[#allocation2 + $0x60] sm:$0xff]
        %v1461 = vld [vmem:[#allocation2 + $0x68] sm:$0xff]
        %v1462 = vld [vmem:[#allocation2 + $0x70] sm:$0xff]
        %v1463 = vld [vmem:[#allocation2 + $0x78] sm:$0xff]
        %v1464 = vld [vmem:[#allocation2 + $0x80] sm:$0xff]
        %v1465 = vld [vmem:[#allocation2 + $0x88] sm:$0xff]
        %v1466 = vld [vmem:[#allocation2 + $0x90] sm:$0xff]
        %v1467 = vld [vmem:[#allocation2 + $0x98] sm:$0xff]
        %v1468 = vld [vmem:[#allocation2 + $0xa0] sm:$0xff]
        %v1469 = vld [vmem:[#allocation2 + $0xa8] sm:$0xff]
        %v1470 = vld [vmem:[#allocation2 + $0xb0] sm:$0xff]
        %v1471 = vld [vmem:[#allocation2 + $0xb8] sm:$0xff]
        %v1472 = vld [vmem:[#allocation2 + $0xc0] sm:$0xff]
        %v1473 = vld [vmem:[#allocation2 + $0xc8] sm:$0xff]
        %v1474 = vld [vmem:[#allocation2 + $0xd0] sm:$0xff]
        %v1475 = vld [vmem:[#allocation2 + $0xd8] sm:$0xff]
        %v1476 = vld [vmem:[#allocation2 + $0xe0] sm:$0xff]
        %v1477 = vld [vmem:[#allocation2 + $0xe8] sm:$0xff]
        %v1478 = vld [vmem:[#allocation2 + $0xf0] sm:$0xff]
        %v1479 = vld [vmem:[#allocation2 + $0xf8] sm:$0xff]
        %v1480 = vld [vmem:[#allocation2 + $0x100] sm:$0xff]
        %v1481 = vld [vmem:[#allocation2 + $0x108] sm:$0xff]
        %v1482 = vsel %vm548, %v1450, 0.0
        %v1483 = vsel %vm549, %v1451, 0.0
        %v1484 = vsel %vm550, %v1452, 0.0
        %v1485 = vsel %vm551, %v1453, 0.0
        %v1486 = vsel %vm552, %v1454, 0.0
        %v1487 = vsel %vm553, %v1455, 0.0
        %v1488 = vsel %vm554, %v1456, 0.0
        %v1489 = vsel %vm555, %v1457, 0.0
        %v1490 = vsel %vm556, %v1458, 0.0
        %v1491 = vsel %vm557, %v1459, 0.0
        %v1492 = vsel %vm558, %v1460, 0.0
        %v1493 = vsel %vm559, %v1461, 0.0
        %v1494 = vsel %vm560, %v1462, 0.0
        %v1495 = vsel %vm561, %v1463, 0.0
        %v1496 = vsel %vm562, %v1464, 0.0
        %v1497 = vsel %vm563, %v1465, 0.0
        %v1498 = vsel %vm564, %v1466, 0.0
        %v1499 = vsel %vm565, %v1467, 0.0
        %v1500 = vsel %vm566, %v1468, 0.0
        %v1501 = vsel %vm567, %v1469, 0.0
        %v1502 = vsel %vm568, %v1470, 0.0
        %v1503 = vsel %vm569, %v1471, 0.0
        %v1504 = vsel %vm570, %v1472, 0.0
        %v1505 = vsel %vm571, %v1473, 0.0
        %v1506 = vsel %vm572, %v1474, 0.0
        %v1507 = vsel %vm573, %v1475, 0.0
        %v1508 = vsel %vm574, %v1476, 0.0
        %v1509 = vsel %vm575, %v1477, 0.0
        %v1510 = vsel %vm576, %v1478, 0.0
        %v1511 = vsel %vm577, %v1479, 0.0
        %v1512 = vsel %vm578, %v1480, 0.0
        %v1513 = vsel %vm579, %v1481, 0.0
        %v1514 = vld [vmem:[%s1 + $0x3] sm:$0x1]
        %1516 = vset.pattern.permute.xlu0 0
        %1517 = vperm.xlu0 %1516, %v1482
        %v1518 = vpop.permute.xlu0 %1517
        %1521 = vset.pattern.permute.xlu0 0
        %1522 = vperm.xlu0 %1521, %v1483
        %v1523 = vpop.permute.xlu0 %1522
        %1526 = vset.pattern.permute.xlu0 0
        %1527 = vperm.xlu0 %1526, %v1484
        %v1528 = vpop.permute.xlu0 %1527
        %1531 = vset.pattern.permute.xlu0 0
        %1532 = vperm.xlu0 %1531, %v1485
        %v1533 = vpop.permute.xlu0 %1532
        %1536 = vset.pattern.permute.xlu0 0
        %1537 = vperm.xlu0 %1536, %v1486
        %v1538 = vpop.permute.xlu0 %1537
        %1541 = vset.pattern.permute.xlu0 0
        %1542 = vperm.xlu0 %1541, %v1487
        %v1543 = vpop.permute.xlu0 %1542
        %1546 = vset.pattern.permute.xlu0 0
        %1547 = vperm.xlu0 %1546, %v1488
        %v1548 = vpop.permute.xlu0 %1547
        %1551 = vset.pattern.permute.xlu0 0
        %1552 = vperm.xlu0 %1551, %v1489
        %v1553 = vpop.permute.xlu0 %1552
        %1556 = vset.pattern.permute.xlu0 0
        %1557 = vperm.xlu0 %1556, %v1490
        %v1558 = vpop.permute.xlu0 %1557
        %1561 = vset.pattern.permute.xlu0 0
        %1562 = vperm.xlu0 %1561, %v1491
        %v1563 = vpop.permute.xlu0 %1562
        %1566 = vset.pattern.permute.xlu0 0
        %1567 = vperm.xlu0 %1566, %v1492
        %v1568 = vpop.permute.xlu0 %1567
        %1571 = vset.pattern.permute.xlu0 0
        %1572 = vperm.xlu0 %1571, %v1493
        %v1573 = vpop.permute.xlu0 %1572
        %1576 = vset.pattern.permute.xlu0 0
        %1577 = vperm.xlu0 %1576, %v1494
        %v1578 = vpop.permute.xlu0 %1577
        %1581 = vset.pattern.permute.xlu0 0
        %1582 = vperm.xlu0 %1581, %v1495
        %v1583 = vpop.permute.xlu0 %1582
        %1586 = vset.pattern.permute.xlu0 0
        %1587 = vperm.xlu0 %1586, %v1496
        %v1588 = vpop.permute.xlu0 %1587
        %1591 = vset.pattern.permute.xlu0 0
        %1592 = vperm.xlu0 %1591, %v1497
        %v1593 = vpop.permute.xlu0 %1592
        %1596 = vset.pattern.permute.xlu0 0
        %1597 = vperm.xlu0 %1596, %v1498
        %v1598 = vpop.permute.xlu0 %1597
        %1601 = vset.pattern.permute.xlu0 0
        %1602 = vperm.xlu0 %1601, %v1499
        %v1603 = vpop.permute.xlu0 %1602
        %1606 = vset.pattern.permute.xlu0 0
        %1607 = vperm.xlu0 %1606, %v1500
        %v1608 = vpop.permute.xlu0 %1607
        %1611 = vset.pattern.permute.xlu0 0
        %1612 = vperm.xlu0 %1611, %v1501
        %v1613 = vpop.permute.xlu0 %1612
        %1616 = vset.pattern.permute.xlu0 0
        %1617 = vperm.xlu0 %1616, %v1502
        %v1618 = vpop.permute.xlu0 %1617
        %1621 = vset.pattern.permute.xlu0 0
        %1622 = vperm.xlu0 %1621, %v1503
        %v1623 = vpop.permute.xlu0 %1622
        %1626 = vset.pattern.permute.xlu0 0
        %1627 = vperm.xlu0 %1626, %v1504
        %v1628 = vpop.permute.xlu0 %1627
        %1631 = vset.pattern.permute.xlu0 0
        %1632 = vperm.xlu0 %1631, %v1505
        %v1633 = vpop.permute.xlu0 %1632
        %1636 = vset.pattern.permute.xlu0 0
        %1637 = vperm.xlu0 %1636, %v1506
        %v1638 = vpop.permute.xlu0 %1637
        %1641 = vset.pattern.permute.xlu0 0
        %1642 = vperm.xlu0 %1641, %v1507
        %v1643 = vpop.permute.xlu0 %1642
        %1646 = vset.pattern.permute.xlu0 0
        %1647 = vperm.xlu0 %1646, %v1508
        %v1648 = vpop.permute.xlu0 %1647
        %1651 = vset.pattern.permute.xlu0 0
        %1652 = vperm.xlu0 %1651, %v1509
        %v1653 = vpop.permute.xlu0 %1652
        %1656 = vset.pattern.permute.xlu0 0
        %1657 = vperm.xlu0 %1656, %v1510
        %v1658 = vpop.permute.xlu0 %1657
        %1661 = vset.pattern.permute.xlu0 0
        %1662 = vperm.xlu0 %1661, %v1511
        %v1663 = vpop.permute.xlu0 %1662
        %1666 = vset.pattern.permute.xlu0 0
        %1667 = vperm.xlu0 %1666, %v1512
        %v1668 = vpop.permute.xlu0 %1667
        %1671 = vset.pattern.permute.xlu0 0
        %1672 = vperm.xlu0 %1671, %v1513
        %v1673 = vpop.permute.xlu0 %1672
        %v1675 = vperm.slane %v1514, 0
        %v1676 = vmul.f32 %v1518, %v1675
        %v1677 = vmul.f32 %v1523, %v1675
        %v1678 = vmul.f32 %v1528, %v1675
        %v1679 = vmul.f32 %v1533, %v1675
        %v1680 = vmul.f32 %v1538, %v1675
        %v1681 = vmul.f32 %v1543, %v1675
        %v1682 = vmul.f32 %v1548, %v1675
        %v1683 = vmul.f32 %v1553, %v1675
        %v1684 = vmul.f32 %v1558, %v1675
        %v1685 = vmul.f32 %v1563, %v1675
        %v1686 = vmul.f32 %v1568, %v1675
        %v1687 = vmul.f32 %v1573, %v1675
        %v1688 = vmul.f32 %v1578, %v1675
        %v1689 = vmul.f32 %v1583, %v1675
        %v1690 = vmul.f32 %v1588, %v1675
        %v1691 = vmul.f32 %v1593, %v1675
        %v1692 = vmul.f32 %v1598, %v1675
        %v1693 = vmul.f32 %v1603, %v1675
        %v1694 = vmul.f32 %v1608, %v1675
        %v1695 = vmul.f32 %v1613, %v1675
        %v1696 = vmul.f32 %v1618, %v1675
        %v1697 = vmul.f32 %v1623, %v1675
        %v1698 = vmul.f32 %v1628, %v1675
        %v1699 = vmul.f32 %v1633, %v1675
        %v1700 = vmul.f32 %v1638, %v1675
        %v1701 = vmul.f32 %v1643, %v1675
        %v1702 = vmul.f32 %v1648, %v1675
        %v1703 = vmul.f32 %v1653, %v1675
        %v1704 = vmul.f32 %v1658, %v1675
        %v1705 = vmul.f32 %v1663, %v1675
        %v1706 = vmul.f32 %v1668, %v1675
        %v1707 = vmul.f32 %v1673, %v1675
        %v1708 = vadd.f32 %v1418, %v1676
        %v1709 = vadd.f32 %v1419, %v1677
        %v1710 = vadd.f32 %v1420, %v1678
        %v1711 = vadd.f32 %v1421, %v1679
        %v1712 = vadd.f32 %v1422, %v1680
        %v1713 = vadd.f32 %v1423, %v1681
        %v1714 = vadd.f32 %v1424, %v1682
        %v1715 = vadd.f32 %v1425, %v1683
        %v1716 = vadd.f32 %v1426, %v1684
        %v1717 = vadd.f32 %v1427, %v1685
        %v1718 = vadd.f32 %v1428, %v1686
        %v1719 = vadd.f32 %v1429, %v1687
        %v1720 = vadd.f32 %v1430, %v1688
        %v1721 = vadd.f32 %v1431, %v1689
        %v1722 = vadd.f32 %v1432, %v1690
        %v1723 = vadd.f32 %v1433, %v1691
        %v1724 = vadd.f32 %v1434, %v1692
        %v1725 = vadd.f32 %v1435, %v1693
        %v1726 = vadd.f32 %v1436, %v1694
        %v1727 = vadd.f32 %v1437, %v1695
        %v1728 = vadd.f32 %v1438, %v1696
        %v1729 = vadd.f32 %v1439, %v1697
        %v1730 = vadd.f32 %v1440, %v1698
        %v1731 = vadd.f32 %v1441, %v1699
        %v1732 = vadd.f32 %v1442, %v1700
        %v1733 = vadd.f32 %v1443, %v1701
        %v1734 = vadd.f32 %v1444, %v1702
        %v1735 = vadd.f32 %v1445, %v1703
        %v1736 = vadd.f32 %v1446, %v1704
        %v1737 = vadd.f32 %v1447, %v1705
        %v1738 = vadd.f32 %v1448, %v1706
        %v1739 = vadd.f32 %v1449, %v1707
        %v1740 = vld [vmem:[#allocation2 + $0x11] sm:$0xff]
        %v1741 = vld [vmem:[#allocation2 + $0x19] sm:$0xff]
        %v1742 = vld [vmem:[#allocation2 + $0x21] sm:$0xff]
        %v1743 = vld [vmem:[#allocation2 + $0x29] sm:$0xff]
        %v1744 = vld [vmem:[#allocation2 + $0x31] sm:$0xff]
        %v1745 = vld [vmem:[#allocation2 + $0x39] sm:$0xff]
        %v1746 = vld [vmem:[#allocation2 + $0x41] sm:$0xff]
        %v1747 = vld [vmem:[#allocation2 + $0x49] sm:$0xff]
        %v1748 = vld [vmem:[#allocation2 + $0x51] sm:$0xff]
        %v1749 = vld [vmem:[#allocation2 + $0x59] sm:$0xff]
        %v1750 = vld [vmem:[#allocation2 + $0x61] sm:$0xff]
        %v1751 = vld [vmem:[#allocation2 + $0x69] sm:$0xff]
        %v1752 = vld [vmem:[#allocation2 + $0x71] sm:$0xff]
        %v1753 = vld [vmem:[#allocation2 + $0x79] sm:$0xff]
        %v1754 = vld [vmem:[#allocation2 + $0x81] sm:$0xff]
        %v1755 = vld [vmem:[#allocation2 + $0x89] sm:$0xff]
        %v1756 = vld [vmem:[#allocation2 + $0x91] sm:$0xff]
        %v1757 = vld [vmem:[#allocation2 + $0x99] sm:$0xff]
        %v1758 = vld [vmem:[#allocation2 + $0xa1] sm:$0xff]
        %v1759 = vld [vmem:[#allocation2 + $0xa9] sm:$0xff]
        %v1760 = vld [vmem:[#allocation2 + $0xb1] sm:$0xff]
        %v1761 = vld [vmem:[#allocation2 + $0xb9] sm:$0xff]
        %v1762 = vld [vmem:[#allocation2 + $0xc1] sm:$0xff]
        %v1763 = vld [vmem:[#allocation2 + $0xc9] sm:$0xff]
        %v1764 = vld [vmem:[#allocation2 + $0xd1] sm:$0xff]
        %v1765 = vld [vmem:[#allocation2 + $0xd9] sm:$0xff]
        %v1766 = vld [vmem:[#allocation2 + $0xe1] sm:$0xff]
        %v1767 = vld [vmem:[#allocation2 + $0xe9] sm:$0xff]
        %v1768 = vld [vmem:[#allocation2 + $0xf1] sm:$0xff]
        %v1769 = vld [vmem:[#allocation2 + $0xf9] sm:$0xff]
        %v1770 = vld [vmem:[#allocation2 + $0x101] sm:$0xff]
        %v1771 = vld [vmem:[#allocation2 + $0x109] sm:$0xff]
        %v1772 = vld [vmem:[%s1 + $0x4] sm:$0x1]
        %1774 = vset.pattern.permute.xlu0 0
        %1775 = vperm.xlu0 %1774, %v1740
        %v1776 = vpop.permute.xlu0 %1775
        %1779 = vset.pattern.permute.xlu0 0
        %1780 = vperm.xlu0 %1779, %v1741
        %v1781 = vpop.permute.xlu0 %1780
        %1784 = vset.pattern.permute.xlu0 0
        %1785 = vperm.xlu0 %1784, %v1742
        %v1786 = vpop.permute.xlu0 %1785
        %1789 = vset.pattern.permute.xlu0 0
        %1790 = vperm.xlu0 %1789, %v1743
        %v1791 = vpop.permute.xlu0 %1790
        %1794 = vset.pattern.permute.xlu0 0
        %1795 = vperm.xlu0 %1794, %v1744
        %v1796 = vpop.permute.xlu0 %1795
        %1799 = vset.pattern.permute.xlu0 0
        %1800 = vperm.xlu0 %1799, %v1745
        %v1801 = vpop.permute.xlu0 %1800
        %1804 = vset.pattern.permute.xlu0 0
        %1805 = vperm.xlu0 %1804, %v1746
        %v1806 = vpop.permute.xlu0 %1805
        %1809 = vset.pattern.permute.xlu0 0
        %1810 = vperm.xlu0 %1809, %v1747
        %v1811 = vpop.permute.xlu0 %1810
        %1814 = vset.pattern.permute.xlu0 0
        %1815 = vperm.xlu0 %1814, %v1748
        %v1816 = vpop.permute.xlu0 %1815
        %1819 = vset.pattern.permute.xlu0 0
        %1820 = vperm.xlu0 %1819, %v1749
        %v1821 = vpop.permute.xlu0 %1820
        %1824 = vset.pattern.permute.xlu0 0
        %1825 = vperm.xlu0 %1824, %v1750
        %v1826 = vpop.permute.xlu0 %1825
        %1829 = vset.pattern.permute.xlu0 0
        %1830 = vperm.xlu0 %1829, %v1751
        %v1831 = vpop.permute.xlu0 %1830
        %1834 = vset.pattern.permute.xlu0 0
        %1835 = vperm.xlu0 %1834, %v1752
        %v1836 = vpop.permute.xlu0 %1835
        %1839 = vset.pattern.permute.xlu0 0
        %1840 = vperm.xlu0 %1839, %v1753
        %v1841 = vpop.permute.xlu0 %1840
        %1844 = vset.pattern.permute.xlu0 0
        %1845 = vperm.xlu0 %1844, %v1754
        %v1846 = vpop.permute.xlu0 %1845
        %1849 = vset.pattern.permute.xlu0 0
        %1850 = vperm.xlu0 %1849, %v1755
        %v1851 = vpop.permute.xlu0 %1850
        %1854 = vset.pattern.permute.xlu0 0
        %1855 = vperm.xlu0 %1854, %v1756
        %v1856 = vpop.permute.xlu0 %1855
        %1859 = vset.pattern.permute.xlu0 0
        %1860 = vperm.xlu0 %1859, %v1757
        %v1861 = vpop.permute.xlu0 %1860
        %1864 = vset.pattern.permute.xlu0 0
        %1865 = vperm.xlu0 %1864, %v1758
        %v1866 = vpop.permute.xlu0 %1865
        %1869 = vset.pattern.permute.xlu0 0
        %1870 = vperm.xlu0 %1869, %v1759
        %v1871 = vpop.permute.xlu0 %1870
        %1874 = vset.pattern.permute.xlu0 0
        %1875 = vperm.xlu0 %1874, %v1760
        %v1876 = vpop.permute.xlu0 %1875
        %1879 = vset.pattern.permute.xlu0 0
        %1880 = vperm.xlu0 %1879, %v1761
        %v1881 = vpop.permute.xlu0 %1880
        %1884 = vset.pattern.permute.xlu0 0
        %1885 = vperm.xlu0 %1884, %v1762
        %v1886 = vpop.permute.xlu0 %1885
        %1889 = vset.pattern.permute.xlu0 0
        %1890 = vperm.xlu0 %1889, %v1763
        %v1891 = vpop.permute.xlu0 %1890
        %1894 = vset.pattern.permute.xlu0 0
        %1895 = vperm.xlu0 %1894, %v1764
        %v1896 = vpop.permute.xlu0 %1895
        %1899 = vset.pattern.permute.xlu0 0
        %1900 = vperm.xlu0 %1899, %v1765
        %v1901 = vpop.permute.xlu0 %1900
        %1904 = vset.pattern.permute.xlu0 0
        %1905 = vperm.xlu0 %1904, %v1766
        %v1906 = vpop.permute.xlu0 %1905
        %1909 = vset.pattern.permute.xlu0 0
        %1910 = vperm.xlu0 %1909, %v1767
        %v1911 = vpop.permute.xlu0 %1910
        %1914 = vset.pattern.permute.xlu0 0
        %1915 = vperm.xlu0 %1914, %v1768
        %v1916 = vpop.permute.xlu0 %1915
        %1919 = vset.pattern.permute.xlu0 0
        %1920 = vperm.xlu0 %1919, %v1769
        %v1921 = vpop.permute.xlu0 %1920
        %1924 = vset.pattern.permute.xlu0 0
        %1925 = vperm.xlu0 %1924, %v1770
        %v1926 = vpop.permute.xlu0 %1925
        %1929 = vset.pattern.permute.xlu0 0
        %1930 = vperm.xlu0 %1929, %v1771
        %v1931 = vpop.permute.xlu0 %1930
        %v1933 = vperm.slane %v1772, 0
        %v1934 = vmul.f32 %v1776, %v1933
        %v1935 = vmul.f32 %v1781, %v1933
        %v1936 = vmul.f32 %v1786, %v1933
        %v1937 = vmul.f32 %v1791, %v1933
        %v1938 = vmul.f32 %v1796, %v1933
        %v1939 = vmul.f32 %v1801, %v1933
        %v1940 = vmul.f32 %v1806, %v1933
        %v1941 = vmul.f32 %v1811, %v1933
        %v1942 = vmul.f32 %v1816, %v1933
        %v1943 = vmul.f32 %v1821, %v1933
        %v1944 = vmul.f32 %v1826, %v1933
        %v1945 = vmul.f32 %v1831, %v1933
        %v1946 = vmul.f32 %v1836, %v1933
        %v1947 = vmul.f32 %v1841, %v1933
        %v1948 = vmul.f32 %v1846, %v1933
        %v1949 = vmul.f32 %v1851, %v1933
        %v1950 = vmul.f32 %v1856, %v1933
        %v1951 = vmul.f32 %v1861, %v1933
        %v1952 = vmul.f32 %v1866, %v1933
        %v1953 = vmul.f32 %v1871, %v1933
        %v1954 = vmul.f32 %v1876, %v1933
        %v1955 = vmul.f32 %v1881, %v1933
        %v1956 = vmul.f32 %v1886, %v1933
        %v1957 = vmul.f32 %v1891, %v1933
        %v1958 = vmul.f32 %v1896, %v1933
        %v1959 = vmul.f32 %v1901, %v1933
        %v1960 = vmul.f32 %v1906, %v1933
        %v1961 = vmul.f32 %v1911, %v1933
        %v1962 = vmul.f32 %v1916, %v1933
        %v1963 = vmul.f32 %v1921, %v1933
        %v1964 = vmul.f32 %v1926, %v1933
        %v1965 = vmul.f32 %v1931, %v1933
        %v1966 = vadd.f32 %v1708, %v1934
        %v1967 = vadd.f32 %v1709, %v1935
        %v1968 = vadd.f32 %v1710, %v1936
        %v1969 = vadd.f32 %v1711, %v1937
        %v1970 = vadd.f32 %v1712, %v1938
        %v1971 = vadd.f32 %v1713, %v1939
        %v1972 = vadd.f32 %v1714, %v1940
        %v1973 = vadd.f32 %v1715, %v1941
        %v1974 = vadd.f32 %v1716, %v1942
        %v1975 = vadd.f32 %v1717, %v1943
        %v1976 = vadd.f32 %v1718, %v1944
        %v1977 = vadd.f32 %v1719, %v1945
        %v1978 = vadd.f32 %v1720, %v1946
        %v1979 = vadd.f32 %v1721, %v1947
        %v1980 = vadd.f32 %v1722, %v1948
        %v1981 = vadd.f32 %v1723, %v1949
        %v1982 = vadd.f32 %v1724, %v1950
        %v1983 = vadd.f32 %v1725, %v1951
        %v1984 = vadd.f32 %v1726, %v1952
        %v1985 = vadd.f32 %v1727, %v1953
        %v1986 = vadd.f32 %v1728, %v1954
        %v1987 = vadd.f32 %v1729, %v1955
        %v1988 = vadd.f32 %v1730, %v1956
        %v1989 = vadd.f32 %v1731, %v1957
        %v1990 = vadd.f32 %v1732, %v1958
        %v1991 = vadd.f32 %v1733, %v1959
        %v1992 = vadd.f32 %v1734, %v1960
        %v1993 = vadd.f32 %v1735, %v1961
        %v1994 = vadd.f32 %v1736, %v1962
        %v1995 = vadd.f32 %v1737, %v1963
        %v1996 = vadd.f32 %v1738, %v1964
        %v1997 = vadd.f32 %v1739, %v1965
        %v1998 = vld [vmem:[#allocation2 + $0x12] sm:$0xff]
        %v1999 = vld [vmem:[#allocation2 + $0x1a] sm:$0xff]
        %v2000 = vld [vmem:[#allocation2 + $0x22] sm:$0xff]
        %v2001 = vld [vmem:[#allocation2 + $0x2a] sm:$0xff]
        %v2002 = vld [vmem:[#allocation2 + $0x32] sm:$0xff]
        %v2003 = vld [vmem:[#allocation2 + $0x3a] sm:$0xff]
        %v2004 = vld [vmem:[#allocation2 + $0x42] sm:$0xff]
        %v2005 = vld [vmem:[#allocation2 + $0x4a] sm:$0xff]
        %v2006 = vld [vmem:[#allocation2 + $0x52] sm:$0xff]
        %v2007 = vld [vmem:[#allocation2 + $0x5a] sm:$0xff]
        %v2008 = vld [vmem:[#allocation2 + $0x62] sm:$0xff]
        %v2009 = vld [vmem:[#allocation2 + $0x6a] sm:$0xff]
        %v2010 = vld [vmem:[#allocation2 + $0x72] sm:$0xff]
        %v2011 = vld [vmem:[#allocation2 + $0x7a] sm:$0xff]
        %v2012 = vld [vmem:[#allocation2 + $0x82] sm:$0xff]
        %v2013 = vld [vmem:[#allocation2 + $0x8a] sm:$0xff]
        %v2014 = vld [vmem:[#allocation2 + $0x92] sm:$0xff]
        %v2015 = vld [vmem:[#allocation2 + $0x9a] sm:$0xff]
        %v2016 = vld [vmem:[#allocation2 + $0xa2] sm:$0xff]
        %v2017 = vld [vmem:[#allocation2 + $0xaa] sm:$0xff]
        %v2018 = vld [vmem:[#allocation2 + $0xb2] sm:$0xff]
        %v2019 = vld [vmem:[#allocation2 + $0xba] sm:$0xff]
        %v2020 = vld [vmem:[#allocation2 + $0xc2] sm:$0xff]
        %v2021 = vld [vmem:[#allocation2 + $0xca] sm:$0xff]
        %v2022 = vld [vmem:[#allocation2 + $0xd2] sm:$0xff]
        %v2023 = vld [vmem:[#allocation2 + $0xda] sm:$0xff]
        %v2024 = vld [vmem:[#allocation2 + $0xe2] sm:$0xff]
        %v2025 = vld [vmem:[#allocation2 + $0xea] sm:$0xff]
        %v2026 = vld [vmem:[#allocation2 + $0xf2] sm:$0xff]
        %v2027 = vld [vmem:[#allocation2 + $0xfa] sm:$0xff]
        %v2028 = vld [vmem:[#allocation2 + $0x102] sm:$0xff]
        %v2029 = vld [vmem:[#allocation2 + $0x10a] sm:$0xff]
        %v2030 = vsel %vm580, %v1998, 0.0
        %v2031 = vsel %vm581, %v1999, 0.0
        %v2032 = vsel %vm582, %v2000, 0.0
        %v2033 = vsel %vm583, %v2001, 0.0
        %v2034 = vsel %vm584, %v2002, 0.0
        %v2035 = vsel %vm585, %v2003, 0.0
        %v2036 = vsel %vm586, %v2004, 0.0
        %v2037 = vsel %vm587, %v2005, 0.0
        %v2038 = vsel %vm588, %v2006, 0.0
        %v2039 = vsel %vm589, %v2007, 0.0
        %v2040 = vsel %vm590, %v2008, 0.0
        %v2041 = vsel %vm591, %v2009, 0.0
        %v2042 = vsel %vm592, %v2010, 0.0
        %v2043 = vsel %vm593, %v2011, 0.0
        %v2044 = vsel %vm594, %v2012, 0.0
        %v2045 = vsel %vm595, %v2013, 0.0
        %v2046 = vsel %vm596, %v2014, 0.0
        %v2047 = vsel %vm597, %v2015, 0.0
        %v2048 = vsel %vm598, %v2016, 0.0
        %v2049 = vsel %vm599, %v2017, 0.0
        %v2050 = vsel %vm600, %v2018, 0.0
        %v2051 = vsel %vm601, %v2019, 0.0
        %v2052 = vsel %vm602, %v2020, 0.0
        %v2053 = vsel %vm603, %v2021, 0.0
        %v2054 = vsel %vm604, %v2022, 0.0
        %v2055 = vsel %vm605, %v2023, 0.0
        %v2056 = vsel %vm606, %v2024, 0.0
        %v2057 = vsel %vm607, %v2025, 0.0
        %v2058 = vsel %vm608, %v2026, 0.0
        %v2059 = vsel %vm609, %v2027, 0.0
        %v2060 = vsel %vm610, %v2028, 0.0
        %v2061 = vsel %vm611, %v2029, 0.0
        %v2062 = vld [vmem:[%s1 + $0x5] sm:$0x1]
        %2064 = vset.pattern.permute.xlu0 0
        %2065 = vperm.xlu0 %2064, %v2030
        %v2066 = vpop.permute.xlu0 %2065
        %2069 = vset.pattern.permute.xlu0 0
        %2070 = vperm.xlu0 %2069, %v2031
        %v2071 = vpop.permute.xlu0 %2070
        %2074 = vset.pattern.permute.xlu0 0
        %2075 = vperm.xlu0 %2074, %v2032
        %v2076 = vpop.permute.xlu0 %2075
        %2079 = vset.pattern.permute.xlu0 0
        %2080 = vperm.xlu0 %2079, %v2033
        %v2081 = vpop.permute.xlu0 %2080
        %2084 = vset.pattern.permute.xlu0 0
        %2085 = vperm.xlu0 %2084, %v2034
        %v2086 = vpop.permute.xlu0 %2085
        %2089 = vset.pattern.permute.xlu0 0
        %2090 = vperm.xlu0 %2089, %v2035
        %v2091 = vpop.permute.xlu0 %2090
        %2094 = vset.pattern.permute.xlu0 0
        %2095 = vperm.xlu0 %2094, %v2036
        %v2096 = vpop.permute.xlu0 %2095
        %2099 = vset.pattern.permute.xlu0 0
        %2100 = vperm.xlu0 %2099, %v2037
        %v2101 = vpop.permute.xlu0 %2100
        %2104 = vset.pattern.permute.xlu0 0
        %2105 = vperm.xlu0 %2104, %v2038
        %v2106 = vpop.permute.xlu0 %2105
        %2109 = vset.pattern.permute.xlu0 0
        %2110 = vperm.xlu0 %2109, %v2039
        %v2111 = vpop.permute.xlu0 %2110
        %2114 = vset.pattern.permute.xlu0 0
        %2115 = vperm.xlu0 %2114, %v2040
        %v2116 = vpop.permute.xlu0 %2115
        %2119 = vset.pattern.permute.xlu0 0
        %2120 = vperm.xlu0 %2119, %v2041
        %v2121 = vpop.permute.xlu0 %2120
        %2124 = vset.pattern.permute.xlu0 0
        %2125 = vperm.xlu0 %2124, %v2042
        %v2126 = vpop.permute.xlu0 %2125
        %2129 = vset.pattern.permute.xlu0 0
        %2130 = vperm.xlu0 %2129, %v2043
        %v2131 = vpop.permute.xlu0 %2130
        %2134 = vset.pattern.permute.xlu0 0
        %2135 = vperm.xlu0 %2134, %v2044
        %v2136 = vpop.permute.xlu0 %2135
        %2139 = vset.pattern.permute.xlu0 0
        %2140 = vperm.xlu0 %2139, %v2045
        %v2141 = vpop.permute.xlu0 %2140
        %2144 = vset.pattern.permute.xlu0 0
        %2145 = vperm.xlu0 %2144, %v2046
        %v2146 = vpop.permute.xlu0 %2145
        %2149 = vset.pattern.permute.xlu0 0
        %2150 = vperm.xlu0 %2149, %v2047
        %v2151 = vpop.permute.xlu0 %2150
        %2154 = vset.pattern.permute.xlu0 0
        %2155 = vperm.xlu0 %2154, %v2048
        %v2156 = vpop.permute.xlu0 %2155
        %2159 = vset.pattern.permute.xlu0 0
        %2160 = vperm.xlu0 %2159, %v2049
        %v2161 = vpop.permute.xlu0 %2160
        %2164 = vset.pattern.permute.xlu0 0
        %2165 = vperm.xlu0 %2164, %v2050
        %v2166 = vpop.permute.xlu0 %2165
        %2169 = vset.pattern.permute.xlu0 0
        %2170 = vperm.xlu0 %2169, %v2051
        %v2171 = vpop.permute.xlu0 %2170
        %2174 = vset.pattern.permute.xlu0 0
        %2175 = vperm.xlu0 %2174, %v2052
        %v2176 = vpop.permute.xlu0 %2175
        %2179 = vset.pattern.permute.xlu0 0
        %2180 = vperm.xlu0 %2179, %v2053
        %v2181 = vpop.permute.xlu0 %2180
        %2184 = vset.pattern.permute.xlu0 0
        %2185 = vperm.xlu0 %2184, %v2054
        %v2186 = vpop.permute.xlu0 %2185
        %2189 = vset.pattern.permute.xlu0 0
        %2190 = vperm.xlu0 %2189, %v2055
        %v2191 = vpop.permute.xlu0 %2190
        %2194 = vset.pattern.permute.xlu0 0
        %2195 = vperm.xlu0 %2194, %v2056
        %v2196 = vpop.permute.xlu0 %2195
        %2199 = vset.pattern.permute.xlu0 0
        %2200 = vperm.xlu0 %2199, %v2057
        %v2201 = vpop.permute.xlu0 %2200
        %2204 = vset.pattern.permute.xlu0 0
        %2205 = vperm.xlu0 %2204, %v2058
        %v2206 = vpop.permute.xlu0 %2205
        %2209 = vset.pattern.permute.xlu0 0
        %2210 = vperm.xlu0 %2209, %v2059
        %v2211 = vpop.permute.xlu0 %2210
        %2214 = vset.pattern.permute.xlu0 0
        %2215 = vperm.xlu0 %2214, %v2060
        %v2216 = vpop.permute.xlu0 %2215
        %2219 = vset.pattern.permute.xlu0 0
        %2220 = vperm.xlu0 %2219, %v2061
        %v2221 = vpop.permute.xlu0 %2220
        %v2223 = vperm.slane %v2062, 0
        %v2224 = vmul.f32 %v2066, %v2223
        %v2225 = vmul.f32 %v2071, %v2223
        %v2226 = vmul.f32 %v2076, %v2223
        %v2227 = vmul.f32 %v2081, %v2223
        %v2228 = vmul.f32 %v2086, %v2223
        %v2229 = vmul.f32 %v2091, %v2223
        %v2230 = vmul.f32 %v2096, %v2223
        %v2231 = vmul.f32 %v2101, %v2223
        %v2232 = vmul.f32 %v2106, %v2223
        %v2233 = vmul.f32 %v2111, %v2223
        %v2234 = vmul.f32 %v2116, %v2223
        %v2235 = vmul.f32 %v2121, %v2223
        %v2236 = vmul.f32 %v2126, %v2223
        %v2237 = vmul.f32 %v2131, %v2223
        %v2238 = vmul.f32 %v2136, %v2223
        %v2239 = vmul.f32 %v2141, %v2223
        %v2240 = vmul.f32 %v2146, %v2223
        %v2241 = vmul.f32 %v2151, %v2223
        %v2242 = vmul.f32 %v2156, %v2223
        %v2243 = vmul.f32 %v2161, %v2223
        %v2244 = vmul.f32 %v2166, %v2223
        %v2245 = vmul.f32 %v2171, %v2223
        %v2246 = vmul.f32 %v2176, %v2223
        %v2247 = vmul.f32 %v2181, %v2223
        %v2248 = vmul.f32 %v2186, %v2223
        %v2249 = vmul.f32 %v2191, %v2223
        %v2250 = vmul.f32 %v2196, %v2223
        %v2251 = vmul.f32 %v2201, %v2223
        %v2252 = vmul.f32 %v2206, %v2223
        %v2253 = vmul.f32 %v2211, %v2223
        %v2254 = vmul.f32 %v2216, %v2223
        %v2255 = vmul.f32 %v2221, %v2223
        %v2256 = vadd.f32 %v1966, %v2224
        %v2257 = vadd.f32 %v1967, %v2225
        %v2258 = vadd.f32 %v1968, %v2226
        %v2259 = vadd.f32 %v1969, %v2227
        %v2260 = vadd.f32 %v1970, %v2228
        %v2261 = vadd.f32 %v1971, %v2229
        %v2262 = vadd.f32 %v1972, %v2230
        %v2263 = vadd.f32 %v1973, %v2231
        %v2264 = vadd.f32 %v1974, %v2232
        %v2265 = vadd.f32 %v1975, %v2233
        %v2266 = vadd.f32 %v1976, %v2234
        %v2267 = vadd.f32 %v1977, %v2235
        %v2268 = vadd.f32 %v1978, %v2236
        %v2269 = vadd.f32 %v1979, %v2237
        %v2270 = vadd.f32 %v1980, %v2238
        %v2271 = vadd.f32 %v1981, %v2239
        %v2272 = vadd.f32 %v1982, %v2240
        %v2273 = vadd.f32 %v1983, %v2241
        %v2274 = vadd.f32 %v1984, %v2242
        %v2275 = vadd.f32 %v1985, %v2243
        %v2276 = vadd.f32 %v1986, %v2244
        %v2277 = vadd.f32 %v1987, %v2245
        %v2278 = vadd.f32 %v1988, %v2246
        %v2279 = vadd.f32 %v1989, %v2247
        %v2280 = vadd.f32 %v1990, %v2248
        %v2281 = vadd.f32 %v1991, %v2249
        %v2282 = vadd.f32 %v1992, %v2250
        %v2283 = vadd.f32 %v1993, %v2251
        %v2284 = vadd.f32 %v1994, %v2252
        %v2285 = vadd.f32 %v1995, %v2253
        %v2286 = vadd.f32 %v1996, %v2254
        %v2287 = vadd.f32 %v1997, %v2255
        %v2288 = vld [vmem:[#allocation2 + $0x20] sm:$0xff]
        %v2289 = vld [vmem:[#allocation2 + $0x28] sm:$0xff]
        %v2290 = vld [vmem:[#allocation2 + $0x30] sm:$0xff]
        %v2291 = vld [vmem:[#allocation2 + $0x38] sm:$0xff]
        %v2292 = vld [vmem:[#allocation2 + $0x40] sm:$0xff]
        %v2293 = vld [vmem:[#allocation2 + $0x48] sm:$0xff]
        %v2294 = vld [vmem:[#allocation2 + $0x50] sm:$0xff]
        %v2295 = vld [vmem:[#allocation2 + $0x58] sm:$0xff]
        %v2296 = vld [vmem:[#allocation2 + $0x60] sm:$0xff]
        %v2297 = vld [vmem:[#allocation2 + $0x68] sm:$0xff]
        %v2298 = vld [vmem:[#allocation2 + $0x70] sm:$0xff]
        %v2299 = vld [vmem:[#allocation2 + $0x78] sm:$0xff]
        %v2300 = vld [vmem:[#allocation2 + $0x80] sm:$0xff]
        %v2301 = vld [vmem:[#allocation2 + $0x88] sm:$0xff]
        %v2302 = vld [vmem:[#allocation2 + $0x90] sm:$0xff]
        %v2303 = vld [vmem:[#allocation2 + $0x98] sm:$0xff]
        %v2304 = vld [vmem:[#allocation2 + $0xa0] sm:$0xff]
        %v2305 = vld [vmem:[#allocation2 + $0xa8] sm:$0xff]
        %v2306 = vld [vmem:[#allocation2 + $0xb0] sm:$0xff]
        %v2307 = vld [vmem:[#allocation2 + $0xb8] sm:$0xff]
        %v2308 = vld [vmem:[#allocation2 + $0xc0] sm:$0xff]
        %v2309 = vld [vmem:[#allocation2 + $0xc8] sm:$0xff]
        %v2310 = vld [vmem:[#allocation2 + $0xd0] sm:$0xff]
        %v2311 = vld [vmem:[#allocation2 + $0xd8] sm:$0xff]
        %v2312 = vld [vmem:[#allocation2 + $0xe0] sm:$0xff]
        %v2313 = vld [vmem:[#allocation2 + $0xe8] sm:$0xff]
        %v2314 = vld [vmem:[#allocation2 + $0xf0] sm:$0xff]
        %v2315 = vld [vmem:[#allocation2 + $0xf8] sm:$0xff]
        %v2316 = vld [vmem:[#allocation2 + $0x100] sm:$0xff]
        %v2317 = vld [vmem:[#allocation2 + $0x108] sm:$0xff]
        %v2318 = vld [vmem:[#allocation2 + $0x110] sm:$0xff]
        %v2319 = vld [vmem:[#allocation2 + $0x118] sm:$0xff]
        %v2320 = vsel %vm548, %v2288, 0.0
        %v2321 = vsel %vm549, %v2289, 0.0
        %v2322 = vsel %vm550, %v2290, 0.0
        %v2323 = vsel %vm551, %v2291, 0.0
        %v2324 = vsel %vm552, %v2292, 0.0
        %v2325 = vsel %vm553, %v2293, 0.0
        %v2326 = vsel %vm554, %v2294, 0.0
        %v2327 = vsel %vm555, %v2295, 0.0
        %v2328 = vsel %vm556, %v2296, 0.0
        %v2329 = vsel %vm557, %v2297, 0.0
        %v2330 = vsel %vm558, %v2298, 0.0
        %v2331 = vsel %vm559, %v2299, 0.0
        %v2332 = vsel %vm560, %v2300, 0.0
        %v2333 = vsel %vm561, %v2301, 0.0
        %v2334 = vsel %vm562, %v2302, 0.0
        %v2335 = vsel %vm563, %v2303, 0.0
        %v2336 = vsel %vm564, %v2304, 0.0
        %v2337 = vsel %vm565, %v2305, 0.0
        %v2338 = vsel %vm566, %v2306, 0.0
        %v2339 = vsel %vm567, %v2307, 0.0
        %v2340 = vsel %vm568, %v2308, 0.0
        %v2341 = vsel %vm569, %v2309, 0.0
        %v2342 = vsel %vm570, %v2310, 0.0
        %v2343 = vsel %vm571, %v2311, 0.0
        %v2344 = vsel %vm572, %v2312, 0.0
        %v2345 = vsel %vm573, %v2313, 0.0
        %v2346 = vsel %vm574, %v2314, 0.0
        %v2347 = vsel %vm575, %v2315, 0.0
        %v2348 = vsel %vm576, %v2316, 0.0
        %v2349 = vsel %vm577, %v2317, 0.0
        %v2350 = vsel %vm578, %v2318, 0.0
        %v2351 = vsel %vm579, %v2319, 0.0
        %v2352 = vld [vmem:[%s1 + $0x6] sm:$0x1]
        %2354 = vset.pattern.permute.xlu0 0
        %2355 = vperm.xlu0 %2354, %v2320
        %v2356 = vpop.permute.xlu0 %2355
        %2359 = vset.pattern.permute.xlu0 0
        %2360 = vperm.xlu0 %2359, %v2321
        %v2361 = vpop.permute.xlu0 %2360
        %2364 = vset.pattern.permute.xlu0 0
        %2365 = vperm.xlu0 %2364, %v2322
        %v2366 = vpop.permute.xlu0 %2365
        %2369 = vset.pattern.permute.xlu0 0
        %2370 = vperm.xlu0 %2369, %v2323
        %v2371 = vpop.permute.xlu0 %2370
        %2374 = vset.pattern.permute.xlu0 0
        %2375 = vperm.xlu0 %2374, %v2324
        %v2376 = vpop.permute.xlu0 %2375
        %2379 = vset.pattern.permute.xlu0 0
        %2380 = vperm.xlu0 %2379, %v2325
        %v2381 = vpop.permute.xlu0 %2380
        %2384 = vset.pattern.permute.xlu0 0
        %2385 = vperm.xlu0 %2384, %v2326
        %v2386 = vpop.permute.xlu0 %2385
        %2389 = vset.pattern.permute.xlu0 0
        %2390 = vperm.xlu0 %2389, %v2327
        %v2391 = vpop.permute.xlu0 %2390
        %2394 = vset.pattern.permute.xlu0 0
        %2395 = vperm.xlu0 %2394, %v2328
        %v2396 = vpop.permute.xlu0 %2395
        %2399 = vset.pattern.permute.xlu0 0
        %2400 = vperm.xlu0 %2399, %v2329
        %v2401 = vpop.permute.xlu0 %2400
        %2404 = vset.pattern.permute.xlu0 0
        %2405 = vperm.xlu0 %2404, %v2330
        %v2406 = vpop.permute.xlu0 %2405
        %2409 = vset.pattern.permute.xlu0 0
        %2410 = vperm.xlu0 %2409, %v2331
        %v2411 = vpop.permute.xlu0 %2410
        %2414 = vset.pattern.permute.xlu0 0
        %2415 = vperm.xlu0 %2414, %v2332
        %v2416 = vpop.permute.xlu0 %2415
        %2419 = vset.pattern.permute.xlu0 0
        %2420 = vperm.xlu0 %2419, %v2333
        %v2421 = vpop.permute.xlu0 %2420
        %2424 = vset.pattern.permute.xlu0 0
        %2425 = vperm.xlu0 %2424, %v2334
        %v2426 = vpop.permute.xlu0 %2425
        %2429 = vset.pattern.permute.xlu0 0
        %2430 = vperm.xlu0 %2429, %v2335
        %v2431 = vpop.permute.xlu0 %2430
        %2434 = vset.pattern.permute.xlu0 0
        %2435 = vperm.xlu0 %2434, %v2336
        %v2436 = vpop.permute.xlu0 %2435
        %2439 = vset.pattern.permute.xlu0 0
        %2440 = vperm.xlu0 %2439, %v2337
        %v2441 = vpop.permute.xlu0 %2440
        %2444 = vset.pattern.permute.xlu0 0
        %2445 = vperm.xlu0 %2444, %v2338
        %v2446 = vpop.permute.xlu0 %2445
        %2449 = vset.pattern.permute.xlu0 0
        %2450 = vperm.xlu0 %2449, %v2339
        %v2451 = vpop.permute.xlu0 %2450
        %2454 = vset.pattern.permute.xlu0 0
        %2455 = vperm.xlu0 %2454, %v2340
        %v2456 = vpop.permute.xlu0 %2455
        %2459 = vset.pattern.permute.xlu0 0
        %2460 = vperm.xlu0 %2459, %v2341
        %v2461 = vpop.permute.xlu0 %2460
        %2464 = vset.pattern.permute.xlu0 0
        %2465 = vperm.xlu0 %2464, %v2342
        %v2466 = vpop.permute.xlu0 %2465
        %2469 = vset.pattern.permute.xlu0 0
        %2470 = vperm.xlu0 %2469, %v2343
        %v2471 = vpop.permute.xlu0 %2470
        %2474 = vset.pattern.permute.xlu0 0
        %2475 = vperm.xlu0 %2474, %v2344
        %v2476 = vpop.permute.xlu0 %2475
        %2479 = vset.pattern.permute.xlu0 0
        %2480 = vperm.xlu0 %2479, %v2345
        %v2481 = vpop.permute.xlu0 %2480
        %2484 = vset.pattern.permute.xlu0 0
        %2485 = vperm.xlu0 %2484, %v2346
        %v2486 = vpop.permute.xlu0 %2485
        %2489 = vset.pattern.permute.xlu0 0
        %2490 = vperm.xlu0 %2489, %v2347
        %v2491 = vpop.permute.xlu0 %2490
        %2494 = vset.pattern.permute.xlu0 0
        %2495 = vperm.xlu0 %2494, %v2348
        %v2496 = vpop.permute.xlu0 %2495
        %2499 = vset.pattern.permute.xlu0 0
        %2500 = vperm.xlu0 %2499, %v2349
        %v2501 = vpop.permute.xlu0 %2500
        %2504 = vset.pattern.permute.xlu0 0
        %2505 = vperm.xlu0 %2504, %v2350
        %v2506 = vpop.permute.xlu0 %2505
        %2509 = vset.pattern.permute.xlu0 0
        %2510 = vperm.xlu0 %2509, %v2351
        %v2511 = vpop.permute.xlu0 %2510
        %v2513 = vperm.slane %v2352, 0
        %v2514 = vmul.f32 %v2356, %v2513
        %v2515 = vmul.f32 %v2361, %v2513
        %v2516 = vmul.f32 %v2366, %v2513
        %v2517 = vmul.f32 %v2371, %v2513
        %v2518 = vmul.f32 %v2376, %v2513
        %v2519 = vmul.f32 %v2381, %v2513
        %v2520 = vmul.f32 %v2386, %v2513
        %v2521 = vmul.f32 %v2391, %v2513
        %v2522 = vmul.f32 %v2396, %v2513
        %v2523 = vmul.f32 %v2401, %v2513
        %v2524 = vmul.f32 %v2406, %v2513
        %v2525 = vmul.f32 %v2411, %v2513
        %v2526 = vmul.f32 %v2416, %v2513
        %v2527 = vmul.f32 %v2421, %v2513
        %v2528 = vmul.f32 %v2426, %v2513
        %v2529 = vmul.f32 %v2431, %v2513
        %v2530 = vmul.f32 %v2436, %v2513
        %v2531 = vmul.f32 %v2441, %v2513
        %v2532 = vmul.f32 %v2446, %v2513
        %v2533 = vmul.f32 %v2451, %v2513
        %v2534 = vmul.f32 %v2456, %v2513
        %v2535 = vmul.f32 %v2461, %v2513
        %v2536 = vmul.f32 %v2466, %v2513
        %v2537 = vmul.f32 %v2471, %v2513
        %v2538 = vmul.f32 %v2476, %v2513
        %v2539 = vmul.f32 %v2481, %v2513
        %v2540 = vmul.f32 %v2486, %v2513
        %v2541 = vmul.f32 %v2491, %v2513
        %v2542 = vmul.f32 %v2496, %v2513
        %v2543 = vmul.f32 %v2501, %v2513
        %v2544 = vmul.f32 %v2506, %v2513
        %v2545 = vmul.f32 %v2511, %v2513
        %v2546 = vadd.f32 %v2256, %v2514
        %v2547 = vadd.f32 %v2257, %v2515
        %v2548 = vadd.f32 %v2258, %v2516
        %v2549 = vadd.f32 %v2259, %v2517
        %v2550 = vadd.f32 %v2260, %v2518
        %v2551 = vadd.f32 %v2261, %v2519
        %v2552 = vadd.f32 %v2262, %v2520
        %v2553 = vadd.f32 %v2263, %v2521
        %v2554 = vadd.f32 %v2264, %v2522
        %v2555 = vadd.f32 %v2265, %v2523
        %v2556 = vadd.f32 %v2266, %v2524
        %v2557 = vadd.f32 %v2267, %v2525
        %v2558 = vadd.f32 %v2268, %v2526
        %v2559 = vadd.f32 %v2269, %v2527
        %v2560 = vadd.f32 %v2270, %v2528
        %v2561 = vadd.f32 %v2271, %v2529
        %v2562 = vadd.f32 %v2272, %v2530
        %v2563 = vadd.f32 %v2273, %v2531
        %v2564 = vadd.f32 %v2274, %v2532
        %v2565 = vadd.f32 %v2275, %v2533
        %v2566 = vadd.f32 %v2276, %v2534
        %v2567 = vadd.f32 %v2277, %v2535
        %v2568 = vadd.f32 %v2278, %v2536
        %v2569 = vadd.f32 %v2279, %v2537
        %v2570 = vadd.f32 %v2280, %v2538
        %v2571 = vadd.f32 %v2281, %v2539
        %v2572 = vadd.f32 %v2282, %v2540
        %v2573 = vadd.f32 %v2283, %v2541
        %v2574 = vadd.f32 %v2284, %v2542
        %v2575 = vadd.f32 %v2285, %v2543
        %v2576 = vadd.f32 %v2286, %v2544
        %v2577 = vadd.f32 %v2287, %v2545
        %v2578 = vld [vmem:[#allocation2 + $0x21] sm:$0xff]
        %v2579 = vld [vmem:[#allocation2 + $0x29] sm:$0xff]
        %v2580 = vld [vmem:[#allocation2 + $0x31] sm:$0xff]
        %v2581 = vld [vmem:[#allocation2 + $0x39] sm:$0xff]
        %v2582 = vld [vmem:[#allocation2 + $0x41] sm:$0xff]
        %v2583 = vld [vmem:[#allocation2 + $0x49] sm:$0xff]
        %v2584 = vld [vmem:[#allocation2 + $0x51] sm:$0xff]
        %v2585 = vld [vmem:[#allocation2 + $0x59] sm:$0xff]
        %v2586 = vld [vmem:[#allocation2 + $0x61] sm:$0xff]
        %v2587 = vld [vmem:[#allocation2 + $0x69] sm:$0xff]
        %v2588 = vld [vmem:[#allocation2 + $0x71] sm:$0xff]
        %v2589 = vld [vmem:[#allocation2 + $0x79] sm:$0xff]
        %v2590 = vld [vmem:[#allocation2 + $0x81] sm:$0xff]
        %v2591 = vld [vmem:[#allocation2 + $0x89] sm:$0xff]
        %v2592 = vld [vmem:[#allocation2 + $0x91] sm:$0xff]
        %v2593 = vld [vmem:[#allocation2 + $0x99] sm:$0xff]
        %v2594 = vld [vmem:[#allocation2 + $0xa1] sm:$0xff]
        %v2595 = vld [vmem:[#allocation2 + $0xa9] sm:$0xff]
        %v2596 = vld [vmem:[#allocation2 + $0xb1] sm:$0xff]
        %v2597 = vld [vmem:[#allocation2 + $0xb9] sm:$0xff]
        %v2598 = vld [vmem:[#allocation2 + $0xc1] sm:$0xff]
        %v2599 = vld [vmem:[#allocation2 + $0xc9] sm:$0xff]
        %v2600 = vld [vmem:[#allocation2 + $0xd1] sm:$0xff]
        %v2601 = vld [vmem:[#allocation2 + $0xd9] sm:$0xff]
        %v2602 = vld [vmem:[#allocation2 + $0xe1] sm:$0xff]
        %v2603 = vld [vmem:[#allocation2 + $0xe9] sm:$0xff]
        %v2604 = vld [vmem:[#allocation2 + $0xf1] sm:$0xff]
        %v2605 = vld [vmem:[#allocation2 + $0xf9] sm:$0xff]
        %v2606 = vld [vmem:[#allocation2 + $0x101] sm:$0xff]
        %v2607 = vld [vmem:[#allocation2 + $0x109] sm:$0xff]
        %v2608 = vld [vmem:[#allocation2 + $0x111] sm:$0xff]
        %v2609 = vld [vmem:[#allocation2 + $0x119] sm:$0xff]
        %v2610 = vld [vmem:[%s1 + $0x7] sm:$0x1]
        %2612 = vset.pattern.permute.xlu0 0
        %2613 = vperm.xlu0 %2612, %v2578
        %v2614 = vpop.permute.xlu0 %2613
        %2617 = vset.pattern.permute.xlu0 0
        %2618 = vperm.xlu0 %2617, %v2579
        %v2619 = vpop.permute.xlu0 %2618
        %2622 = vset.pattern.permute.xlu0 0
        %2623 = vperm.xlu0 %2622, %v2580
        %v2624 = vpop.permute.xlu0 %2623
        %2627 = vset.pattern.permute.xlu0 0
        %2628 = vperm.xlu0 %2627, %v2581
        %v2629 = vpop.permute.xlu0 %2628
        %2632 = vset.pattern.permute.xlu0 0
        %2633 = vperm.xlu0 %2632, %v2582
        %v2634 = vpop.permute.xlu0 %2633
        %2637 = vset.pattern.permute.xlu0 0
        %2638 = vperm.xlu0 %2637, %v2583
        %v2639 = vpop.permute.xlu0 %2638
        %2642 = vset.pattern.permute.xlu0 0
        %2643 = vperm.xlu0 %2642, %v2584
        %v2644 = vpop.permute.xlu0 %2643
        %2647 = vset.pattern.permute.xlu0 0
        %2648 = vperm.xlu0 %2647, %v2585
        %v2649 = vpop.permute.xlu0 %2648
        %2652 = vset.pattern.permute.xlu0 0
        %2653 = vperm.xlu0 %2652, %v2586
        %v2654 = vpop.permute.xlu0 %2653
        %2657 = vset.pattern.permute.xlu0 0
        %2658 = vperm.xlu0 %2657, %v2587
        %v2659 = vpop.permute.xlu0 %2658
        %2662 = vset.pattern.permute.xlu0 0
        %2663 = vperm.xlu0 %2662, %v2588
        %v2664 = vpop.permute.xlu0 %2663
        %2667 = vset.pattern.permute.xlu0 0
        %2668 = vperm.xlu0 %2667, %v2589
        %v2669 = vpop.permute.xlu0 %2668
        %2672 = vset.pattern.permute.xlu0 0
        %2673 = vperm.xlu0 %2672, %v2590
        %v2674 = vpop.permute.xlu0 %2673
        %2677 = vset.pattern.permute.xlu0 0
        %2678 = vperm.xlu0 %2677, %v2591
        %v2679 = vpop.permute.xlu0 %2678
        %2682 = vset.pattern.permute.xlu0 0
        %2683 = vperm.xlu0 %2682, %v2592
        %v2684 = vpop.permute.xlu0 %2683
        %2687 = vset.pattern.permute.xlu0 0
        %2688 = vperm.xlu0 %2687, %v2593
        %v2689 = vpop.permute.xlu0 %2688
        %2692 = vset.pattern.permute.xlu0 0
        %2693 = vperm.xlu0 %2692, %v2594
        %v2694 = vpop.permute.xlu0 %2693
        %2697 = vset.pattern.permute.xlu0 0
        %2698 = vperm.xlu0 %2697, %v2595
        %v2699 = vpop.permute.xlu0 %2698
        %2702 = vset.pattern.permute.xlu0 0
        %2703 = vperm.xlu0 %2702, %v2596
        %v2704 = vpop.permute.xlu0 %2703
        %2707 = vset.pattern.permute.xlu0 0
        %2708 = vperm.xlu0 %2707, %v2597
        %v2709 = vpop.permute.xlu0 %2708
        %2712 = vset.pattern.permute.xlu0 0
        %2713 = vperm.xlu0 %2712, %v2598
        %v2714 = vpop.permute.xlu0 %2713
        %2717 = vset.pattern.permute.xlu0 0
        %2718 = vperm.xlu0 %2717, %v2599
        %v2719 = vpop.permute.xlu0 %2718
        %2722 = vset.pattern.permute.xlu0 0
        %2723 = vperm.xlu0 %2722, %v2600
        %v2724 = vpop.permute.xlu0 %2723
        %2727 = vset.pattern.permute.xlu0 0
        %2728 = vperm.xlu0 %2727, %v2601
        %v2729 = vpop.permute.xlu0 %2728
        %2732 = vset.pattern.permute.xlu0 0
        %2733 = vperm.xlu0 %2732, %v2602
        %v2734 = vpop.permute.xlu0 %2733
        %2737 = vset.pattern.permute.xlu0 0
        %2738 = vperm.xlu0 %2737, %v2603
        %v2739 = vpop.permute.xlu0 %2738
        %2742 = vset.pattern.permute.xlu0 0
        %2743 = vperm.xlu0 %2742, %v2604
        %v2744 = vpop.permute.xlu0 %2743
        %2747 = vset.pattern.permute.xlu0 0
        %2748 = vperm.xlu0 %2747, %v2605
        %v2749 = vpop.permute.xlu0 %2748
        %2752 = vset.pattern.permute.xlu0 0
        %2753 = vperm.xlu0 %2752, %v2606
        %v2754 = vpop.permute.xlu0 %2753
        %2757 = vset.pattern.permute.xlu0 0
        %2758 = vperm.xlu0 %2757, %v2607
        %v2759 = vpop.permute.xlu0 %2758
        %2762 = vset.pattern.permute.xlu0 0
        %2763 = vperm.xlu0 %2762, %v2608
        %v2764 = vpop.permute.xlu0 %2763
        %2767 = vset.pattern.permute.xlu0 0
        %2768 = vperm.xlu0 %2767, %v2609
        %v2769 = vpop.permute.xlu0 %2768
        %v2771 = vperm.slane %v2610, 0
        %v2772 = vmul.f32 %v2614, %v2771
        %v2773 = vmul.f32 %v2619, %v2771
        %v2774 = vmul.f32 %v2624, %v2771
        %v2775 = vmul.f32 %v2629, %v2771
        %v2776 = vmul.f32 %v2634, %v2771
        %v2777 = vmul.f32 %v2639, %v2771
        %v2778 = vmul.f32 %v2644, %v2771
        %v2779 = vmul.f32 %v2649, %v2771
        %v2780 = vmul.f32 %v2654, %v2771
        %v2781 = vmul.f32 %v2659, %v2771
        %v2782 = vmul.f32 %v2664, %v2771
        %v2783 = vmul.f32 %v2669, %v2771
        %v2784 = vmul.f32 %v2674, %v2771
        %v2785 = vmul.f32 %v2679, %v2771
        %v2786 = vmul.f32 %v2684, %v2771
        %v2787 = vmul.f32 %v2689, %v2771
        %v2788 = vmul.f32 %v2694, %v2771
        %v2789 = vmul.f32 %v2699, %v2771
        %v2790 = vmul.f32 %v2704, %v2771
        %v2791 = vmul.f32 %v2709, %v2771
        %v2792 = vmul.f32 %v2714, %v2771
        %v2793 = vmul.f32 %v2719, %v2771
        %v2794 = vmul.f32 %v2724, %v2771
        %v2795 = vmul.f32 %v2729, %v2771
        %v2796 = vmul.f32 %v2734, %v2771
        %v2797 = vmul.f32 %v2739, %v2771
        %v2798 = vmul.f32 %v2744, %v2771
        %v2799 = vmul.f32 %v2749, %v2771
        %v2800 = vmul.f32 %v2754, %v2771
        %v2801 = vmul.f32 %v2759, %v2771
        %v2802 = vmul.f32 %v2764, %v2771
        %v2803 = vmul.f32 %v2769, %v2771
        %v2804 = vadd.f32 %v2546, %v2772
        %v2805 = vadd.f32 %v2547, %v2773
        %v2806 = vadd.f32 %v2548, %v2774
        %v2807 = vadd.f32 %v2549, %v2775
        %v2808 = vadd.f32 %v2550, %v2776
        %v2809 = vadd.f32 %v2551, %v2777
        %v2810 = vadd.f32 %v2552, %v2778
        %v2811 = vadd.f32 %v2553, %v2779
        %v2812 = vadd.f32 %v2554, %v2780
        %v2813 = vadd.f32 %v2555, %v2781
        %v2814 = vadd.f32 %v2556, %v2782
        %v2815 = vadd.f32 %v2557, %v2783
        %v2816 = vadd.f32 %v2558, %v2784
        %v2817 = vadd.f32 %v2559, %v2785
        %v2818 = vadd.f32 %v2560, %v2786
        %v2819 = vadd.f32 %v2561, %v2787
        %v2820 = vadd.f32 %v2562, %v2788
        %v2821 = vadd.f32 %v2563, %v2789
        %v2822 = vadd.f32 %v2564, %v2790
        %v2823 = vadd.f32 %v2565, %v2791
        %v2824 = vadd.f32 %v2566, %v2792
        %v2825 = vadd.f32 %v2567, %v2793
        %v2826 = vadd.f32 %v2568, %v2794
        %v2827 = vadd.f32 %v2569, %v2795
        %v2828 = vadd.f32 %v2570, %v2796
        %v2829 = vadd.f32 %v2571, %v2797
        %v2830 = vadd.f32 %v2572, %v2798
        %v2831 = vadd.f32 %v2573, %v2799
        %v2832 = vadd.f32 %v2574, %v2800
        %v2833 = vadd.f32 %v2575, %v2801
        %v2834 = vadd.f32 %v2576, %v2802
        %v2835 = vadd.f32 %v2577, %v2803
        %v2836 = vld [vmem:[#allocation2 + $0x22] sm:$0xff]
        %v2837 = vld [vmem:[#allocation2 + $0x2a] sm:$0xff]
        %v2838 = vld [vmem:[#allocation2 + $0x32] sm:$0xff]
        %v2839 = vld [vmem:[#allocation2 + $0x3a] sm:$0xff]
        %v2840 = vld [vmem:[#allocation2 + $0x42] sm:$0xff]
        %v2841 = vld [vmem:[#allocation2 + $0x4a] sm:$0xff]
        %v2842 = vld [vmem:[#allocation2 + $0x52] sm:$0xff]
        %v2843 = vld [vmem:[#allocation2 + $0x5a] sm:$0xff]
        %v2844 = vld [vmem:[#allocation2 + $0x62] sm:$0xff]
        %v2845 = vld [vmem:[#allocation2 + $0x6a] sm:$0xff]
        %v2846 = vld [vmem:[#allocation2 + $0x72] sm:$0xff]
        %v2847 = vld [vmem:[#allocation2 + $0x7a] sm:$0xff]
        %v2848 = vld [vmem:[#allocation2 + $0x82] sm:$0xff]
        %v2849 = vld [vmem:[#allocation2 + $0x8a] sm:$0xff]
        %v2850 = vld [vmem:[#allocation2 + $0x92] sm:$0xff]
        %v2851 = vld [vmem:[#allocation2 + $0x9a] sm:$0xff]
        %v2852 = vld [vmem:[#allocation2 + $0xa2] sm:$0xff]
        %v2853 = vld [vmem:[#allocation2 + $0xaa] sm:$0xff]
        %v2854 = vld [vmem:[#allocation2 + $0xb2] sm:$0xff]
        %v2855 = vld [vmem:[#allocation2 + $0xba] sm:$0xff]
        %v2856 = vld [vmem:[#allocation2 + $0xc2] sm:$0xff]
        %v2857 = vld [vmem:[#allocation2 + $0xca] sm:$0xff]
        %v2858 = vld [vmem:[#allocation2 + $0xd2] sm:$0xff]
        %v2859 = vld [vmem:[#allocation2 + $0xda] sm:$0xff]
        %v2860 = vld [vmem:[#allocation2 + $0xe2] sm:$0xff]
        %v2861 = vld [vmem:[#allocation2 + $0xea] sm:$0xff]
        %v2862 = vld [vmem:[#allocation2 + $0xf2] sm:$0xff]
        %v2863 = vld [vmem:[#allocation2 + $0xfa] sm:$0xff]
        %v2864 = vld [vmem:[#allocation2 + $0x102] sm:$0xff]
        %v2865 = vld [vmem:[#allocation2 + $0x10a] sm:$0xff]
        %v2866 = vld [vmem:[#allocation2 + $0x112] sm:$0xff]
        %v2867 = vld [vmem:[#allocation2 + $0x11a] sm:$0xff]
        %v2868 = vsel %vm580, %v2836, 0.0
        %v2869 = vsel %vm581, %v2837, 0.0
        %v2870 = vsel %vm582, %v2838, 0.0
        %v2871 = vsel %vm583, %v2839, 0.0
        %v2872 = vsel %vm584, %v2840, 0.0
        %v2873 = vsel %vm585, %v2841, 0.0
        %v2874 = vsel %vm586, %v2842, 0.0
        %v2875 = vsel %vm587, %v2843, 0.0
        %v2876 = vsel %vm588, %v2844, 0.0
        %v2877 = vsel %vm589, %v2845, 0.0
        %v2878 = vsel %vm590, %v2846, 0.0
        %v2879 = vsel %vm591, %v2847, 0.0
        %v2880 = vsel %vm592, %v2848, 0.0
        %v2881 = vsel %vm593, %v2849, 0.0
        %v2882 = vsel %vm594, %v2850, 0.0
        %v2883 = vsel %vm595, %v2851, 0.0
        %v2884 = vsel %vm596, %v2852, 0.0
        %v2885 = vsel %vm597, %v2853, 0.0
        %v2886 = vsel %vm598, %v2854, 0.0
        %v2887 = vsel %vm599, %v2855, 0.0
        %v2888 = vsel %vm600, %v2856, 0.0
        %v2889 = vsel %vm601, %v2857, 0.0
        %v2890 = vsel %vm602, %v2858, 0.0
        %v2891 = vsel %vm603, %v2859, 0.0
        %v2892 = vsel %vm604, %v2860, 0.0
        %v2893 = vsel %vm605, %v2861, 0.0
        %v2894 = vsel %vm606, %v2862, 0.0
        %v2895 = vsel %vm607, %v2863, 0.0
        %v2896 = vsel %vm608, %v2864, 0.0
        %v2897 = vsel %vm609, %v2865, 0.0
        %v2898 = vsel %vm610, %v2866, 0.0
        %v2899 = vsel %vm611, %v2867, 0.0
        %v2900 = vld [vmem:[%s1 + $0x8] sm:$0x1]
        %2902 = vset.pattern.permute.xlu0 0
        %2903 = vperm.xlu0 %2902, %v2868
        %v2904 = vpop.permute.xlu0 %2903
        %2907 = vset.pattern.permute.xlu0 0
        %2908 = vperm.xlu0 %2907, %v2869
        %v2909 = vpop.permute.xlu0 %2908
        %2912 = vset.pattern.permute.xlu0 0
        %2913 = vperm.xlu0 %2912, %v2870
        %v2914 = vpop.permute.xlu0 %2913
        %2917 = vset.pattern.permute.xlu0 0
        %2918 = vperm.xlu0 %2917, %v2871
        %v2919 = vpop.permute.xlu0 %2918
        %2922 = vset.pattern.permute.xlu0 0
        %2923 = vperm.xlu0 %2922, %v2872
        %v2924 = vpop.permute.xlu0 %2923
        %2927 = vset.pattern.permute.xlu0 0
        %2928 = vperm.xlu0 %2927, %v2873
        %v2929 = vpop.permute.xlu0 %2928
        %2932 = vset.pattern.permute.xlu0 0
        %2933 = vperm.xlu0 %2932, %v2874
        %v2934 = vpop.permute.xlu0 %2933
        %2937 = vset.pattern.permute.xlu0 0
        %2938 = vperm.xlu0 %2937, %v2875
        %v2939 = vpop.permute.xlu0 %2938
        %2942 = vset.pattern.permute.xlu0 0
        %2943 = vperm.xlu0 %2942, %v2876
        %v2944 = vpop.permute.xlu0 %2943
        %2947 = vset.pattern.permute.xlu0 0
        %2948 = vperm.xlu0 %2947, %v2877
        %v2949 = vpop.permute.xlu0 %2948
        %2952 = vset.pattern.permute.xlu0 0
        %2953 = vperm.xlu0 %2952, %v2878
        %v2954 = vpop.permute.xlu0 %2953
        %2957 = vset.pattern.permute.xlu0 0
        %2958 = vperm.xlu0 %2957, %v2879
        %v2959 = vpop.permute.xlu0 %2958
        %2962 = vset.pattern.permute.xlu0 0
        %2963 = vperm.xlu0 %2962, %v2880
        %v2964 = vpop.permute.xlu0 %2963
        %2967 = vset.pattern.permute.xlu0 0
        %2968 = vperm.xlu0 %2967, %v2881
        %v2969 = vpop.permute.xlu0 %2968
        %2972 = vset.pattern.permute.xlu0 0
        %2973 = vperm.xlu0 %2972, %v2882
        %v2974 = vpop.permute.xlu0 %2973
        %2977 = vset.pattern.permute.xlu0 0
        %2978 = vperm.xlu0 %2977, %v2883
        %v2979 = vpop.permute.xlu0 %2978
        %2982 = vset.pattern.permute.xlu0 0
        %2983 = vperm.xlu0 %2982, %v2884
        %v2984 = vpop.permute.xlu0 %2983
        %2987 = vset.pattern.permute.xlu0 0
        %2988 = vperm.xlu0 %2987, %v2885
        %v2989 = vpop.permute.xlu0 %2988
        %2992 = vset.pattern.permute.xlu0 0
        %2993 = vperm.xlu0 %2992, %v2886
        %v2994 = vpop.permute.xlu0 %2993
        %2997 = vset.pattern.permute.xlu0 0
        %2998 = vperm.xlu0 %2997, %v2887
        %v2999 = vpop.permute.xlu0 %2998
        %3002 = vset.pattern.permute.xlu0 0
        %3003 = vperm.xlu0 %3002, %v2888
        %v3004 = vpop.permute.xlu0 %3003
        %3007 = vset.pattern.permute.xlu0 0
        %3008 = vperm.xlu0 %3007, %v2889
        %v3009 = vpop.permute.xlu0 %3008
        %3012 = vset.pattern.permute.xlu0 0
        %3013 = vperm.xlu0 %3012, %v2890
        %v3014 = vpop.permute.xlu0 %3013
        %3017 = vset.pattern.permute.xlu0 0
        %3018 = vperm.xlu0 %3017, %v2891
        %v3019 = vpop.permute.xlu0 %3018
        %3022 = vset.pattern.permute.xlu0 0
        %3023 = vperm.xlu0 %3022, %v2892
        %v3024 = vpop.permute.xlu0 %3023
        %3027 = vset.pattern.permute.xlu0 0
        %3028 = vperm.xlu0 %3027, %v2893
        %v3029 = vpop.permute.xlu0 %3028
        %3032 = vset.pattern.permute.xlu0 0
        %3033 = vperm.xlu0 %3032, %v2894
        %v3034 = vpop.permute.xlu0 %3033
        %3037 = vset.pattern.permute.xlu0 0
        %3038 = vperm.xlu0 %3037, %v2895
        %v3039 = vpop.permute.xlu0 %3038
        %3042 = vset.pattern.permute.xlu0 0
        %3043 = vperm.xlu0 %3042, %v2896
        %v3044 = vpop.permute.xlu0 %3043
        %3047 = vset.pattern.permute.xlu0 0
        %3048 = vperm.xlu0 %3047, %v2897
        %v3049 = vpop.permute.xlu0 %3048
        %3052 = vset.pattern.permute.xlu0 0
        %3053 = vperm.xlu0 %3052, %v2898
        %v3054 = vpop.permute.xlu0 %3053
        %3057 = vset.pattern.permute.xlu0 0
        %3058 = vperm.xlu0 %3057, %v2899
        %v3059 = vpop.permute.xlu0 %3058
        %v3061 = vperm.slane %v2900, 0
        %v3062 = vmul.f32 %v2904, %v3061
        %v3063 = vmul.f32 %v2909, %v3061
        %v3064 = vmul.f32 %v2914, %v3061
        %v3065 = vmul.f32 %v2919, %v3061
        %v3066 = vmul.f32 %v2924, %v3061
        %v3067 = vmul.f32 %v2929, %v3061
        %v3068 = vmul.f32 %v2934, %v3061
        %v3069 = vmul.f32 %v2939, %v3061
        %v3070 = vmul.f32 %v2944, %v3061
        %v3071 = vmul.f32 %v2949, %v3061
        %v3072 = vmul.f32 %v2954, %v3061
        %v3073 = vmul.f32 %v2959, %v3061
        %v3074 = vmul.f32 %v2964, %v3061
        %v3075 = vmul.f32 %v2969, %v3061
        %v3076 = vmul.f32 %v2974, %v3061
        %v3077 = vmul.f32 %v2979, %v3061
        %v3078 = vmul.f32 %v2984, %v3061
        %v3079 = vmul.f32 %v2989, %v3061
        %v3080 = vmul.f32 %v2994, %v3061
        %v3081 = vmul.f32 %v2999, %v3061
        %v3082 = vmul.f32 %v3004, %v3061
        %v3083 = vmul.f32 %v3009, %v3061
        %v3084 = vmul.f32 %v3014, %v3061
        %v3085 = vmul.f32 %v3019, %v3061
        %v3086 = vmul.f32 %v3024, %v3061
        %v3087 = vmul.f32 %v3029, %v3061
        %v3088 = vmul.f32 %v3034, %v3061
        %v3089 = vmul.f32 %v3039, %v3061
        %v3090 = vmul.f32 %v3044, %v3061
        %v3091 = vmul.f32 %v3049, %v3061
        %v3092 = vmul.f32 %v3054, %v3061
        %v3093 = vmul.f32 %v3059, %v3061
        %v3094 = vadd.f32 %v2804, %v3062
        %v3095 = vadd.f32 %v2805, %v3063
        %v3096 = vadd.f32 %v2806, %v3064
        %v3097 = vadd.f32 %v2807, %v3065
        %v3098 = vadd.f32 %v2808, %v3066
        %v3099 = vadd.f32 %v2809, %v3067
        %v3100 = vadd.f32 %v2810, %v3068
        %v3101 = vadd.f32 %v2811, %v3069
        %v3102 = vadd.f32 %v2812, %v3070
        %v3103 = vadd.f32 %v2813, %v3071
        %v3104 = vadd.f32 %v2814, %v3072
        %v3105 = vadd.f32 %v2815, %v3073
        %v3106 = vadd.f32 %v2816, %v3074
        %v3107 = vadd.f32 %v2817, %v3075
        %v3108 = vadd.f32 %v2818, %v3076
        %v3109 = vadd.f32 %v2819, %v3077
        %v3110 = vadd.f32 %v2820, %v3078
        %v3111 = vadd.f32 %v2821, %v3079
        %v3112 = vadd.f32 %v2822, %v3080
        %v3113 = vadd.f32 %v2823, %v3081
        %v3114 = vadd.f32 %v2824, %v3082
        %v3115 = vadd.f32 %v2825, %v3083
        %v3116 = vadd.f32 %v2826, %v3084
        %v3117 = vadd.f32 %v2827, %v3085
        %v3118 = vadd.f32 %v2828, %v3086
        %v3119 = vadd.f32 %v2829, %v3087
        %v3120 = vadd.f32 %v2830, %v3088
        %v3121 = vadd.f32 %v2831, %v3089
        %v3122 = vadd.f32 %v2832, %v3090
        %v3123 = vadd.f32 %v2833, %v3091
        %v3124 = vadd.f32 %v2834, %v3092
        %v3125 = vadd.f32 %v2835, %v3093
        %v3127 = vperm.slane %v482, 0
        %v3129 = vadd.f32 %v3094, %v3127
        %v3130 = vadd.f32 %v3095, %v3127
        %v3131 = vadd.f32 %v3096, %v3127
        %v3132 = vadd.f32 %v3097, %v3127
        %v3133 = vadd.f32 %v3098, %v3127
        %v3134 = vadd.f32 %v3099, %v3127
        %v3135 = vadd.f32 %v3100, %v3127
        %v3136 = vadd.f32 %v3101, %v3127
        %v3137 = vadd.f32 %v3102, %v3127
        %v3138 = vadd.f32 %v3103, %v3127
        %v3139 = vadd.f32 %v3104, %v3127
        %v3140 = vadd.f32 %v3105, %v3127
        %v3141 = vadd.f32 %v3106, %v3127
        %v3142 = vadd.f32 %v3107, %v3127
        %v3143 = vadd.f32 %v3108, %v3127
        %v3144 = vadd.f32 %v3109, %v3127
        %v3145 = vadd.f32 %v3110, %v3127
        %v3146 = vadd.f32 %v3111, %v3127
        %v3147 = vadd.f32 %v3112, %v3127
        %v3148 = vadd.f32 %v3113, %v3127
        %v3149 = vadd.f32 %v3114, %v3127
        %v3150 = vadd.f32 %v3115, %v3127
        %v3151 = vadd.f32 %v3116, %v3127
        %v3152 = vadd.f32 %v3117, %v3127
        %v3153 = vadd.f32 %v3118, %v3127
        %v3154 = vadd.f32 %v3119, %v3127
        %v3155 = vadd.f32 %v3120, %v3127
        %v3156 = vadd.f32 %v3121, %v3127
        %v3157 = vadd.f32 %v3122, %v3127
        %v3158 = vadd.f32 %v3123, %v3127
        %v3159 = vadd.f32 %v3124, %v3127
        %v3160 = vadd.f32 %v3125, %v3127
        %v3161 = vmax.f32 %v3129, 0.0
        %v3162 = vmax.f32 %v3130, 0.0
        %v3163 = vmax.f32 %v3131, 0.0
        %v3164 = vmax.f32 %v3132, 0.0
        %v3165 = vmax.f32 %v3133, 0.0
        %v3166 = vmax.f32 %v3134, 0.0
        %v3167 = vmax.f32 %v3135, 0.0
        %v3168 = vmax.f32 %v3136, 0.0
        %v3169 = vmax.f32 %v3137, 0.0
        %v3170 = vmax.f32 %v3138, 0.0
        %v3171 = vmax.f32 %v3139, 0.0
        %v3172 = vmax.f32 %v3140, 0.0
        %v3173 = vmax.f32 %v3141, 0.0
        %v3174 = vmax.f32 %v3142, 0.0
        %v3175 = vmax.f32 %v3143, 0.0
        %v3176 = vmax.f32 %v3144, 0.0
        %v3177 = vmax.f32 %v3145, 0.0
        %v3178 = vmax.f32 %v3146, 0.0
        %v3179 = vmax.f32 %v3147, 0.0
        %v3180 = vmax.f32 %v3148, 0.0
        %v3181 = vmax.f32 %v3149, 0.0
        %v3182 = vmax.f32 %v3150, 0.0
        %v3183 = vmax.f32 %v3151, 0.0
        %v3184 = vmax.f32 %v3152, 0.0
        %v3185 = vmax.f32 %v3153, 0.0
        %v3186 = vmax.f32 %v3154, 0.0
        %v3187 = vmax.f32 %v3155, 0.0
        %v3188 = vmax.f32 %v3156, 0.0
        %v3189 = vmax.f32 %v3157, 0.0
        %v3190 = vmax.f32 %v3158, 0.0
        %v3191 = vmax.f32 %v3159, 0.0
        %v3192 = vmax.f32 %v3160, 0.0
        %v3193 = vlaneseq
        %v3194 = vand.u32 %v3193, 127
        %v3195 = vadd.s32 %v3194, 128
        %v3196 = vshra.s32 %v484, 3
        %v3197 = vshra.s32 %v485, 3
        %v3198 = vshra.s32 %v486, 3
        %v3199 = vshra.s32 %v487, 3
        %v3200 = vshra.s32 %v488, 3
        %v3201 = vshra.s32 %v489, 3
        %v3202 = vshra.s32 %v490, 3
        %v3203 = vshra.s32 %v491, 3
        %v3204 = vmul.u32 %v3196, 2
        %v3205 = vmul.u32 %v3197, 2
        %v3206 = vmul.u32 %v3198, 2
        %v3207 = vmul.u32 %v3199, 2
        %v3208 = vmul.u32 %v3200, 2
        %v3209 = vmul.u32 %v3201, 2
        %v3210 = vmul.u32 %v3202, 2
        %v3211 = vmul.u32 %v3203, 2
        %v3212 = vmul.u32 %v3204, 16
        %v3213 = vmul.u32 %v3205, 16
        %v3214 = vmul.u32 %v3206, 16
        %v3215 = vmul.u32 %v3207, 16
        %v3216 = vmul.u32 %v3208, 16
        %v3217 = vmul.u32 %v3209, 16
        %v3218 = vmul.u32 %v3210, 16
        %v3219 = vmul.u32 %v3211, 16
        %v3220 = vand.u32 %v484, 7
        %v3221 = vand.u32 %v485, 7
        %v3222 = vand.u32 %v486, 7
        %v3223 = vand.u32 %v487, 7
        %v3224 = vand.u32 %v488, 7
        %v3225 = vand.u32 %v489, 7
        %v3226 = vand.u32 %v490, 7
        %v3227 = vand.u32 %v491, 7
        %v3228 = vmul.u32 %v3220, 2
        %v3229 = vmul.u32 %v3221, 2
        %v3230 = vmul.u32 %v3222, 2
        %v3231 = vmul.u32 %v3223, 2
        %v3232 = vmul.u32 %v3224, 2
        %v3233 = vmul.u32 %v3225, 2
        %v3234 = vmul.u32 %v3226, 2
        %v3235 = vmul.u32 %v3227, 2
        %v3236 = vadd.s32 %v3212, %v3228
        %v3237 = vadd.s32 %v3213, %v3229
        %v3238 = vadd.s32 %v3214, %v3230
        %v3239 = vadd.s32 %v3215, %v3231
        %v3240 = vadd.s32 %v3216, %v3232
        %v3241 = vadd.s32 %v3217, %v3233
        %v3242 = vadd.s32 %v3218, %v3234
        %v3243 = vadd.s32 %v3219, %v3235
        %vm3244 = vcmp.eq.s32.totalorder %v3194, %v3236
        %vm3245 = vcmp.eq.s32.totalorder %v3195, %v3236
        %vm3246 = vcmp.eq.s32.totalorder %v3194, %v3237
        %vm3247 = vcmp.eq.s32.totalorder %v3195, %v3237
        %vm3248 = vcmp.eq.s32.totalorder %v3194, %v3238
        %vm3249 = vcmp.eq.s32.totalorder %v3195, %v3238
        %vm3250 = vcmp.eq.s32.totalorder %v3194, %v3239
        %vm3251 = vcmp.eq.s32.totalorder %v3195, %v3239
        %vm3252 = vcmp.eq.s32.totalorder %v3194, %v3240
        %vm3253 = vcmp.eq.s32.totalorder %v3195, %v3240
        %vm3254 = vcmp.eq.s32.totalorder %v3194, %v3241
        %vm3255 = vcmp.eq.s32.totalorder %v3195, %v3241
        %vm3256 = vcmp.eq.s32.totalorder %v3194, %v3242
        %vm3257 = vcmp.eq.s32.totalorder %v3195, %v3242
        %vm3258 = vcmp.eq.s32.totalorder %v3194, %v3243
        %vm3259 = vcmp.eq.s32.totalorder %v3195, %v3243
        %v3260 = vsel %vm3244, 1, 0
        %v3261 = vsel %vm3245, 1, 0
        %v3262 = vsel %vm3246, 1, 0
        %v3263 = vsel %vm3247, 1, 0
        %v3264 = vsel %vm3248, 1, 0
        %v3265 = vsel %vm3249, 1, 0
        %v3266 = vsel %vm3250, 1, 0
        %v3267 = vsel %vm3251, 1, 0
        %v3268 = vsel %vm3252, 1, 0
        %v3269 = vsel %vm3253, 1, 0
        %v3270 = vsel %vm3254, 1, 0
        %v3271 = vsel %vm3255, 1, 0
        %v3272 = vsel %vm3256, 1, 0
        %v3273 = vsel %vm3257, 1, 0
        %v3274 = vsel %vm3258, 1, 0
        %v3275 = vsel %vm3259, 1, 0
        %v3276 = vcvt.s32.f32 %v3260
        %v3277 = vcvt.s32.f32 %v3261
        %v3278 = vcvt.s32.f32 %v3262
        %v3279 = vcvt.s32.f32 %v3263
        %v3280 = vcvt.s32.f32 %v3264
        %v3281 = vcvt.s32.f32 %v3265
        %v3282 = vcvt.s32.f32 %v3266
        %v3283 = vcvt.s32.f32 %v3267
        %v3284 = vcvt.s32.f32 %v3268
        %v3285 = vcvt.s32.f32 %v3269
        %v3286 = vcvt.s32.f32 %v3270
        %v3287 = vcvt.s32.f32 %v3271
        %v3288 = vcvt.s32.f32 %v3272
        %v3289 = vcvt.s32.f32 %v3273
        %v3290 = vcvt.s32.f32 %v3274
        %v3291 = vcvt.s32.f32 %v3275
        %3292 = vmatpush.msra.mxu0 %v3176
        %3293 = vmatpush.msra.mxu0 %v3175
        %3294 = vmatpush.msra.mxu0 %v3174
        %3295 = vmatpush.msra.mxu0 %v3173
        %3296 = vmatpush.msra.mxu0 %v3172
        %3297 = vmatpush.msra.mxu0 %v3171
        %3298 = vmatpush.msra.mxu0 %v3170
        %3299 = vmatpush.msra.mxu0 %v3169
        %3300 = vmatpush.msra.mxu0 %v3168
        %3301 = vmatpush.msra.mxu0 %v3167
        %3302 = vmatpush.msra.mxu0 %v3166
        %3303 = vmatpush.msra.mxu0 %v3165
        %3304 = vmatpush.msra.mxu0 %v3164
        %3305 = vmatpush.msra.mxu0 %v3163
        %3306 = vmatpush.msra.mxu0 %v3162
        %3307 = vmatpush.msra.mxu0 %v3161
        %3308 = vmatmul.f32.gmra.mxu0 %v3276
        %v3309 = vpop.f32.mrf.mxu0
        %v3310 = vadd.f32 0.0, %v3309
        %3311 = vmatmul.f32.gmra.mxu0 %v3278
        %v3312 = vpop.f32.mrf.mxu0
        %v3313 = vadd.f32 0.0, %v3312
        %3314 = vmatmul.f32.gmra.mxu0 %v3280
        %v3315 = vpop.f32.mrf.mxu0
        %v3316 = vadd.f32 0.0, %v3315
        %3317 = vmatmul.f32.gmra.mxu0 %v3282
        %v3318 = vpop.f32.mrf.mxu0
        %v3319 = vadd.f32 0.0, %v3318
        %3320 = vmatmul.f32.gmra.mxu0 %v3284
        %v3321 = vpop.f32.mrf.mxu0
        %v3322 = vadd.f32 0.0, %v3321
        %3323 = vmatmul.f32.gmra.mxu0 %v3286
        %v3324 = vpop.f32.mrf.mxu0
        %v3325 = vadd.f32 0.0, %v3324
        %3326 = vmatmul.f32.gmra.mxu0 %v3288
        %v3327 = vpop.f32.mrf.mxu0
        %v3328 = vadd.f32 0.0, %v3327
        %3329 = vmatmul.f32.gmra.mxu0 %v3290
        %v3330 = vpop.f32.mrf.mxu0
        %v3331 = vadd.f32 0.0, %v3330
        %3332 = vdwg.mxu0
        %3333 = vmatpush.msra.mxu0 %v3192
        %3334 = vmatpush.msra.mxu0 %v3191
        %3335 = vmatpush.msra.mxu0 %v3190
        %3336 = vmatpush.msra.mxu0 %v3189
        %3337 = vmatpush.msra.mxu0 %v3188
        %3338 = vmatpush.msra.mxu0 %v3187
        %3339 = vmatpush.msra.mxu0 %v3186
        %3340 = vmatpush.msra.mxu0 %v3185
        %3341 = vmatpush.msra.mxu0 %v3184
        %3342 = vmatpush.msra.mxu0 %v3183
        %3343 = vmatpush.msra.mxu0 %v3182
        %3344 = vmatpush.msra.mxu0 %v3181
        %3345 = vmatpush.msra.mxu0 %v3180
        %3346 = vmatpush.msra.mxu0 %v3179
        %3347 = vmatpush.msra.mxu0 %v3178
        %3348 = vmatpush.msra.mxu0 %v3177
        %3349 = vmatmul.f32.gmra.mxu0 %v3277
        %v3350 = vpop.f32.mrf.mxu0
        %v3351 = vadd.f32 %v3310, %v3350
        %3352 = vmatmul.f32.gmra.mxu0 %v3279
        %v3353 = vpop.f32.mrf.mxu0
        %v3354 = vadd.f32 %v3313, %v3353
        %3355 = vmatmul.f32.gmra.mxu0 %v3281
        %v3356 = vpop.f32.mrf.mxu0
        %v3357 = vadd.f32 %v3316, %v3356
        %3358 = vmatmul.f32.gmra.mxu0 %v3283
        %v3359 = vpop.f32.mrf.mxu0
        %v3360 = vadd.f32 %v3319, %v3359
        %3361 = vmatmul.f32.gmra.mxu0 %v3285
        %v3362 = vpop.f32.mrf.mxu0
        %v3363 = vadd.f32 %v3322, %v3362
        %3364 = vmatmul.f32.gmra.mxu0 %v3287
        %v3365 = vpop.f32.mrf.mxu0
        %v3366 = vadd.f32 %v3325, %v3365
        %3367 = vmatmul.f32.gmra.mxu0 %v3289
        %v3368 = vpop.f32.mrf.mxu0
        %v3369 = vadd.f32 %v3328, %v3368
        %3370 = vmatmul.f32.gmra.mxu0 %v3291
        %v3371 = vpop.f32.mrf.mxu0
        %v3372 = vadd.f32 %v3331, %v3371
        %3373 = vdwg.mxu0
        %v3374 = vadd.s32 %v3236, 1
        %v3375 = vadd.s32 %v3237, 1
        %v3376 = vadd.s32 %v3238, 1
        %v3377 = vadd.s32 %v3239, 1
        %v3378 = vadd.s32 %v3240, 1
        %v3379 = vadd.s32 %v3241, 1
        %v3380 = vadd.s32 %v3242, 1
        %v3381 = vadd.s32 %v3243, 1
        %vm3382 = vcmp.eq.s32.totalorder %v3194, %v3374
        %vm3383 = vcmp.eq.s32.totalorder %v3195, %v3374
        %vm3384 = vcmp.eq.s32.totalorder %v3194, %v3375
        %vm3385 = vcmp.eq.s32.totalorder %v3195, %v3375
        %vm3386 = vcmp.eq.s32.totalorder %v3194, %v3376
        %vm3387 = vcmp.eq.s32.totalorder %v3195, %v3376
        %vm3388 = vcmp.eq.s32.totalorder %v3194, %v3377
        %vm3389 = vcmp.eq.s32.totalorder %v3195, %v3377
        %vm3390 = vcmp.eq.s32.totalorder %v3194, %v3378
        %vm3391 = vcmp.eq.s32.totalorder %v3195, %v3378
        %vm3392 = vcmp.eq.s32.totalorder %v3194, %v3379
        %vm3393 = vcmp.eq.s32.totalorder %v3195, %v3379
        %vm3394 = vcmp.eq.s32.totalorder %v3194, %v3380
        %vm3395 = vcmp.eq.s32.totalorder %v3195, %v3380
        %vm3396 = vcmp.eq.s32.totalorder %v3194, %v3381
        %vm3397 = vcmp.eq.s32.totalorder %v3195, %v3381
        %v3398 = vsel %vm3382, 1, 0
        %v3399 = vsel %vm3383, 1, 0
        %v3400 = vsel %vm3384, 1, 0
        %v3401 = vsel %vm3385, 1, 0
        %v3402 = vsel %vm3386, 1, 0
        %v3403 = vsel %vm3387, 1, 0
        %v3404 = vsel %vm3388, 1, 0
        %v3405 = vsel %vm3389, 1, 0
        %v3406 = vsel %vm3390, 1, 0
        %v3407 = vsel %vm3391, 1, 0
        %v3408 = vsel %vm3392, 1, 0
        %v3409 = vsel %vm3393, 1, 0
        %v3410 = vsel %vm3394, 1, 0
        %v3411 = vsel %vm3395, 1, 0
        %v3412 = vsel %vm3396, 1, 0
        %v3413 = vsel %vm3397, 1, 0
        %v3414 = vcvt.s32.f32 %v3398
        %v3415 = vcvt.s32.f32 %v3399
        %v3416 = vcvt.s32.f32 %v3400
        %v3417 = vcvt.s32.f32 %v3401
        %v3418 = vcvt.s32.f32 %v3402
        %v3419 = vcvt.s32.f32 %v3403
        %v3420 = vcvt.s32.f32 %v3404
        %v3421 = vcvt.s32.f32 %v3405
        %v3422 = vcvt.s32.f32 %v3406
        %v3423 = vcvt.s32.f32 %v3407
        %v3424 = vcvt.s32.f32 %v3408
        %v3425 = vcvt.s32.f32 %v3409
        %v3426 = vcvt.s32.f32 %v3410
        %v3427 = vcvt.s32.f32 %v3411
        %v3428 = vcvt.s32.f32 %v3412
        %v3429 = vcvt.s32.f32 %v3413
        %3430 = vmatpush.msra.mxu0 %v3176
        %3431 = vmatpush.msra.mxu0 %v3175
        %3432 = vmatpush.msra.mxu0 %v3174
        %3433 = vmatpush.msra.mxu0 %v3173
        %3434 = vmatpush.msra.mxu0 %v3172
        %3435 = vmatpush.msra.mxu0 %v3171
        %3436 = vmatpush.msra.mxu0 %v3170
        %3437 = vmatpush.msra.mxu0 %v3169
        %3438 = vmatpush.msra.mxu0 %v3168
        %3439 = vmatpush.msra.mxu0 %v3167
        %3440 = vmatpush.msra.mxu0 %v3166
        %3441 = vmatpush.msra.mxu0 %v3165
        %3442 = vmatpush.msra.mxu0 %v3164
        %3443 = vmatpush.msra.mxu0 %v3163
        %3444 = vmatpush.msra.mxu0 %v3162
        %3445 = vmatpush.msra.mxu0 %v3161
        %3446 = vmatmul.f32.gmra.mxu0 %v3414
        %v3447 = vpop.f32.mrf.mxu0
        %v3448 = vadd.f32 0.0, %v3447
        %3449 = vmatmul.f32.gmra.mxu0 %v3416
        %v3450 = vpop.f32.mrf.mxu0
        %v3451 = vadd.f32 0.0, %v3450
        %3452 = vmatmul.f32.gmra.mxu0 %v3418
        %v3453 = vpop.f32.mrf.mxu0
        %v3454 = vadd.f32 0.0, %v3453
        %3455 = vmatmul.f32.gmra.mxu0 %v3420
        %v3456 = vpop.f32.mrf.mxu0
        %v3457 = vadd.f32 0.0, %v3456
        %3458 = vmatmul.f32.gmra.mxu0 %v3422
        %v3459 = vpop.f32.mrf.mxu0
        %v3460 = vadd.f32 0.0, %v3459
        %3461 = vmatmul.f32.gmra.mxu0 %v3424
        %v3462 = vpop.f32.mrf.mxu0
        %v3463 = vadd.f32 0.0, %v3462
        %3464 = vmatmul.f32.gmra.mxu0 %v3426
        %v3465 = vpop.f32.mrf.mxu0
        %v3466 = vadd.f32 0.0, %v3465
        %3467 = vmatmul.f32.gmra.mxu0 %v3428
        %v3468 = vpop.f32.mrf.mxu0
        %v3469 = vadd.f32 0.0, %v3468
        %3470 = vdwg.mxu0
        %3471 = vmatpush.msra.mxu0 %v3192
        %3472 = vmatpush.msra.mxu0 %v3191
        %3473 = vmatpush.msra.mxu0 %v3190
        %3474 = vmatpush.msra.mxu0 %v3189
        %3475 = vmatpush.msra.mxu0 %v3188
        %3476 = vmatpush.msra.mxu0 %v3187
        %3477 = vmatpush.msra.mxu0 %v3186
        %3478 = vmatpush.msra.mxu0 %v3185
        %3479 = vmatpush.msra.mxu0 %v3184
        %3480 = vmatpush.msra.mxu0 %v3183
        %3481 = vmatpush.msra.mxu0 %v3182
        %3482 = vmatpush.msra.mxu0 %v3181
        %3483 = vmatpush.msra.mxu0 %v3180
        %3484 = vmatpush.msra.mxu0 %v3179
        %3485 = vmatpush.msra.mxu0 %v3178
        %3486 = vmatpush.msra.mxu0 %v3177
        %3487 = vmatmul.f32.gmra.mxu0 %v3415
        %v3488 = vpop.f32.mrf.mxu0
        %v3489 = vadd.f32 %v3448, %v3488
        %3490 = vmatmul.f32.gmra.mxu0 %v3417
        %v3491 = vpop.f32.mrf.mxu0
        %v3492 = vadd.f32 %v3451, %v3491
        %3493 = vmatmul.f32.gmra.mxu0 %v3419
        %v3494 = vpop.f32.mrf.mxu0
        %v3495 = vadd.f32 %v3454, %v3494
        %3496 = vmatmul.f32.gmra.mxu0 %v3421
        %v3497 = vpop.f32.mrf.mxu0
        %v3498 = vadd.f32 %v3457, %v3497
        %3499 = vmatmul.f32.gmra.mxu0 %v3423
        %v3500 = vpop.f32.mrf.mxu0
        %v3501 = vadd.f32 %v3460, %v3500
        %3502 = vmatmul.f32.gmra.mxu0 %v3425
        %v3503 = vpop.f32.mrf.mxu0
        %v3504 = vadd.f32 %v3463, %v3503
        %3505 = vmatmul.f32.gmra.mxu0 %v3427
        %v3506 = vpop.f32.mrf.mxu0
        %v3507 = vadd.f32 %v3466, %v3506
        %3508 = vmatmul.f32.gmra.mxu0 %v3429
        %v3509 = vpop.f32.mrf.mxu0
        %v3510 = vadd.f32 %v3469, %v3509
        %3511 = vdwg.mxu0
        %v3512 = vmax.f32 %v3351, %v3489
        %v3513 = vmax.f32 %v3354, %v3492
        %v3514 = vmax.f32 %v3357, %v3495
        %v3515 = vmax.f32 %v3360, %v3498
        %v3516 = vmax.f32 %v3363, %v3501
        %v3517 = vmax.f32 %v3366, %v3504
        %v3518 = vmax.f32 %v3369, %v3507
        %v3519 = vmax.f32 %v3372, %v3510
        %v3520 = vadd.s32 %v3236, 16
        %v3521 = vadd.s32 %v3237, 16
        %v3522 = vadd.s32 %v3238, 16
        %v3523 = vadd.s32 %v3239, 16
        %v3524 = vadd.s32 %v3240, 16
        %v3525 = vadd.s32 %v3241, 16
        %v3526 = vadd.s32 %v3242, 16
        %v3527 = vadd.s32 %v3243, 16
        %vm3528 = vcmp.eq.s32.totalorder %v3194, %v3520
        %vm3529 = vcmp.eq.s32.totalorder %v3195, %v3520
        %vm3530 = vcmp.eq.s32.totalorder %v3194, %v3521
        %vm3531 = vcmp.eq.s32.totalorder %v3195, %v3521
        %vm3532 = vcmp.eq.s32.totalorder %v3194, %v3522
        %vm3533 = vcmp.eq.s32.totalorder %v3195, %v3522
        %vm3534 = vcmp.eq.s32.totalorder %v3194, %v3523
        %vm3535 = vcmp.eq.s32.totalorder %v3195, %v3523
        %vm3536 = vcmp.eq.s32.totalorder %v3194, %v3524
        %vm3537 = vcmp.eq.s32.totalorder %v3195, %v3524
        %vm3538 = vcmp.eq.s32.totalorder %v3194, %v3525
        %vm3539 = vcmp.eq.s32.totalorder %v3195, %v3525
        %vm3540 = vcmp.eq.s32.totalorder %v3194, %v3526
        %vm3541 = vcmp.eq.s32.totalorder %v3195, %v3526
        %vm3542 = vcmp.eq.s32.totalorder %v3194, %v3527
        %vm3543 = vcmp.eq.s32.totalorder %v3195, %v3527
        %v3544 = vsel %vm3528, 1, 0
        %v3545 = vsel %vm3529, 1, 0
        %v3546 = vsel %vm3530, 1, 0
        %v3547 = vsel %vm3531, 1, 0
        %v3548 = vsel %vm3532, 1, 0
        %v3549 = vsel %vm3533, 1, 0
        %v3550 = vsel %vm3534, 1, 0
        %v3551 = vsel %vm3535, 1, 0
        %v3552 = vsel %vm3536, 1, 0
        %v3553 = vsel %vm3537, 1, 0
        %v3554 = vsel %vm3538, 1, 0
        %v3555 = vsel %vm3539, 1, 0
        %v3556 = vsel %vm3540, 1, 0
        %v3557 = vsel %vm3541, 1, 0
        %v3558 = vsel %vm3542, 1, 0
        %v3559 = vsel %vm3543, 1, 0
        %v3560 = vcvt.s32.f32 %v3544
        %v3561 = vcvt.s32.f32 %v3545
        %v3562 = vcvt.s32.f32 %v3546
        %v3563 = vcvt.s32.f32 %v3547
        %v3564 = vcvt.s32.f32 %v3548
        %v3565 = vcvt.s32.f32 %v3549
        %v3566 = vcvt.s32.f32 %v3550
        %v3567 = vcvt.s32.f32 %v3551
        %v3568 = vcvt.s32.f32 %v3552
        %v3569 = vcvt.s32.f32 %v3553
        %v3570 = vcvt.s32.f32 %v3554
        %v3571 = vcvt.s32.f32 %v3555
        %v3572 = vcvt.s32.f32 %v3556
        %v3573 = vcvt.s32.f32 %v3557
        %v3574 = vcvt.s32.f32 %v3558
        %v3575 = vcvt.s32.f32 %v3559
        %3576 = vmatpush.msra.mxu0 %v3176
        %3577 = vmatpush.msra.mxu0 %v3175
        %3578 = vmatpush.msra.mxu0 %v3174
        %3579 = vmatpush.msra.mxu0 %v3173
        %3580 = vmatpush.msra.mxu0 %v3172
        %3581 = vmatpush.msra.mxu0 %v3171
        %3582 = vmatpush.msra.mxu0 %v3170
        %3583 = vmatpush.msra.mxu0 %v3169
        %3584 = vmatpush.msra.mxu0 %v3168
        %3585 = vmatpush.msra.mxu0 %v3167
        %3586 = vmatpush.msra.mxu0 %v3166
        %3587 = vmatpush.msra.mxu0 %v3165
        %3588 = vmatpush.msra.mxu0 %v3164
        %3589 = vmatpush.msra.mxu0 %v3163
        %3590 = vmatpush.msra.mxu0 %v3162
        %3591 = vmatpush.msra.mxu0 %v3161
        %3592 = vmatmul.f32.gmra.mxu0 %v3560
        %v3593 = vpop.f32.mrf.mxu0
        %v3594 = vadd.f32 0.0, %v3593
        %3595 = vmatmul.f32.gmra.mxu0 %v3562
        %v3596 = vpop.f32.mrf.mxu0
        %v3597 = vadd.f32 0.0, %v3596
        %3598 = vmatmul.f32.gmra.mxu0 %v3564
        %v3599 = vpop.f32.mrf.mxu0
        %v3600 = vadd.f32 0.0, %v3599
        %3601 = vmatmul.f32.gmra.mxu0 %v3566
        %v3602 = vpop.f32.mrf.mxu0
        %v3603 = vadd.f32 0.0, %v3602
        %3604 = vmatmul.f32.gmra.mxu0 %v3568
        %v3605 = vpop.f32.mrf.mxu0
        %v3606 = vadd.f32 0.0, %v3605
        %3607 = vmatmul.f32.gmra.mxu0 %v3570
        %v3608 = vpop.f32.mrf.mxu0
        %v3609 = vadd.f32 0.0, %v3608
        %3610 = vmatmul.f32.gmra.mxu0 %v3572
        %v3611 = vpop.f32.mrf.mxu0
        %v3612 = vadd.f32 0.0, %v3611
        %3613 = vmatmul.f32.gmra.mxu0 %v3574
        %v3614 = vpop.f32.mrf.mxu0
        %v3615 = vadd.f32 0.0, %v3614
        %3616 = vdwg.mxu0
        %3617 = vmatpush.msra.mxu0 %v3192
        %3618 = vmatpush.msra.mxu0 %v3191
        %3619 = vmatpush.msra.mxu0 %v3190
        %3620 = vmatpush.msra.mxu0 %v3189
        %3621 = vmatpush.msra.mxu0 %v3188
        %3622 = vmatpush.msra.mxu0 %v3187
        %3623 = vmatpush.msra.mxu0 %v3186
        %3624 = vmatpush.msra.mxu0 %v3185
        %3625 = vmatpush.msra.mxu0 %v3184
        %3626 = vmatpush.msra.mxu0 %v3183
        %3627 = vmatpush.msra.mxu0 %v3182
        %3628 = vmatpush.msra.mxu0 %v3181
        %3629 = vmatpush.msra.mxu0 %v3180
        %3630 = vmatpush.msra.mxu0 %v3179
        %3631 = vmatpush.msra.mxu0 %v3178
        %3632 = vmatpush.msra.mxu0 %v3177
        %3633 = vmatmul.f32.gmra.mxu0 %v3561
        %v3634 = vpop.f32.mrf.mxu0
        %v3635 = vadd.f32 %v3594, %v3634
        %3636 = vmatmul.f32.gmra.mxu0 %v3563
        %v3637 = vpop.f32.mrf.mxu0
        %v3638 = vadd.f32 %v3597, %v3637
        %3639 = vmatmul.f32.gmra.mxu0 %v3565
        %v3640 = vpop.f32.mrf.mxu0
        %v3641 = vadd.f32 %v3600, %v3640
        %3642 = vmatmul.f32.gmra.mxu0 %v3567
        %v3643 = vpop.f32.mrf.mxu0
        %v3644 = vadd.f32 %v3603, %v3643
        %3645 = vmatmul.f32.gmra.mxu0 %v3569
        %v3646 = vpop.f32.mrf.mxu0
        %v3647 = vadd.f32 %v3606, %v3646
        %3648 = vmatmul.f32.gmra.mxu0 %v3571
        %v3649 = vpop.f32.mrf.mxu0
        %v3650 = vadd.f32 %v3609, %v3649
        %3651 = vmatmul.f32.gmra.mxu0 %v3573
        %v3652 = vpop.f32.mrf.mxu0
        %v3653 = vadd.f32 %v3612, %v3652
        %3654 = vmatmul.f32.gmra.mxu0 %v3575
        %v3655 = vpop.f32.mrf.mxu0
        %v3656 = vadd.f32 %v3615, %v3655
        %3657 = vdwg.mxu0
        %v3658 = vadd.s32 %v3236, 17
        %v3659 = vadd.s32 %v3237, 17
        %v3660 = vadd.s32 %v3238, 17
        %v3661 = vadd.s32 %v3239, 17
        %v3662 = vadd.s32 %v3240, 17
        %v3663 = vadd.s32 %v3241, 17
        %v3664 = vadd.s32 %v3242, 17
        %v3665 = vadd.s32 %v3243, 17
        %vm3666 = vcmp.eq.s32.totalorder %v3194, %v3658
        %vm3667 = vcmp.eq.s32.totalorder %v3195, %v3658
        %vm3668 = vcmp.eq.s32.totalorder %v3194, %v3659
        %vm3669 = vcmp.eq.s32.totalorder %v3195, %v3659
        %vm3670 = vcmp.eq.s32.totalorder %v3194, %v3660
        %vm3671 = vcmp.eq.s32.totalorder %v3195, %v3660
        %vm3672 = vcmp.eq.s32.totalorder %v3194, %v3661
        %vm3673 = vcmp.eq.s32.totalorder %v3195, %v3661
        %vm3674 = vcmp.eq.s32.totalorder %v3194, %v3662
        %vm3675 = vcmp.eq.s32.totalorder %v3195, %v3662
        %vm3676 = vcmp.eq.s32.totalorder %v3194, %v3663
        %vm3677 = vcmp.eq.s32.totalorder %v3195, %v3663
        %vm3678 = vcmp.eq.s32.totalorder %v3194, %v3664
        %vm3679 = vcmp.eq.s32.totalorder %v3195, %v3664
        %vm3680 = vcmp.eq.s32.totalorder %v3194, %v3665
        %vm3681 = vcmp.eq.s32.totalorder %v3195, %v3665
        %v3682 = vsel %vm3666, 1, 0
        %v3683 = vsel %vm3667, 1, 0
        %v3684 = vsel %vm3668, 1, 0
        %v3685 = vsel %vm3669, 1, 0
        %v3686 = vsel %vm3670, 1, 0
        %v3687 = vsel %vm3671, 1, 0
        %v3688 = vsel %vm3672, 1, 0
        %v3689 = vsel %vm3673, 1, 0
        %v3690 = vsel %vm3674, 1, 0
        %v3691 = vsel %vm3675, 1, 0
        %v3692 = vsel %vm3676, 1, 0
        %v3693 = vsel %vm3677, 1, 0
        %v3694 = vsel %vm3678, 1, 0
        %v3695 = vsel %vm3679, 1, 0
        %v3696 = vsel %vm3680, 1, 0
        %v3697 = vsel %vm3681, 1, 0
        %v3698 = vcvt.s32.f32 %v3682
        %v3699 = vcvt.s32.f32 %v3683
        %v3700 = vcvt.s32.f32 %v3684
        %v3701 = vcvt.s32.f32 %v3685
        %v3702 = vcvt.s32.f32 %v3686
        %v3703 = vcvt.s32.f32 %v3687
        %v3704 = vcvt.s32.f32 %v3688
        %v3705 = vcvt.s32.f32 %v3689
        %v3706 = vcvt.s32.f32 %v3690
        %v3707 = vcvt.s32.f32 %v3691
        %v3708 = vcvt.s32.f32 %v3692
        %v3709 = vcvt.s32.f32 %v3693
        %v3710 = vcvt.s32.f32 %v3694
        %v3711 = vcvt.s32.f32 %v3695
        %v3712 = vcvt.s32.f32 %v3696
        %v3713 = vcvt.s32.f32 %v3697
        %3714 = vmatpush.msra.mxu0 %v3176
        %3715 = vmatpush.msra.mxu0 %v3175
        %3716 = vmatpush.msra.mxu0 %v3174
        %3717 = vmatpush.msra.mxu0 %v3173
        %3718 = vmatpush.msra.mxu0 %v3172
        %3719 = vmatpush.msra.mxu0 %v3171
        %3720 = vmatpush.msra.mxu0 %v3170
        %3721 = vmatpush.msra.mxu0 %v3169
        %3722 = vmatpush.msra.mxu0 %v3168
        %3723 = vmatpush.msra.mxu0 %v3167
        %3724 = vmatpush.msra.mxu0 %v3166
        %3725 = vmatpush.msra.mxu0 %v3165
        %3726 = vmatpush.msra.mxu0 %v3164
        %3727 = vmatpush.msra.mxu0 %v3163
        %3728 = vmatpush.msra.mxu0 %v3162
        %3729 = vmatpush.msra.mxu0 %v3161
        %3730 = vmatmul.f32.gmra.mxu0 %v3698
        %v3731 = vpop.f32.mrf.mxu0
        %v3732 = vadd.f32 0.0, %v3731
        %3733 = vmatmul.f32.gmra.mxu0 %v3700
        %v3734 = vpop.f32.mrf.mxu0
        %v3735 = vadd.f32 0.0, %v3734
        %3736 = vmatmul.f32.gmra.mxu0 %v3702
        %v3737 = vpop.f32.mrf.mxu0
        %v3738 = vadd.f32 0.0, %v3737
        %3739 = vmatmul.f32.gmra.mxu0 %v3704
        %v3740 = vpop.f32.mrf.mxu0
        %v3741 = vadd.f32 0.0, %v3740
        %3742 = vmatmul.f32.gmra.mxu0 %v3706
        %v3743 = vpop.f32.mrf.mxu0
        %v3744 = vadd.f32 0.0, %v3743
        %3745 = vmatmul.f32.gmra.mxu0 %v3708
        %v3746 = vpop.f32.mrf.mxu0
        %v3747 = vadd.f32 0.0, %v3746
        %3748 = vmatmul.f32.gmra.mxu0 %v3710
        %v3749 = vpop.f32.mrf.mxu0
        %v3750 = vadd.f32 0.0, %v3749
        %3751 = vmatmul.f32.gmra.mxu0 %v3712
        %v3752 = vpop.f32.mrf.mxu0
        %v3753 = vadd.f32 0.0, %v3752
        %3754 = vdwg.mxu0
        %3755 = vmatpush.msra.mxu0 %v3192
        %3756 = vmatpush.msra.mxu0 %v3191
        %3757 = vmatpush.msra.mxu0 %v3190
        %3758 = vmatpush.msra.mxu0 %v3189
        %3759 = vmatpush.msra.mxu0 %v3188
        %3760 = vmatpush.msra.mxu0 %v3187
        %3761 = vmatpush.msra.mxu0 %v3186
        %3762 = vmatpush.msra.mxu0 %v3185
        %3763 = vmatpush.msra.mxu0 %v3184
        %3764 = vmatpush.msra.mxu0 %v3183
        %3765 = vmatpush.msra.mxu0 %v3182
        %3766 = vmatpush.msra.mxu0 %v3181
        %3767 = vmatpush.msra.mxu0 %v3180
        %3768 = vmatpush.msra.mxu0 %v3179
        %3769 = vmatpush.msra.mxu0 %v3178
        %3770 = vmatpush.msra.mxu0 %v3177
        %3771 = vmatmul.f32.gmra.mxu0 %v3699
        %v3772 = vpop.f32.mrf.mxu0
        %v3773 = vadd.f32 %v3732, %v3772
        %3774 = vmatmul.f32.gmra.mxu0 %v3701
        %v3775 = vpop.f32.mrf.mxu0
        %v3776 = vadd.f32 %v3735, %v3775
        %3777 = vmatmul.f32.gmra.mxu0 %v3703
        %v3778 = vpop.f32.mrf.mxu0
        %v3779 = vadd.f32 %v3738, %v3778
        %3780 = vmatmul.f32.gmra.mxu0 %v3705
        %v3781 = vpop.f32.mrf.mxu0
        %v3782 = vadd.f32 %v3741, %v3781
        %3783 = vmatmul.f32.gmra.mxu0 %v3707
        %v3784 = vpop.f32.mrf.mxu0
        %v3785 = vadd.f32 %v3744, %v3784
        %3786 = vmatmul.f32.gmra.mxu0 %v3709
        %v3787 = vpop.f32.mrf.mxu0
        %v3788 = vadd.f32 %v3747, %v3787
        %3789 = vmatmul.f32.gmra.mxu0 %v3711
        %v3790 = vpop.f32.mrf.mxu0
        %v3791 = vadd.f32 %v3750, %v3790
        %3792 = vmatmul.f32.gmra.mxu0 %v3713
        %v3793 = vpop.f32.mrf.mxu0
        %v3794 = vadd.f32 %v3753, %v3793
        %3795 = vdwg.mxu0
        %v3796 = vmax.f32 %v3635, %v3773
        %v3797 = vmax.f32 %v3638, %v3776
        %v3798 = vmax.f32 %v3641, %v3779
        %v3799 = vmax.f32 %v3644, %v3782
        %v3800 = vmax.f32 %v3647, %v3785
        %v3801 = vmax.f32 %v3650, %v3788
        %v3802 = vmax.f32 %v3653, %v3791
        %v3803 = vmax.f32 %v3656, %v3794
        %v3804 = vmax.f32 %v3512, %v3796
        %v3805 = vmax.f32 %v3513, %v3797
        %v3806 = vmax.f32 %v3514, %v3798
        %v3807 = vmax.f32 %v3515, %v3799
        %v3808 = vmax.f32 %v3516, %v3800
        %v3809 = vmax.f32 %v3517, %v3801
        %v3810 = vmax.f32 %v3518, %v3802
        %v3811 = vmax.f32 %v3519, %v3803
        %3812 = vst [vmem:[#allocation3 + $0x9] sm:$0xff] %v3804
        %3813 = vst [vmem:[#allocation3 + $0x11] sm:$0xff] %v3805
        %3814 = vst [vmem:[#allocation3 + $0x19] sm:$0xff] %v3806
        %3815 = vst [vmem:[#allocation3 + $0x21] sm:$0xff] %v3807
        %3816 = vst [vmem:[#allocation3 + $0x29] sm:$0xff] %v3808
        %3817 = vst [vmem:[#allocation3 + $0x31] sm:$0xff] %v3809
        %3818 = vst [vmem:[#allocation3 + $0x39] sm:$0xff] %v3810
        %3819 = vst [vmem:[#allocation3 + $0x41] sm:$0xff] %v3811
        %v3820 = vld [vmem:[%s4] sm:$0x1]
        %vm3821 = vcmp.gt.s32.totalorder %v3220, 0
        %vm3822 = vcmp.gt.s32.totalorder %v3221, 0
        %vm3823 = vcmp.gt.s32.totalorder %v3222, 0
        %vm3824 = vcmp.gt.s32.totalorder %v3223, 0
        %vm3825 = vcmp.gt.s32.totalorder %v3224, 0
        %vm3826 = vcmp.gt.s32.totalorder %v3225, 0
        %vm3827 = vcmp.gt.s32.totalorder %v3226, 0
        %vm3828 = vcmp.gt.s32.totalorder %v3227, 0
        %vm3829 = vcmp.lt.s32.totalorder %v3220, 7
        %vm3830 = vcmp.lt.s32.totalorder %v3221, 7
        %vm3831 = vcmp.lt.s32.totalorder %v3222, 7
        %vm3832 = vcmp.lt.s32.totalorder %v3223, 7
        %vm3833 = vcmp.lt.s32.totalorder %v3224, 7
        %vm3834 = vcmp.lt.s32.totalorder %v3225, 7
        %vm3835 = vcmp.lt.s32.totalorder %v3226, 7
        %vm3836 = vcmp.lt.s32.totalorder %v3227, 7
        %v3837 = vld [vmem:[#allocation3] sm:$0xff]
        %v3838 = vld [vmem:[#allocation3 + $0x8] sm:$0xff]
        %v3839 = vld [vmem:[#allocation3 + $0x10] sm:$0xff]
        %v3840 = vld [vmem:[#allocation3 + $0x18] sm:$0xff]
        %v3841 = vld [vmem:[#allocation3 + $0x20] sm:$0xff]
        %v3842 = vld [vmem:[#allocation3 + $0x28] sm:$0xff]
        %v3843 = vld [vmem:[#allocation3 + $0x30] sm:$0xff]
        %v3844 = vld [vmem:[#allocation3 + $0x38] sm:$0xff]
        %v3845 = vsel %vm3821, %v3837, 0.0
        %v3846 = vsel %vm3822, %v3838, 0.0
        %v3847 = vsel %vm3823, %v3839, 0.0
        %v3848 = vsel %vm3824, %v3840, 0.0
        %v3849 = vsel %vm3825, %v3841, 0.0
        %v3850 = vsel %vm3826, %v3842, 0.0
        %v3851 = vsel %vm3827, %v3843, 0.0
        %v3852 = vsel %vm3828, %v3844, 0.0
        %v3853 = vld [vmem:[#allocation5] sm:$0xff]
        %v3854 = vld [vmem:[#allocation5 + $0x8] sm:$0xff]
        %v3855 = vld [vmem:[#allocation5 + $0x10] sm:$0xff]
        %v3856 = vld [vmem:[#allocation5 + $0x18] sm:$0xff]
        %v3857 = vld [vmem:[#allocation5 + $0x20] sm:$0xff]
        %v3858 = vld [vmem:[#allocation5 + $0x28] sm:$0xff]
        %v3859 = vld [vmem:[#allocation5 + $0x30] sm:$0xff]
        %v3860 = vld [vmem:[#allocation5 + $0x38] sm:$0xff]
        %v3861 = vld [vmem:[#allocation5 + $0x40] sm:$0xff]
        %v3862 = vld [vmem:[#allocation5 + $0x48] sm:$0xff]
        %v3863 = vld [vmem:[#allocation5 + $0x50] sm:$0xff]
        %v3864 = vld [vmem:[#allocation5 + $0x58] sm:$0xff]
        %v3865 = vld [vmem:[#allocation5 + $0x60] sm:$0xff]
        %v3866 = vld [vmem:[#allocation5 + $0x68] sm:$0xff]
        %v3867 = vld [vmem:[#allocation5 + $0x70] sm:$0xff]
        %v3868 = vld [vmem:[#allocation5 + $0x78] sm:$0xff]
        %v3869 = vld [vmem:[#allocation3 + $0x1] sm:$0xff]
        %v3870 = vld [vmem:[#allocation3 + $0x9] sm:$0xff]
        %v3871 = vld [vmem:[#allocation3 + $0x11] sm:$0xff]
        %v3872 = vld [vmem:[#allocation3 + $0x19] sm:$0xff]
        %v3873 = vld [vmem:[#allocation3 + $0x21] sm:$0xff]
        %v3874 = vld [vmem:[#allocation3 + $0x29] sm:$0xff]
        %v3875 = vld [vmem:[#allocation3 + $0x31] sm:$0xff]
        %v3876 = vld [vmem:[#allocation3 + $0x39] sm:$0xff]
        %s3877 = scalar_lea.vmem [#allocation5], 128
        %v3878 = vld [vmem:[%s3877] sm:$0xff]
        %v3879 = vld [vmem:[%s3877 + $0x8] sm:$0xff]
        %v3880 = vld [vmem:[%s3877 + $0x10] sm:$0xff]
        %v3881 = vld [vmem:[%s3877 + $0x18] sm:$0xff]
        %v3882 = vld [vmem:[%s3877 + $0x20] sm:$0xff]
        %v3883 = vld [vmem:[%s3877 + $0x28] sm:$0xff]
        %v3884 = vld [vmem:[%s3877 + $0x30] sm:$0xff]
        %v3885 = vld [vmem:[%s3877 + $0x38] sm:$0xff]
        %v3886 = vld [vmem:[%s3877 + $0x40] sm:$0xff]
        %v3887 = vld [vmem:[%s3877 + $0x48] sm:$0xff]
        %v3888 = vld [vmem:[%s3877 + $0x50] sm:$0xff]
        %v3889 = vld [vmem:[%s3877 + $0x58] sm:$0xff]
        %v3890 = vld [vmem:[%s3877 + $0x60] sm:$0xff]
        %v3891 = vld [vmem:[%s3877 + $0x68] sm:$0xff]
        %v3892 = vld [vmem:[%s3877 + $0x70] sm:$0xff]
        %v3893 = vld [vmem:[%s3877 + $0x78] sm:$0xff]
        %3894 = vmatpush.msra.mxu0 %v3893
        %3895 = vmatpush.msra.mxu0 %v3892
        %3896 = vmatpush.msra.mxu0 %v3891
        %3897 = vmatpush.msra.mxu0 %v3890
        %3898 = vmatpush.msra.mxu0 %v3889
        %3899 = vmatpush.msra.mxu0 %v3888
        %3900 = vmatpush.msra.mxu0 %v3887
        %3901 = vmatpush.msra.mxu0 %v3886
        %3902 = vmatpush.msra.mxu0 %v3885
        %3903 = vmatpush.msra.mxu0 %v3884
        %3904 = vmatpush.msra.mxu0 %v3883
        %3905 = vmatpush.msra.mxu0 %v3882
        %3906 = vmatpush.msra.mxu0 %v3881
        %3907 = vmatpush.msra.mxu0 %v3880
        %3908 = vmatpush.msra.mxu0 %v3879
        %3909 = vmatpush.msra.mxu0 %v3878
        %3910 = vmatmul.f32.gmra.mxu0 %v3869
        %v3911 = vpop.f32.mrf.mxu0
        %v3912 = vadd.f32 0.0, %v3911
        %3913 = vmatmul.f32.gmra.mxu0 %v3870
        %v3914 = vpop.f32.mrf.mxu0
        %v3915 = vadd.f32 0.0, %v3914
        %3916 = vmatmul.f32.gmra.mxu0 %v3871
        %v3917 = vpop.f32.mrf.mxu0
        %v3918 = vadd.f32 0.0, %v3917
        %3919 = vmatmul.f32.gmra.mxu0 %v3872
        %v3920 = vpop.f32.mrf.mxu0
        %v3921 = vadd.f32 0.0, %v3920
        %3922 = vmatmul.f32.gmra.mxu0 %v3873
        %v3923 = vpop.f32.mrf.mxu0
        %v3924 = vadd.f32 0.0, %v3923
        %3925 = vmatmul.f32.gmra.mxu0 %v3874
        %v3926 = vpop.f32.mrf.mxu0
        %v3927 = vadd.f32 0.0, %v3926
        %3928 = vmatmul.f32.gmra.mxu0 %v3875
        %v3929 = vpop.f32.mrf.mxu0
        %v3930 = vadd.f32 0.0, %v3929
        %3931 = vmatmul.f32.gmra.mxu0 %v3876
        %v3932 = vpop.f32.mrf.mxu0
        %v3933 = vadd.f32 0.0, %v3932
        %3934 = vdwg.mxu0
        %3935 = vmatpush.msra.mxu0 %v3868
        %3936 = vmatpush.msra.mxu0 %v3867
        %3937 = vmatpush.msra.mxu0 %v3866
        %3938 = vmatpush.msra.mxu0 %v3865
        %3939 = vmatpush.msra.mxu0 %v3864
        %3940 = vmatpush.msra.mxu0 %v3863
        %3941 = vmatpush.msra.mxu0 %v3862
        %3942 = vmatpush.msra.mxu0 %v3861
        %3943 = vmatpush.msra.mxu0 %v3860
        %3944 = vmatpush.msra.mxu0 %v3859
        %3945 = vmatpush.msra.mxu0 %v3858
        %3946 = vmatpush.msra.mxu0 %v3857
        %3947 = vmatpush.msra.mxu0 %v3856
        %3948 = vmatpush.msra.mxu0 %v3855
        %3949 = vmatpush.msra.mxu0 %v3854
        %3950 = vmatpush.msra.mxu0 %v3853
        %3951 = vmatmul.f32.gmra.mxu0 %v3845
        %v3952 = vpop.f32.mrf.mxu0
        %v3953 = vadd.f32 %v3912, %v3952
        %3954 = vmatmul.f32.gmra.mxu0 %v3846
        %v3955 = vpop.f32.mrf.mxu0
        %v3956 = vadd.f32 %v3915, %v3955
        %3957 = vmatmul.f32.gmra.mxu0 %v3847
        %v3958 = vpop.f32.mrf.mxu0
        %v3959 = vadd.f32 %v3918, %v3958
        %3960 = vmatmul.f32.gmra.mxu0 %v3848
        %v3961 = vpop.f32.mrf.mxu0
        %v3962 = vadd.f32 %v3921, %v3961
        %3963 = vmatmul.f32.gmra.mxu0 %v3849
        %v3964 = vpop.f32.mrf.mxu0
        %v3965 = vadd.f32 %v3924, %v3964
        %3966 = vmatmul.f32.gmra.mxu0 %v3850
        %v3967 = vpop.f32.mrf.mxu0
        %v3968 = vadd.f32 %v3927, %v3967
        %3969 = vmatmul.f32.gmra.mxu0 %v3851
        %v3970 = vpop.f32.mrf.mxu0
        %v3971 = vadd.f32 %v3930, %v3970
        %3972 = vmatmul.f32.gmra.mxu0 %v3852
        %v3973 = vpop.f32.mrf.mxu0
        %v3974 = vadd.f32 %v3933, %v3973
        %3975 = vdwg.mxu0
        %v3976 = vld [vmem:[#allocation3 + $0x2] sm:$0xff]
        %v3977 = vld [vmem:[#allocation3 + $0xa] sm:$0xff]
        %v3978 = vld [vmem:[#allocation3 + $0x12] sm:$0xff]
        %v3979 = vld [vmem:[#allocation3 + $0x1a] sm:$0xff]
        %v3980 = vld [vmem:[#allocation3 + $0x22] sm:$0xff]
        %v3981 = vld [vmem:[#allocation3 + $0x2a] sm:$0xff]
        %v3982 = vld [vmem:[#allocation3 + $0x32] sm:$0xff]
        %v3983 = vld [vmem:[#allocation3 + $0x3a] sm:$0xff]
        %v3984 = vsel %vm3829, %v3976, 0.0
        %v3985 = vsel %vm3830, %v3977, 0.0
        %v3986 = vsel %vm3831, %v3978, 0.0
        %v3987 = vsel %vm3832, %v3979, 0.0
        %v3988 = vsel %vm3833, %v3980, 0.0
        %v3989 = vsel %vm3834, %v3981, 0.0
        %v3990 = vsel %vm3835, %v3982, 0.0
        %v3991 = vsel %vm3836, %v3983, 0.0
        %s3992 = scalar_lea.vmem [#allocation5], 256
        %v3993 = vld [vmem:[%s3992] sm:$0xff]
        %v3994 = vld [vmem:[%s3992 + $0x8] sm:$0xff]
        %v3995 = vld [vmem:[%s3992 + $0x10] sm:$0xff]
        %v3996 = vld [vmem:[%s3992 + $0x18] sm:$0xff]
        %v3997 = vld [vmem:[%s3992 + $0x20] sm:$0xff]
        %v3998 = vld [vmem:[%s3992 + $0x28] sm:$0xff]
        %v3999 = vld [vmem:[%s3992 + $0x30] sm:$0xff]
        %v4000 = vld [vmem:[%s3992 + $0x38] sm:$0xff]
        %v4001 = vld [vmem:[%s3992 + $0x40] sm:$0xff]
        %v4002 = vld [vmem:[%s3992 + $0x48] sm:$0xff]
        %v4003 = vld [vmem:[%s3992 + $0x50] sm:$0xff]
        %v4004 = vld [vmem:[%s3992 + $0x58] sm:$0xff]
        %v4005 = vld [vmem:[%s3992 + $0x60] sm:$0xff]
        %v4006 = vld [vmem:[%s3992 + $0x68] sm:$0xff]
        %v4007 = vld [vmem:[%s3992 + $0x70] sm:$0xff]
        %v4008 = vld [vmem:[%s3992 + $0x78] sm:$0xff]
        %4009 = vmatpush.msra.mxu0 %v4008
        %4010 = vmatpush.msra.mxu0 %v4007
        %4011 = vmatpush.msra.mxu0 %v4006
        %4012 = vmatpush.msra.mxu0 %v4005
        %4013 = vmatpush.msra.mxu0 %v4004
        %4014 = vmatpush.msra.mxu0 %v4003
        %4015 = vmatpush.msra.mxu0 %v4002
        %4016 = vmatpush.msra.mxu0 %v4001
        %4017 = vmatpush.msra.mxu0 %v4000
        %4018 = vmatpush.msra.mxu0 %v3999
        %4019 = vmatpush.msra.mxu0 %v3998
        %4020 = vmatpush.msra.mxu0 %v3997
        %4021 = vmatpush.msra.mxu0 %v3996
        %4022 = vmatpush.msra.mxu0 %v3995
        %4023 = vmatpush.msra.mxu0 %v3994
        %4024 = vmatpush.msra.mxu0 %v3993
        %4025 = vmatmul.f32.gmra.mxu0 %v3984
        %v4026 = vpop.f32.mrf.mxu0
        %v4027 = vadd.f32 0.0, %v4026
        %4028 = vmatmul.f32.gmra.mxu0 %v3985
        %v4029 = vpop.f32.mrf.mxu0
        %v4030 = vadd.f32 0.0, %v4029
        %4031 = vmatmul.f32.gmra.mxu0 %v3986
        %v4032 = vpop.f32.mrf.mxu0
        %v4033 = vadd.f32 0.0, %v4032
        %4034 = vmatmul.f32.gmra.mxu0 %v3987
        %v4035 = vpop.f32.mrf.mxu0
        %v4036 = vadd.f32 0.0, %v4035
        %4037 = vmatmul.f32.gmra.mxu0 %v3988
        %v4038 = vpop.f32.mrf.mxu0
        %v4039 = vadd.f32 0.0, %v4038
        %4040 = vmatmul.f32.gmra.mxu0 %v3989
        %v4041 = vpop.f32.mrf.mxu0
        %v4042 = vadd.f32 0.0, %v4041
        %4043 = vmatmul.f32.gmra.mxu0 %v3990
        %v4044 = vpop.f32.mrf.mxu0
        %v4045 = vadd.f32 0.0, %v4044
        %4046 = vmatmul.f32.gmra.mxu0 %v3991
        %v4047 = vpop.f32.mrf.mxu0
        %v4048 = vadd.f32 0.0, %v4047
        %4049 = vdwg.mxu0
        %v4050 = vadd.f32 %v3953, %v4027
        %v4051 = vadd.f32 %v3956, %v4030
        %v4052 = vadd.f32 %v3959, %v4033
        %v4053 = vadd.f32 %v3962, %v4036
        %v4054 = vadd.f32 %v3965, %v4039
        %v4055 = vadd.f32 %v3968, %v4042
        %v4056 = vadd.f32 %v3971, %v4045
        %v4057 = vadd.f32 %v3974, %v4048
        %v4058 = vld [vmem:[#allocation3 + $0x8] sm:$0xff]
        %v4059 = vld [vmem:[#allocation3 + $0x10] sm:$0xff]
        %v4060 = vld [vmem:[#allocation3 + $0x18] sm:$0xff]
        %v4061 = vld [vmem:[#allocation3 + $0x20] sm:$0xff]
        %v4062 = vld [vmem:[#allocation3 + $0x28] sm:$0xff]
        %v4063 = vld [vmem:[#allocation3 + $0x30] sm:$0xff]
        %v4064 = vld [vmem:[#allocation3 + $0x38] sm:$0xff]
        %v4065 = vld [vmem:[#allocation3 + $0x40] sm:$0xff]
        %v4066 = vsel %vm3821, %v4058, 0.0
        %v4067 = vsel %vm3822, %v4059, 0.0
        %v4068 = vsel %vm3823, %v4060, 0.0
        %v4069 = vsel %vm3824, %v4061, 0.0
        %v4070 = vsel %vm3825, %v4062, 0.0
        %v4071 = vsel %vm3826, %v4063, 0.0
        %v4072 = vsel %vm3827, %v4064, 0.0
        %v4073 = vsel %vm3828, %v4065, 0.0
        %s4074 = scalar_lea.vmem [#allocation5], 384
        %v4075 = vld [vmem:[%s4074] sm:$0xff]
        %v4076 = vld [vmem:[%s4074 + $0x8] sm:$0xff]
        %v4077 = vld [vmem:[%s4074 + $0x10] sm:$0xff]
        %v4078 = vld [vmem:[%s4074 + $0x18] sm:$0xff]
        %v4079 = vld [vmem:[%s4074 + $0x20] sm:$0xff]
        %v4080 = vld [vmem:[%s4074 + $0x28] sm:$0xff]
        %v4081 = vld [vmem:[%s4074 + $0x30] sm:$0xff]
        %v4082 = vld [vmem:[%s4074 + $0x38] sm:$0xff]
        %v4083 = vld [vmem:[%s4074 + $0x40] sm:$0xff]
        %v4084 = vld [vmem:[%s4074 + $0x48] sm:$0xff]
        %v4085 = vld [vmem:[%s4074 + $0x50] sm:$0xff]
        %v4086 = vld [vmem:[%s4074 + $0x58] sm:$0xff]
        %v4087 = vld [vmem:[%s4074 + $0x60] sm:$0xff]
        %v4088 = vld [vmem:[%s4074 + $0x68] sm:$0xff]
        %v4089 = vld [vmem:[%s4074 + $0x70] sm:$0xff]
        %v4090 = vld [vmem:[%s4074 + $0x78] sm:$0xff]
        %4091 = vmatpush.msra.mxu0 %v4090
        %4092 = vmatpush.msra.mxu0 %v4089
        %4093 = vmatpush.msra.mxu0 %v4088
        %4094 = vmatpush.msra.mxu0 %v4087
        %4095 = vmatpush.msra.mxu0 %v4086
        %4096 = vmatpush.msra.mxu0 %v4085
        %4097 = vmatpush.msra.mxu0 %v4084
        %4098 = vmatpush.msra.mxu0 %v4083
        %4099 = vmatpush.msra.mxu0 %v4082
        %4100 = vmatpush.msra.mxu0 %v4081
        %4101 = vmatpush.msra.mxu0 %v4080
        %4102 = vmatpush.msra.mxu0 %v4079
        %4103 = vmatpush.msra.mxu0 %v4078
        %4104 = vmatpush.msra.mxu0 %v4077
        %4105 = vmatpush.msra.mxu0 %v4076
        %4106 = vmatpush.msra.mxu0 %v4075
        %4107 = vmatmul.f32.gmra.mxu0 %v4066
        %v4108 = vpop.f32.mrf.mxu0
        %v4109 = vadd.f32 0.0, %v4108
        %4110 = vmatmul.f32.gmra.mxu0 %v4067
        %v4111 = vpop.f32.mrf.mxu0
        %v4112 = vadd.f32 0.0, %v4111
        %4113 = vmatmul.f32.gmra.mxu0 %v4068
        %v4114 = vpop.f32.mrf.mxu0
        %v4115 = vadd.f32 0.0, %v4114
        %4116 = vmatmul.f32.gmra.mxu0 %v4069
        %v4117 = vpop.f32.mrf.mxu0
        %v4118 = vadd.f32 0.0, %v4117
        %4119 = vmatmul.f32.gmra.mxu0 %v4070
        %v4120 = vpop.f32.mrf.mxu0
        %v4121 = vadd.f32 0.0, %v4120
        %4122 = vmatmul.f32.gmra.mxu0 %v4071
        %v4123 = vpop.f32.mrf.mxu0
        %v4124 = vadd.f32 0.0, %v4123
        %4125 = vmatmul.f32.gmra.mxu0 %v4072
        %v4126 = vpop.f32.mrf.mxu0
        %v4127 = vadd.f32 0.0, %v4126
        %4128 = vmatmul.f32.gmra.mxu0 %v4073
        %v4129 = vpop.f32.mrf.mxu0
        %v4130 = vadd.f32 0.0, %v4129
        %4131 = vdwg.mxu0
        %v4132 = vadd.f32 %v4050, %v4109
        %v4133 = vadd.f32 %v4051, %v4112
        %v4134 = vadd.f32 %v4052, %v4115
        %v4135 = vadd.f32 %v4053, %v4118
        %v4136 = vadd.f32 %v4054, %v4121
        %v4137 = vadd.f32 %v4055, %v4124
        %v4138 = vadd.f32 %v4056, %v4127
        %v4139 = vadd.f32 %v4057, %v4130
        %v4140 = vld [vmem:[#allocation3 + $0x9] sm:$0xff]
        %v4141 = vld [vmem:[#allocation3 + $0x11] sm:$0xff]
        %v4142 = vld [vmem:[#allocation3 + $0x19] sm:$0xff]
        %v4143 = vld [vmem:[#allocation3 + $0x21] sm:$0xff]
        %v4144 = vld [vmem:[#allocation3 + $0x29] sm:$0xff]
        %v4145 = vld [vmem:[#allocation3 + $0x31] sm:$0xff]
        %v4146 = vld [vmem:[#allocation3 + $0x39] sm:$0xff]
        %v4147 = vld [vmem:[#allocation3 + $0x41] sm:$0xff]
        %s4148 = scalar_lea.vmem [#allocation5], 512
        %v4149 = vld [vmem:[%s4148] sm:$0xff]
        %v4150 = vld [vmem:[%s4148 + $0x8] sm:$0xff]
        %v4151 = vld [vmem:[%s4148 + $0x10] sm:$0xff]
        %v4152 = vld [vmem:[%s4148 + $0x18] sm:$0xff]
        %v4153 = vld [vmem:[%s4148 + $0x20] sm:$0xff]
        %v4154 = vld [vmem:[%s4148 + $0x28] sm:$0xff]
        %v4155 = vld [vmem:[%s4148 + $0x30] sm:$0xff]
        %v4156 = vld [vmem:[%s4148 + $0x38] sm:$0xff]
        %v4157 = vld [vmem:[%s4148 + $0x40] sm:$0xff]
        %v4158 = vld [vmem:[%s4148 + $0x48] sm:$0xff]
        %v4159 = vld [vmem:[%s4148 + $0x50] sm:$0xff]
        %v4160 = vld [vmem:[%s4148 + $0x58] sm:$0xff]
        %v4161 = vld [vmem:[%s4148 + $0x60] sm:$0xff]
        %v4162 = vld [vmem:[%s4148 + $0x68] sm:$0xff]
        %v4163 = vld [vmem:[%s4148 + $0x70] sm:$0xff]
        %v4164 = vld [vmem:[%s4148 + $0x78] sm:$0xff]
        %4165 = vmatpush.msra.mxu0 %v4164
        %4166 = vmatpush.msra.mxu0 %v4163
        %4167 = vmatpush.msra.mxu0 %v4162
        %4168 = vmatpush.msra.mxu0 %v4161
        %4169 = vmatpush.msra.mxu0 %v4160
        %4170 = vmatpush.msra.mxu0 %v4159
        %4171 = vmatpush.msra.mxu0 %v4158
        %4172 = vmatpush.msra.mxu0 %v4157
        %4173 = vmatpush.msra.mxu0 %v4156
        %4174 = vmatpush.msra.mxu0 %v4155
        %4175 = vmatpush.msra.mxu0 %v4154
        %4176 = vmatpush.msra.mxu0 %v4153
        %4177 = vmatpush.msra.mxu0 %v4152
        %4178 = vmatpush.msra.mxu0 %v4151
        %4179 = vmatpush.msra.mxu0 %v4150
        %4180 = vmatpush.msra.mxu0 %v4149
        %4181 = vmatmul.f32.gmra.mxu0 %v4140
        %v4182 = vpop.f32.mrf.mxu0
        %v4183 = vadd.f32 0.0, %v4182
        %4184 = vmatmul.f32.gmra.mxu0 %v4141
        %v4185 = vpop.f32.mrf.mxu0
        %v4186 = vadd.f32 0.0, %v4185
        %4187 = vmatmul.f32.gmra.mxu0 %v4142
        %v4188 = vpop.f32.mrf.mxu0
        %v4189 = vadd.f32 0.0, %v4188
        %4190 = vmatmul.f32.gmra.mxu0 %v4143
        %v4191 = vpop.f32.mrf.mxu0
        %v4192 = vadd.f32 0.0, %v4191
        %4193 = vmatmul.f32.gmra.mxu0 %v4144
        %v4194 = vpop.f32.mrf.mxu0
        %v4195 = vadd.f32 0.0, %v4194
        %4196 = vmatmul.f32.gmra.mxu0 %v4145
        %v4197 = vpop.f32.mrf.mxu0
        %v4198 = vadd.f32 0.0, %v4197
        %4199 = vmatmul.f32.gmra.mxu0 %v4146
        %v4200 = vpop.f32.mrf.mxu0
        %v4201 = vadd.f32 0.0, %v4200
        %4202 = vmatmul.f32.gmra.mxu0 %v4147
        %v4203 = vpop.f32.mrf.mxu0
        %v4204 = vadd.f32 0.0, %v4203
        %4205 = vdwg.mxu0
        %v4206 = vadd.f32 %v4132, %v4183
        %v4207 = vadd.f32 %v4133, %v4186
        %v4208 = vadd.f32 %v4134, %v4189
        %v4209 = vadd.f32 %v4135, %v4192
        %v4210 = vadd.f32 %v4136, %v4195
        %v4211 = vadd.f32 %v4137, %v4198
        %v4212 = vadd.f32 %v4138, %v4201
        %v4213 = vadd.f32 %v4139, %v4204
        %v4214 = vld [vmem:[#allocation3 + $0xa] sm:$0xff]
        %v4215 = vld [vmem:[#allocation3 + $0x12] sm:$0xff]
        %v4216 = vld [vmem:[#allocation3 + $0x1a] sm:$0xff]
        %v4217 = vld [vmem:[#allocation3 + $0x22] sm:$0xff]
        %v4218 = vld [vmem:[#allocation3 + $0x2a] sm:$0xff]
        %v4219 = vld [vmem:[#allocation3 + $0x32] sm:$0xff]
        %v4220 = vld [vmem:[#allocation3 + $0x3a] sm:$0xff]
        %v4221 = vld [vmem:[#allocation3 + $0x42] sm:$0xff]
        %v4222 = vsel %vm3829, %v4214, 0.0
        %v4223 = vsel %vm3830, %v4215, 0.0
        %v4224 = vsel %vm3831, %v4216, 0.0
        %v4225 = vsel %vm3832, %v4217, 0.0
        %v4226 = vsel %vm3833, %v4218, 0.0
        %v4227 = vsel %vm3834, %v4219, 0.0
        %v4228 = vsel %vm3835, %v4220, 0.0
        %v4229 = vsel %vm3836, %v4221, 0.0
        %s4230 = scalar_lea.vmem [#allocation5], 640
        %v4231 = vld [vmem:[%s4230] sm:$0xff]
        %v4232 = vld [vmem:[%s4230 + $0x8] sm:$0xff]
        %v4233 = vld [vmem:[%s4230 + $0x10] sm:$0xff]
        %v4234 = vld [vmem:[%s4230 + $0x18] sm:$0xff]
        %v4235 = vld [vmem:[%s4230 + $0x20] sm:$0xff]
        %v4236 = vld [vmem:[%s4230 + $0x28] sm:$0xff]
        %v4237 = vld [vmem:[%s4230 + $0x30] sm:$0xff]
        %v4238 = vld [vmem:[%s4230 + $0x38] sm:$0xff]
        %v4239 = vld [vmem:[%s4230 + $0x40] sm:$0xff]
        %v4240 = vld [vmem:[%s4230 + $0x48] sm:$0xff]
        %v4241 = vld [vmem:[%s4230 + $0x50] sm:$0xff]
        %v4242 = vld [vmem:[%s4230 + $0x58] sm:$0xff]
        %v4243 = vld [vmem:[%s4230 + $0x60] sm:$0xff]
        %v4244 = vld [vmem:[%s4230 + $0x68] sm:$0xff]
        %v4245 = vld [vmem:[%s4230 + $0x70] sm:$0xff]
        %v4246 = vld [vmem:[%s4230 + $0x78] sm:$0xff]
        %4247 = vmatpush.msra.mxu0 %v4246
        %4248 = vmatpush.msra.mxu0 %v4245
        %4249 = vmatpush.msra.mxu0 %v4244
        %4250 = vmatpush.msra.mxu0 %v4243
        %4251 = vmatpush.msra.mxu0 %v4242
        %4252 = vmatpush.msra.mxu0 %v4241
        %4253 = vmatpush.msra.mxu0 %v4240
        %4254 = vmatpush.msra.mxu0 %v4239
        %4255 = vmatpush.msra.mxu0 %v4238
        %4256 = vmatpush.msra.mxu0 %v4237
        %4257 = vmatpush.msra.mxu0 %v4236
        %4258 = vmatpush.msra.mxu0 %v4235
        %4259 = vmatpush.msra.mxu0 %v4234
        %4260 = vmatpush.msra.mxu0 %v4233
        %4261 = vmatpush.msra.mxu0 %v4232
        %4262 = vmatpush.msra.mxu0 %v4231
        %4263 = vmatmul.f32.gmra.mxu0 %v4222
        %v4264 = vpop.f32.mrf.mxu0
        %v4265 = vadd.f32 0.0, %v4264
        %4266 = vmatmul.f32.gmra.mxu0 %v4223
        %v4267 = vpop.f32.mrf.mxu0
        %v4268 = vadd.f32 0.0, %v4267
        %4269 = vmatmul.f32.gmra.mxu0 %v4224
        %v4270 = vpop.f32.mrf.mxu0
        %v4271 = vadd.f32 0.0, %v4270
        %4272 = vmatmul.f32.gmra.mxu0 %v4225
        %v4273 = vpop.f32.mrf.mxu0
        %v4274 = vadd.f32 0.0, %v4273
        %4275 = vmatmul.f32.gmra.mxu0 %v4226
        %v4276 = vpop.f32.mrf.mxu0
        %v4277 = vadd.f32 0.0, %v4276
        %4278 = vmatmul.f32.gmra.mxu0 %v4227
        %v4279 = vpop.f32.mrf.mxu0
        %v4280 = vadd.f32 0.0, %v4279
        %4281 = vmatmul.f32.gmra.mxu0 %v4228
        %v4282 = vpop.f32.mrf.mxu0
        %v4283 = vadd.f32 0.0, %v4282
        %4284 = vmatmul.f32.gmra.mxu0 %v4229
        %v4285 = vpop.f32.mrf.mxu0
        %v4286 = vadd.f32 0.0, %v4285
        %4287 = vdwg.mxu0
        %v4288 = vadd.f32 %v4206, %v4265
        %v4289 = vadd.f32 %v4207, %v4268
        %v4290 = vadd.f32 %v4208, %v4271
        %v4291 = vadd.f32 %v4209, %v4274
        %v4292 = vadd.f32 %v4210, %v4277
        %v4293 = vadd.f32 %v4211, %v4280
        %v4294 = vadd.f32 %v4212, %v4283
        %v4295 = vadd.f32 %v4213, %v4286
        %v4296 = vld [vmem:[#allocation3 + $0x10] sm:$0xff]
        %v4297 = vld [vmem:[#allocation3 + $0x18] sm:$0xff]
        %v4298 = vld [vmem:[#allocation3 + $0x20] sm:$0xff]
        %v4299 = vld [vmem:[#allocation3 + $0x28] sm:$0xff]
        %v4300 = vld [vmem:[#allocation3 + $0x30] sm:$0xff]
        %v4301 = vld [vmem:[#allocation3 + $0x38] sm:$0xff]
        %v4302 = vld [vmem:[#allocation3 + $0x40] sm:$0xff]
        %v4303 = vld [vmem:[#allocation3 + $0x48] sm:$0xff]
        %v4304 = vsel %vm3821, %v4296, 0.0
        %v4305 = vsel %vm3822, %v4297, 0.0
        %v4306 = vsel %vm3823, %v4298, 0.0
        %v4307 = vsel %vm3824, %v4299, 0.0
        %v4308 = vsel %vm3825, %v4300, 0.0
        %v4309 = vsel %vm3826, %v4301, 0.0
        %v4310 = vsel %vm3827, %v4302, 0.0
        %v4311 = vsel %vm3828, %v4303, 0.0
        %s4312 = scalar_lea.vmem [#allocation5], 768
        %v4313 = vld [vmem:[%s4312] sm:$0xff]
        %v4314 = vld [vmem:[%s4312 + $0x8] sm:$0xff]
        %v4315 = vld [vmem:[%s4312 + $0x10] sm:$0xff]
        %v4316 = vld [vmem:[%s4312 + $0x18] sm:$0xff]
        %v4317 = vld [vmem:[%s4312 + $0x20] sm:$0xff]
        %v4318 = vld [vmem:[%s4312 + $0x28] sm:$0xff]
        %v4319 = vld [vmem:[%s4312 + $0x30] sm:$0xff]
        %v4320 = vld [vmem:[%s4312 + $0x38] sm:$0xff]
        %v4321 = vld [vmem:[%s4312 + $0x40] sm:$0xff]
        %v4322 = vld [vmem:[%s4312 + $0x48] sm:$0xff]
        %v4323 = vld [vmem:[%s4312 + $0x50] sm:$0xff]
        %v4324 = vld [vmem:[%s4312 + $0x58] sm:$0xff]
        %v4325 = vld [vmem:[%s4312 + $0x60] sm:$0xff]
        %v4326 = vld [vmem:[%s4312 + $0x68] sm:$0xff]
        %v4327 = vld [vmem:[%s4312 + $0x70] sm:$0xff]
        %v4328 = vld [vmem:[%s4312 + $0x78] sm:$0xff]
        %4329 = vmatpush.msra.mxu0 %v4328
        %4330 = vmatpush.msra.mxu0 %v4327
        %4331 = vmatpush.msra.mxu0 %v4326
        %4332 = vmatpush.msra.mxu0 %v4325
        %4333 = vmatpush.msra.mxu0 %v4324
        %4334 = vmatpush.msra.mxu0 %v4323
        %4335 = vmatpush.msra.mxu0 %v4322
        %4336 = vmatpush.msra.mxu0 %v4321
        %4337 = vmatpush.msra.mxu0 %v4320
        %4338 = vmatpush.msra.mxu0 %v4319
        %4339 = vmatpush.msra.mxu0 %v4318
        %4340 = vmatpush.msra.mxu0 %v4317
        %4341 = vmatpush.msra.mxu0 %v4316
        %4342 = vmatpush.msra.mxu0 %v4315
        %4343 = vmatpush.msra.mxu0 %v4314
        %4344 = vmatpush.msra.mxu0 %v4313
        %4345 = vmatmul.f32.gmra.mxu0 %v4304
        %v4346 = vpop.f32.mrf.mxu0
        %v4347 = vadd.f32 0.0, %v4346
        %4348 = vmatmul.f32.gmra.mxu0 %v4305
        %v4349 = vpop.f32.mrf.mxu0
        %v4350 = vadd.f32 0.0, %v4349
        %4351 = vmatmul.f32.gmra.mxu0 %v4306
        %v4352 = vpop.f32.mrf.mxu0
        %v4353 = vadd.f32 0.0, %v4352
        %4354 = vmatmul.f32.gmra.mxu0 %v4307
        %v4355 = vpop.f32.mrf.mxu0
        %v4356 = vadd.f32 0.0, %v4355
        %4357 = vmatmul.f32.gmra.mxu0 %v4308
        %v4358 = vpop.f32.mrf.mxu0
        %v4359 = vadd.f32 0.0, %v4358
        %4360 = vmatmul.f32.gmra.mxu0 %v4309
        %v4361 = vpop.f32.mrf.mxu0
        %v4362 = vadd.f32 0.0, %v4361
        %4363 = vmatmul.f32.gmra.mxu0 %v4310
        %v4364 = vpop.f32.mrf.mxu0
        %v4365 = vadd.f32 0.0, %v4364
        %4366 = vmatmul.f32.gmra.mxu0 %v4311
        %v4367 = vpop.f32.mrf.mxu0
        %v4368 = vadd.f32 0.0, %v4367
        %4369 = vdwg.mxu0
        %v4370 = vadd.f32 %v4288, %v4347
        %v4371 = vadd.f32 %v4289, %v4350
        %v4372 = vadd.f32 %v4290, %v4353
        %v4373 = vadd.f32 %v4291, %v4356
        %v4374 = vadd.f32 %v4292, %v4359
        %v4375 = vadd.f32 %v4293, %v4362
        %v4376 = vadd.f32 %v4294, %v4365
        %v4377 = vadd.f32 %v4295, %v4368
        %v4378 = vld [vmem:[#allocation3 + $0x11] sm:$0xff]
        %v4379 = vld [vmem:[#allocation3 + $0x19] sm:$0xff]
        %v4380 = vld [vmem:[#allocation3 + $0x21] sm:$0xff]
        %v4381 = vld [vmem:[#allocation3 + $0x29] sm:$0xff]
        %v4382 = vld [vmem:[#allocation3 + $0x31] sm:$0xff]
        %v4383 = vld [vmem:[#allocation3 + $0x39] sm:$0xff]
        %v4384 = vld [vmem:[#allocation3 + $0x41] sm:$0xff]
        %v4385 = vld [vmem:[#allocation3 + $0x49] sm:$0xff]
        %s4386 = scalar_lea.vmem [#allocation5], 896
        %v4387 = vld [vmem:[%s4386] sm:$0xff]
        %v4388 = vld [vmem:[%s4386 + $0x8] sm:$0xff]
        %v4389 = vld [vmem:[%s4386 + $0x10] sm:$0xff]
        %v4390 = vld [vmem:[%s4386 + $0x18] sm:$0xff]
        %v4391 = vld [vmem:[%s4386 + $0x20] sm:$0xff]
        %v4392 = vld [vmem:[%s4386 + $0x28] sm:$0xff]
        %v4393 = vld [vmem:[%s4386 + $0x30] sm:$0xff]
        %v4394 = vld [vmem:[%s4386 + $0x38] sm:$0xff]
        %v4395 = vld [vmem:[%s4386 + $0x40] sm:$0xff]
        %v4396 = vld [vmem:[%s4386 + $0x48] sm:$0xff]
        %v4397 = vld [vmem:[%s4386 + $0x50] sm:$0xff]
        %v4398 = vld [vmem:[%s4386 + $0x58] sm:$0xff]
        %v4399 = vld [vmem:[%s4386 + $0x60] sm:$0xff]
        %v4400 = vld [vmem:[%s4386 + $0x68] sm:$0xff]
        %v4401 = vld [vmem:[%s4386 + $0x70] sm:$0xff]
        %v4402 = vld [vmem:[%s4386 + $0x78] sm:$0xff]
        %4403 = vmatpush.msra.mxu0 %v4402
        %4404 = vmatpush.msra.mxu0 %v4401
        %4405 = vmatpush.msra.mxu0 %v4400
        %4406 = vmatpush.msra.mxu0 %v4399
        %4407 = vmatpush.msra.mxu0 %v4398
        %4408 = vmatpush.msra.mxu0 %v4397
        %4409 = vmatpush.msra.mxu0 %v4396
        %4410 = vmatpush.msra.mxu0 %v4395
        %4411 = vmatpush.msra.mxu0 %v4394
        %4412 = vmatpush.msra.mxu0 %v4393
        %4413 = vmatpush.msra.mxu0 %v4392
        %4414 = vmatpush.msra.mxu0 %v4391
        %4415 = vmatpush.msra.mxu0 %v4390
        %4416 = vmatpush.msra.mxu0 %v4389
        %4417 = vmatpush.msra.mxu0 %v4388
        %4418 = vmatpush.msra.mxu0 %v4387
        %4419 = vmatmul.f32.gmra.mxu0 %v4378
        %v4420 = vpop.f32.mrf.mxu0
        %v4421 = vadd.f32 0.0, %v4420
        %4422 = vmatmul.f32.gmra.mxu0 %v4379
        %v4423 = vpop.f32.mrf.mxu0
        %v4424 = vadd.f32 0.0, %v4423
        %4425 = vmatmul.f32.gmra.mxu0 %v4380
        %v4426 = vpop.f32.mrf.mxu0
        %v4427 = vadd.f32 0.0, %v4426
        %4428 = vmatmul.f32.gmra.mxu0 %v4381
        %v4429 = vpop.f32.mrf.mxu0
        %v4430 = vadd.f32 0.0, %v4429
        %4431 = vmatmul.f32.gmra.mxu0 %v4382
        %v4432 = vpop.f32.mrf.mxu0
        %v4433 = vadd.f32 0.0, %v4432
        %4434 = vmatmul.f32.gmra.mxu0 %v4383
        %v4435 = vpop.f32.mrf.mxu0
        %v4436 = vadd.f32 0.0, %v4435
        %4437 = vmatmul.f32.gmra.mxu0 %v4384
        %v4438 = vpop.f32.mrf.mxu0
        %v4439 = vadd.f32 0.0, %v4438
        %4440 = vmatmul.f32.gmra.mxu0 %v4385
        %v4441 = vpop.f32.mrf.mxu0
        %v4442 = vadd.f32 0.0, %v4441
        %4443 = vdwg.mxu0
        %v4444 = vadd.f32 %v4370, %v4421
        %v4445 = vadd.f32 %v4371, %v4424
        %v4446 = vadd.f32 %v4372, %v4427
        %v4447 = vadd.f32 %v4373, %v4430
        %v4448 = vadd.f32 %v4374, %v4433
        %v4449 = vadd.f32 %v4375, %v4436
        %v4450 = vadd.f32 %v4376, %v4439
        %v4451 = vadd.f32 %v4377, %v4442
        %v4452 = vld [vmem:[#allocation3 + $0x12] sm:$0xff]
        %v4453 = vld [vmem:[#allocation3 + $0x1a] sm:$0xff]
        %v4454 = vld [vmem:[#allocation3 + $0x22] sm:$0xff]
        %v4455 = vld [vmem:[#allocation3 + $0x2a] sm:$0xff]
        %v4456 = vld [vmem:[#allocation3 + $0x32] sm:$0xff]
        %v4457 = vld [vmem:[#allocation3 + $0x3a] sm:$0xff]
        %v4458 = vld [vmem:[#allocation3 + $0x42] sm:$0xff]
        %v4459 = vld [vmem:[#allocation3 + $0x4a] sm:$0xff]
        %v4460 = vsel %vm3829, %v4452, 0.0
        %v4461 = vsel %vm3830, %v4453, 0.0
        %v4462 = vsel %vm3831, %v4454, 0.0
        %v4463 = vsel %vm3832, %v4455, 0.0
        %v4464 = vsel %vm3833, %v4456, 0.0
        %v4465 = vsel %vm3834, %v4457, 0.0
        %v4466 = vsel %vm3835, %v4458, 0.0
        %v4467 = vsel %vm3836, %v4459, 0.0
        %s4468 = scalar_lea.vmem [#allocation5], 1024
        %v4469 = vld [vmem:[%s4468] sm:$0xff]
        %v4470 = vld [vmem:[%s4468 + $0x8] sm:$0xff]
        %v4471 = vld [vmem:[%s4468 + $0x10] sm:$0xff]
        %v4472 = vld [vmem:[%s4468 + $0x18] sm:$0xff]
        %v4473 = vld [vmem:[%s4468 + $0x20] sm:$0xff]
        %v4474 = vld [vmem:[%s4468 + $0x28] sm:$0xff]
        %v4475 = vld [vmem:[%s4468 + $0x30] sm:$0xff]
        %v4476 = vld [vmem:[%s4468 + $0x38] sm:$0xff]
        %v4477 = vld [vmem:[%s4468 + $0x40] sm:$0xff]
        %v4478 = vld [vmem:[%s4468 + $0x48] sm:$0xff]
        %v4479 = vld [vmem:[%s4468 + $0x50] sm:$0xff]
        %v4480 = vld [vmem:[%s4468 + $0x58] sm:$0xff]
        %v4481 = vld [vmem:[%s4468 + $0x60] sm:$0xff]
        %v4482 = vld [vmem:[%s4468 + $0x68] sm:$0xff]
        %v4483 = vld [vmem:[%s4468 + $0x70] sm:$0xff]
        %v4484 = vld [vmem:[%s4468 + $0x78] sm:$0xff]
        %4485 = vmatpush.msra.mxu0 %v4484
        %4486 = vmatpush.msra.mxu0 %v4483
        %4487 = vmatpush.msra.mxu0 %v4482
        %4488 = vmatpush.msra.mxu0 %v4481
        %4489 = vmatpush.msra.mxu0 %v4480
        %4490 = vmatpush.msra.mxu0 %v4479
        %4491 = vmatpush.msra.mxu0 %v4478
        %4492 = vmatpush.msra.mxu0 %v4477
        %4493 = vmatpush.msra.mxu0 %v4476
        %4494 = vmatpush.msra.mxu0 %v4475
        %4495 = vmatpush.msra.mxu0 %v4474
        %4496 = vmatpush.msra.mxu0 %v4473
        %4497 = vmatpush.msra.mxu0 %v4472
        %4498 = vmatpush.msra.mxu0 %v4471
        %4499 = vmatpush.msra.mxu0 %v4470
        %4500 = vmatpush.msra.mxu0 %v4469
        %4501 = vmatmul.f32.gmra.mxu0 %v4460
        %v4502 = vpop.f32.mrf.mxu0
        %v4503 = vadd.f32 0.0, %v4502
        %4504 = vmatmul.f32.gmra.mxu0 %v4461
        %v4505 = vpop.f32.mrf.mxu0
        %v4506 = vadd.f32 0.0, %v4505
        %4507 = vmatmul.f32.gmra.mxu0 %v4462
        %v4508 = vpop.f32.mrf.mxu0
        %v4509 = vadd.f32 0.0, %v4508
        %4510 = vmatmul.f32.gmra.mxu0 %v4463
        %v4511 = vpop.f32.mrf.mxu0
        %v4512 = vadd.f32 0.0, %v4511
        %4513 = vmatmul.f32.gmra.mxu0 %v4464
        %v4514 = vpop.f32.mrf.mxu0
        %v4515 = vadd.f32 0.0, %v4514
        %4516 = vmatmul.f32.gmra.mxu0 %v4465
        %v4517 = vpop.f32.mrf.mxu0
        %v4518 = vadd.f32 0.0, %v4517
        %4519 = vmatmul.f32.gmra.mxu0 %v4466
        %v4520 = vpop.f32.mrf.mxu0
        %v4521 = vadd.f32 0.0, %v4520
        %4522 = vmatmul.f32.gmra.mxu0 %v4467
        %v4523 = vpop.f32.mrf.mxu0
        %v4524 = vadd.f32 0.0, %v4523
        %4525 = vdwg.mxu0
        %v4526 = vadd.f32 %v4444, %v4503
        %v4527 = vadd.f32 %v4445, %v4506
        %v4528 = vadd.f32 %v4446, %v4509
        %v4529 = vadd.f32 %v4447, %v4512
        %v4530 = vadd.f32 %v4448, %v4515
        %v4531 = vadd.f32 %v4449, %v4518
        %v4532 = vadd.f32 %v4450, %v4521
        %v4533 = vadd.f32 %v4451, %v4524
        %v4535 = vperm.slane %v3820, 0
        %v4537 = vadd.f32 %v4526, %v4535
        %v4538 = vadd.f32 %v4527, %v4535
        %v4539 = vadd.f32 %v4528, %v4535
        %v4540 = vadd.f32 %v4529, %v4535
        %v4541 = vadd.f32 %v4530, %v4535
        %v4542 = vadd.f32 %v4531, %v4535
        %v4543 = vadd.f32 %v4532, %v4535
        %v4544 = vadd.f32 %v4533, %v4535
        %v4545 = vmax.f32 %v4537, 0.0
        %v4546 = vmax.f32 %v4538, 0.0
        %v4547 = vmax.f32 %v4539, 0.0
        %v4548 = vmax.f32 %v4540, 0.0
        %v4549 = vmax.f32 %v4541, 0.0
        %v4550 = vmax.f32 %v4542, 0.0
        %v4551 = vmax.f32 %v4543, 0.0
        %v4552 = vmax.f32 %v4544, 0.0
        %v4553 = vshra.s32 %v484, 2
        %v4554 = vshra.s32 %v485, 2
        %v4555 = vmul.u32 %v4553, 2
        %v4556 = vmul.u32 %v4554, 2
        %v4557 = vmul.u32 %v4555, 8
        %v4558 = vmul.u32 %v4556, 8
        %v4559 = vand.u32 %v484, 3
        %v4560 = vand.u32 %v485, 3
        %v4561 = vmul.u32 %v4559, 2
        %v4562 = vmul.u32 %v4560, 2
        %v4563 = vadd.s32 %v4557, %v4561
        %v4564 = vadd.s32 %v4558, %v4562
        %vm4565 = vcmp.eq.s32.totalorder %v3194, %v4563
        %vm4566 = vcmp.eq.s32.totalorder %v3194, %v4564
        %v4567 = vsel %vm4565, 1, 0
        %v4568 = vsel %vm4566, 1, 0
        %v4569 = vcvt.s32.f32 %v4567
        %v4570 = vcvt.s32.f32 %v4568
        %vm4571 = vcmask 523264
        %v4573 = vsel %vm4571, %v4569, 0
        %v4576 = vsel %vm4571, %v4570, 0
        %4578 = vmatpush.msra.mxu0 0.0
        %4579 = vmatpush.msra.mxu0 0.0
        %4580 = vmatpush.msra.mxu0 0.0
        %4581 = vmatpush.msra.mxu0 0.0
        %4582 = vmatpush.msra.mxu0 0.0
        %4583 = vmatpush.msra.mxu0 0.0
        %4584 = vmatpush.msra.mxu0 0.0
        %4585 = vmatpush.msra.mxu0 0.0
        %4586 = vmatpush.msra.mxu0 %v4552
        %4587 = vmatpush.msra.mxu0 %v4551
        %4588 = vmatpush.msra.mxu0 %v4550
        %4589 = vmatpush.msra.mxu0 %v4549
        %4590 = vmatpush.msra.mxu0 %v4548
        %4591 = vmatpush.msra.mxu0 %v4547
        %4592 = vmatpush.msra.mxu0 %v4546
        %4593 = vmatpush.msra.mxu0 %v4545
        %4594 = vmatmul.f32.gmra.mxu0 %v4573
        %v4595 = vpop.f32.mrf.mxu0
        %v4596 = vadd.f32 0.0, %v4595
        %4597 = vmatmul.f32.gmra.mxu0 %v4576
        %v4598 = vpop.f32.mrf.mxu0
        %v4599 = vadd.f32 0.0, %v4598
        %4600 = vdwg.mxu0
        %v4601 = vadd.s32 %v4563, 1
        %v4602 = vadd.s32 %v4564, 1
        %vm4603 = vcmp.eq.s32.totalorder %v3194, %v4601
        %vm4604 = vcmp.eq.s32.totalorder %v3194, %v4602
        %v4605 = vsel %vm4603, 1, 0
        %v4606 = vsel %vm4604, 1, 0
        %v4607 = vcvt.s32.f32 %v4605
        %v4608 = vcvt.s32.f32 %v4606
        %v4610 = vsel %vm4571, %v4607, 0
        %v4613 = vsel %vm4571, %v4608, 0
        %4615 = vmatpush.msra.mxu0 0.0
        %4616 = vmatpush.msra.mxu0 0.0
        %4617 = vmatpush.msra.mxu0 0.0
        %4618 = vmatpush.msra.mxu0 0.0
        %4619 = vmatpush.msra.mxu0 0.0
        %4620 = vmatpush.msra.mxu0 0.0
        %4621 = vmatpush.msra.mxu0 0.0
        %4622 = vmatpush.msra.mxu0 0.0
        %4623 = vmatpush.msra.mxu0 %v4552
        %4624 = vmatpush.msra.mxu0 %v4551
        %4625 = vmatpush.msra.mxu0 %v4550
        %4626 = vmatpush.msra.mxu0 %v4549
        %4627 = vmatpush.msra.mxu0 %v4548
        %4628 = vmatpush.msra.mxu0 %v4547
        %4629 = vmatpush.msra.mxu0 %v4546
        %4630 = vmatpush.msra.mxu0 %v4545
        %4631 = vmatmul.f32.gmra.mxu0 %v4610
        %v4632 = vpop.f32.mrf.mxu0
        %v4633 = vadd.f32 0.0, %v4632
        %4634 = vmatmul.f32.gmra.mxu0 %v4613
        %v4635 = vpop.f32.mrf.mxu0
        %v4636 = vadd.f32 0.0, %v4635
        %4637 = vdwg.mxu0
        %v4638 = vmax.f32 %v4596, %v4633
        %v4639 = vmax.f32 %v4599, %v4636
        %v4640 = vadd.s32 %v4563, 8
        %v4641 = vadd.s32 %v4564, 8
        %vm4642 = vcmp.eq.s32.totalorder %v3194, %v4640
        %vm4643 = vcmp.eq.s32.totalorder %v3194, %v4641
        %v4644 = vsel %vm4642, 1, 0
        %v4645 = vsel %vm4643, 1, 0
        %v4646 = vcvt.s32.f32 %v4644
        %v4647 = vcvt.s32.f32 %v4645
        %v4649 = vsel %vm4571, %v4646, 0
        %v4652 = vsel %vm4571, %v4647, 0
        %4654 = vmatpush.msra.mxu0 0.0
        %4655 = vmatpush.msra.mxu0 0.0
        %4656 = vmatpush.msra.mxu0 0.0
        %4657 = vmatpush.msra.mxu0 0.0
        %4658 = vmatpush.msra.mxu0 0.0
        %4659 = vmatpush.msra.mxu0 0.0
        %4660 = vmatpush.msra.mxu0 0.0
        %4661 = vmatpush.msra.mxu0 0.0
        %4662 = vmatpush.msra.mxu0 %v4552
        %4663 = vmatpush.msra.mxu0 %v4551
        %4664 = vmatpush.msra.mxu0 %v4550
        %4665 = vmatpush.msra.mxu0 %v4549
        %4666 = vmatpush.msra.mxu0 %v4548
        %4667 = vmatpush.msra.mxu0 %v4547
        %4668 = vmatpush.msra.mxu0 %v4546
        %4669 = vmatpush.msra.mxu0 %v4545
        %4670 = vmatmul.f32.gmra.mxu0 %v4649
        %v4671 = vpop.f32.mrf.mxu0
        %v4672 = vadd.f32 0.0, %v4671
        %4673 = vmatmul.f32.gmra.mxu0 %v4652
        %v4674 = vpop.f32.mrf.mxu0
        %v4675 = vadd.f32 0.0, %v4674
        %4676 = vdwg.mxu0
        %v4677 = vadd.s32 %v4563, 9
        %v4678 = vadd.s32 %v4564, 9
        %vm4679 = vcmp.eq.s32.totalorder %v3194, %v4677
        %vm4680 = vcmp.eq.s32.totalorder %v3194, %v4678
        %v4681 = vsel %vm4679, 1, 0
        %v4682 = vsel %vm4680, 1, 0
        %v4683 = vcvt.s32.f32 %v4681
        %v4684 = vcvt.s32.f32 %v4682
        %v4686 = vsel %vm4571, %v4683, 0
        %v4689 = vsel %vm4571, %v4684, 0
        %4691 = vmatpush.msra.mxu0 0.0
        %4692 = vmatpush.msra.mxu0 0.0
        %4693 = vmatpush.msra.mxu0 0.0
        %4694 = vmatpush.msra.mxu0 0.0
        %4695 = vmatpush.msra.mxu0 0.0
        %4696 = vmatpush.msra.mxu0 0.0
        %4697 = vmatpush.msra.mxu0 0.0
        %4698 = vmatpush.msra.mxu0 0.0
        %4699 = vmatpush.msra.mxu0 %v4552
        %4700 = vmatpush.msra.mxu0 %v4551
        %4701 = vmatpush.msra.mxu0 %v4550
        %4702 = vmatpush.msra.mxu0 %v4549
        %4703 = vmatpush.msra.mxu0 %v4548
        %4704 = vmatpush.msra.mxu0 %v4547
        %4705 = vmatpush.msra.mxu0 %v4546
        %4706 = vmatpush.msra.mxu0 %v4545
        %4707 = vmatmul.f32.gmra.mxu0 %v4686
        %v4708 = vpop.f32.mrf.mxu0
        %v4709 = vadd.f32 0.0, %v4708
        %4710 = vmatmul.f32.gmra.mxu0 %v4689
        %v4711 = vpop.f32.mrf.mxu0
        %v4712 = vadd.f32 0.0, %v4711
        %4713 = vdwg.mxu0
        %v4714 = vmax.f32 %v4672, %v4709
        %v4715 = vmax.f32 %v4675, %v4712
        %v4716 = vmax.f32 %v4638, %v4714
        %v4717 = vmax.f32 %v4639, %v4715
        %4718 = vst [vmem:[#allocation4 + $0x5] sm:$0xff] %v4716
        %4719 = vst [vmem:[#allocation4 + $0xd] sm:$0xff] %v4717
        %v4720 = vld [vmem:[%s6] sm:$0x1]
        %vm4721 = vcmp.gt.s32.totalorder %v4559, 0
        %vm4722 = vcmp.gt.s32.totalorder %v4560, 0
        %vm4723 = vcmp.lt.s32.totalorder %v4559, 3
        %vm4724 = vcmp.lt.s32.totalorder %v4560, 3
        %v4725 = vld [vmem:[#allocation4] sm:$0xff]
        %v4726 = vld [vmem:[#allocation4 + $0x8] sm:$0xff]
        %v4727 = vsel %vm4721, %v4725, 0.0
        %v4728 = vsel %vm4722, %v4726, 0.0
        %v4729 = vld [vmem:[#allocation8] sm:$0xff]
        %v4730 = vld [vmem:[#allocation8 + $0x8] sm:$0xff]
        %v4731 = vld [vmem:[#allocation8 + $0x10] sm:$0xff]
        %v4732 = vld [vmem:[#allocation8 + $0x18] sm:$0xff]
        %v4733 = vld [vmem:[#allocation8 + $0x20] sm:$0xff]
        %v4734 = vld [vmem:[#allocation8 + $0x28] sm:$0xff]
        %v4735 = vld [vmem:[#allocation8 + $0x30] sm:$0xff]
        %v4736 = vld [vmem:[#allocation8 + $0x38] sm:$0xff]
        %v4737 = vld [vmem:[#allocation8 + $0x40] sm:$0xff]
        %v4738 = vld [vmem:[#allocation8 + $0x48] sm:$0xff]
        %v4739 = vld [vmem:[#allocation8 + $0x50] sm:$0xff]
        %v4740 = vld [vmem:[#allocation8 + $0x58] sm:$0xff]
        %v4741 = vld [vmem:[#allocation8 + $0x60] sm:$0xff]
        %v4742 = vld [vmem:[#allocation8 + $0x68] sm:$0xff]
        %v4743 = vld [vmem:[#allocation8 + $0x70] sm:$0xff]
        %v4744 = vld [vmem:[#allocation8 + $0x78] sm:$0xff]
        %v4745 = vld [vmem:[#allocation4 + $0x1] sm:$0xff]
        %v4746 = vld [vmem:[#allocation4 + $0x9] sm:$0xff]
        %s4747 = scalar_lea.vmem [#allocation8], 128
        %v4748 = vld [vmem:[%s4747] sm:$0xff]
        %v4749 = vld [vmem:[%s4747 + $0x8] sm:$0xff]
        %v4750 = vld [vmem:[%s4747 + $0x10] sm:$0xff]
        %v4751 = vld [vmem:[%s4747 + $0x18] sm:$0xff]
        %v4752 = vld [vmem:[%s4747 + $0x20] sm:$0xff]
        %v4753 = vld [vmem:[%s4747 + $0x28] sm:$0xff]
        %v4754 = vld [vmem:[%s4747 + $0x30] sm:$0xff]
        %v4755 = vld [vmem:[%s4747 + $0x38] sm:$0xff]
        %v4756 = vld [vmem:[%s4747 + $0x40] sm:$0xff]
        %v4757 = vld [vmem:[%s4747 + $0x48] sm:$0xff]
        %v4758 = vld [vmem:[%s4747 + $0x50] sm:$0xff]
        %v4759 = vld [vmem:[%s4747 + $0x58] sm:$0xff]
        %v4760 = vld [vmem:[%s4747 + $0x60] sm:$0xff]
        %v4761 = vld [vmem:[%s4747 + $0x68] sm:$0xff]
        %v4762 = vld [vmem:[%s4747 + $0x70] sm:$0xff]
        %v4763 = vld [vmem:[%s4747 + $0x78] sm:$0xff]
        %4764 = vmatpush.msra.mxu0 %v4763
        %4765 = vmatpush.msra.mxu0 %v4762
        %4766 = vmatpush.msra.mxu0 %v4761
        %4767 = vmatpush.msra.mxu0 %v4760
        %4768 = vmatpush.msra.mxu0 %v4759
        %4769 = vmatpush.msra.mxu0 %v4758
        %4770 = vmatpush.msra.mxu0 %v4757
        %4771 = vmatpush.msra.mxu0 %v4756
        %4772 = vmatpush.msra.mxu0 %v4755
        %4773 = vmatpush.msra.mxu0 %v4754
        %4774 = vmatpush.msra.mxu0 %v4753
        %4775 = vmatpush.msra.mxu0 %v4752
        %4776 = vmatpush.msra.mxu0 %v4751
        %4777 = vmatpush.msra.mxu0 %v4750
        %4778 = vmatpush.msra.mxu0 %v4749
        %4779 = vmatpush.msra.mxu0 %v4748
        %4780 = vmatmul.f32.gmra.mxu0 %v4745
        %v4781 = vpop.f32.mrf.mxu0
        %v4782 = vadd.f32 0.0, %v4781
        %4783 = vmatmul.f32.gmra.mxu0 %v4746
        %v4784 = vpop.f32.mrf.mxu0
        %v4785 = vadd.f32 0.0, %v4784
        %4786 = vdwg.mxu0
        %4787 = vmatpush.msra.mxu0 %v4744
        %4788 = vmatpush.msra.mxu0 %v4743
        %4789 = vmatpush.msra.mxu0 %v4742
        %4790 = vmatpush.msra.mxu0 %v4741
        %4791 = vmatpush.msra.mxu0 %v4740
        %4792 = vmatpush.msra.mxu0 %v4739
        %4793 = vmatpush.msra.mxu0 %v4738
        %4794 = vmatpush.msra.mxu0 %v4737
        %4795 = vmatpush.msra.mxu0 %v4736
        %4796 = vmatpush.msra.mxu0 %v4735
        %4797 = vmatpush.msra.mxu0 %v4734
        %4798 = vmatpush.msra.mxu0 %v4733
        %4799 = vmatpush.msra.mxu0 %v4732
        %4800 = vmatpush.msra.mxu0 %v4731
        %4801 = vmatpush.msra.mxu0 %v4730
        %4802 = vmatpush.msra.mxu0 %v4729
        %4803 = vmatmul.f32.gmra.mxu0 %v4727
        %v4804 = vpop.f32.mrf.mxu0
        %v4805 = vadd.f32 %v4782, %v4804
        %4806 = vmatmul.f32.gmra.mxu0 %v4728
        %v4807 = vpop.f32.mrf.mxu0
        %v4808 = vadd.f32 %v4785, %v4807
        %4809 = vdwg.mxu0
        %v4810 = vld [vmem:[#allocation4 + $0x2] sm:$0xff]
        %v4811 = vld [vmem:[#allocation4 + $0xa] sm:$0xff]
        %v4812 = vsel %vm4723, %v4810, 0.0
        %v4813 = vsel %vm4724, %v4811, 0.0
        %s4814 = scalar_lea.vmem [#allocation8], 256
        %v4815 = vld [vmem:[%s4814] sm:$0xff]
        %v4816 = vld [vmem:[%s4814 + $0x8] sm:$0xff]
        %v4817 = vld [vmem:[%s4814 + $0x10] sm:$0xff]
        %v4818 = vld [vmem:[%s4814 + $0x18] sm:$0xff]
        %v4819 = vld [vmem:[%s4814 + $0x20] sm:$0xff]
        %v4820 = vld [vmem:[%s4814 + $0x28] sm:$0xff]
        %v4821 = vld [vmem:[%s4814 + $0x30] sm:$0xff]
        %v4822 = vld [vmem:[%s4814 + $0x38] sm:$0xff]
        %v4823 = vld [vmem:[%s4814 + $0x40] sm:$0xff]
        %v4824 = vld [vmem:[%s4814 + $0x48] sm:$0xff]
        %v4825 = vld [vmem:[%s4814 + $0x50] sm:$0xff]
        %v4826 = vld [vmem:[%s4814 + $0x58] sm:$0xff]
        %v4827 = vld [vmem:[%s4814 + $0x60] sm:$0xff]
        %v4828 = vld [vmem:[%s4814 + $0x68] sm:$0xff]
        %v4829 = vld [vmem:[%s4814 + $0x70] sm:$0xff]
        %v4830 = vld [vmem:[%s4814 + $0x78] sm:$0xff]
        %4831 = vmatpush.msra.mxu0 %v4830
        %4832 = vmatpush.msra.mxu0 %v4829
        %4833 = vmatpush.msra.mxu0 %v4828
        %4834 = vmatpush.msra.mxu0 %v4827
        %4835 = vmatpush.msra.mxu0 %v4826
        %4836 = vmatpush.msra.mxu0 %v4825
        %4837 = vmatpush.msra.mxu0 %v4824
        %4838 = vmatpush.msra.mxu0 %v4823
        %4839 = vmatpush.msra.mxu0 %v4822
        %4840 = vmatpush.msra.mxu0 %v4821
        %4841 = vmatpush.msra.mxu0 %v4820
        %4842 = vmatpush.msra.mxu0 %v4819
        %4843 = vmatpush.msra.mxu0 %v4818
        %4844 = vmatpush.msra.mxu0 %v4817
        %4845 = vmatpush.msra.mxu0 %v4816
        %4846 = vmatpush.msra.mxu0 %v4815
        %4847 = vmatmul.f32.gmra.mxu0 %v4812
        %v4848 = vpop.f32.mrf.mxu0
        %v4849 = vadd.f32 0.0, %v4848
        %4850 = vmatmul.f32.gmra.mxu0 %v4813
        %v4851 = vpop.f32.mrf.mxu0
        %v4852 = vadd.f32 0.0, %v4851
        %4853 = vdwg.mxu0
        %v4854 = vadd.f32 %v4805, %v4849
        %v4855 = vadd.f32 %v4808, %v4852
        %v4856 = vld [vmem:[#allocation4 + $0x4] sm:$0xff]
        %v4857 = vld [vmem:[#allocation4 + $0xc] sm:$0xff]
        %v4858 = vsel %vm4721, %v4856, 0.0
        %v4859 = vsel %vm4722, %v4857, 0.0
        %s4860 = scalar_lea.vmem [#allocation8], 384
        %v4861 = vld [vmem:[%s4860] sm:$0xff]
        %v4862 = vld [vmem:[%s4860 + $0x8] sm:$0xff]
        %v4863 = vld [vmem:[%s4860 + $0x10] sm:$0xff]
        %v4864 = vld [vmem:[%s4860 + $0x18] sm:$0xff]
        %v4865 = vld [vmem:[%s4860 + $0x20] sm:$0xff]
        %v4866 = vld [vmem:[%s4860 + $0x28] sm:$0xff]
        %v4867 = vld [vmem:[%s4860 + $0x30] sm:$0xff]
        %v4868 = vld [vmem:[%s4860 + $0x38] sm:$0xff]
        %v4869 = vld [vmem:[%s4860 + $0x40] sm:$0xff]
        %v4870 = vld [vmem:[%s4860 + $0x48] sm:$0xff]
        %v4871 = vld [vmem:[%s4860 + $0x50] sm:$0xff]
        %v4872 = vld [vmem:[%s4860 + $0x58] sm:$0xff]
        %v4873 = vld [vmem:[%s4860 + $0x60] sm:$0xff]
        %v4874 = vld [vmem:[%s4860 + $0x68] sm:$0xff]
        %v4875 = vld [vmem:[%s4860 + $0x70] sm:$0xff]
        %v4876 = vld [vmem:[%s4860 + $0x78] sm:$0xff]
        %4877 = vmatpush.msra.mxu0 %v4876
        %4878 = vmatpush.msra.mxu0 %v4875
        %4879 = vmatpush.msra.mxu0 %v4874
        %4880 = vmatpush.msra.mxu0 %v4873
        %4881 = vmatpush.msra.mxu0 %v4872
        %4882 = vmatpush.msra.mxu0 %v4871
        %4883 = vmatpush.msra.mxu0 %v4870
        %4884 = vmatpush.msra.mxu0 %v4869
        %4885 = vmatpush.msra.mxu0 %v4868
        %4886 = vmatpush.msra.mxu0 %v4867
        %4887 = vmatpush.msra.mxu0 %v4866
        %4888 = vmatpush.msra.mxu0 %v4865
        %4889 = vmatpush.msra.mxu0 %v4864
        %4890 = vmatpush.msra.mxu0 %v4863
        %4891 = vmatpush.msra.mxu0 %v4862
        %4892 = vmatpush.msra.mxu0 %v4861
        %4893 = vmatmul.f32.gmra.mxu0 %v4858
        %v4894 = vpop.f32.mrf.mxu0
        %v4895 = vadd.f32 0.0, %v4894
        %4896 = vmatmul.f32.gmra.mxu0 %v4859
        %v4897 = vpop.f32.mrf.mxu0
        %v4898 = vadd.f32 0.0, %v4897
        %4899 = vdwg.mxu0
        %v4900 = vadd.f32 %v4854, %v4895
        %v4901 = vadd.f32 %v4855, %v4898
        %v4902 = vld [vmem:[#allocation4 + $0x5] sm:$0xff]
        %v4903 = vld [vmem:[#allocation4 + $0xd] sm:$0xff]
        %s4904 = scalar_lea.vmem [#allocation8], 512
        %v4905 = vld [vmem:[%s4904] sm:$0xff]
        %v4906 = vld [vmem:[%s4904 + $0x8] sm:$0xff]
        %v4907 = vld [vmem:[%s4904 + $0x10] sm:$0xff]
        %v4908 = vld [vmem:[%s4904 + $0x18] sm:$0xff]
        %v4909 = vld [vmem:[%s4904 + $0x20] sm:$0xff]
        %v4910 = vld [vmem:[%s4904 + $0x28] sm:$0xff]
        %v4911 = vld [vmem:[%s4904 + $0x30] sm:$0xff]
        %v4912 = vld [vmem:[%s4904 + $0x38] sm:$0xff]
        %v4913 = vld [vmem:[%s4904 + $0x40] sm:$0xff]
        %v4914 = vld [vmem:[%s4904 + $0x48] sm:$0xff]
        %v4915 = vld [vmem:[%s4904 + $0x50] sm:$0xff]
        %v4916 = vld [vmem:[%s4904 + $0x58] sm:$0xff]
        %v4917 = vld [vmem:[%s4904 + $0x60] sm:$0xff]
        %v4918 = vld [vmem:[%s4904 + $0x68] sm:$0xff]
        %v4919 = vld [vmem:[%s4904 + $0x70] sm:$0xff]
        %v4920 = vld [vmem:[%s4904 + $0x78] sm:$0xff]
        %4921 = vmatpush.msra.mxu0 %v4920
        %4922 = vmatpush.msra.mxu0 %v4919
        %4923 = vmatpush.msra.mxu0 %v4918
        %4924 = vmatpush.msra.mxu0 %v4917
        %4925 = vmatpush.msra.mxu0 %v4916
        %4926 = vmatpush.msra.mxu0 %v4915
        %4927 = vmatpush.msra.mxu0 %v4914
        %4928 = vmatpush.msra.mxu0 %v4913
        %4929 = vmatpush.msra.mxu0 %v4912
        %4930 = vmatpush.msra.mxu0 %v4911
        %4931 = vmatpush.msra.mxu0 %v4910
        %4932 = vmatpush.msra.mxu0 %v4909
        %4933 = vmatpush.msra.mxu0 %v4908
        %4934 = vmatpush.msra.mxu0 %v4907
        %4935 = vmatpush.msra.mxu0 %v4906
        %4936 = vmatpush.msra.mxu0 %v4905
        %4937 = vmatmul.f32.gmra.mxu0 %v4902
        %v4938 = vpop.f32.mrf.mxu0
        %v4939 = vadd.f32 0.0, %v4938
        %4940 = vmatmul.f32.gmra.mxu0 %v4903
        %v4941 = vpop.f32.mrf.mxu0
        %v4942 = vadd.f32 0.0, %v4941
        %4943 = vdwg.mxu0
        %v4944 = vadd.f32 %v4900, %v4939
        %v4945 = vadd.f32 %v4901, %v4942
        %v4946 = vld [vmem:[#allocation4 + $0x6] sm:$0xff]
        %v4947 = vld [vmem:[#allocation4 + $0xe] sm:$0xff]
        %v4948 = vsel %vm4723, %v4946, 0.0
        %v4949 = vsel %vm4724, %v4947, 0.0
        %s4950 = scalar_lea.vmem [#allocation8], 640
        %v4951 = vld [vmem:[%s4950] sm:$0xff]
        %v4952 = vld [vmem:[%s4950 + $0x8] sm:$0xff]
        %v4953 = vld [vmem:[%s4950 + $0x10] sm:$0xff]
        %v4954 = vld [vmem:[%s4950 + $0x18] sm:$0xff]
        %v4955 = vld [vmem:[%s4950 + $0x20] sm:$0xff]
        %v4956 = vld [vmem:[%s4950 + $0x28] sm:$0xff]
        %v4957 = vld [vmem:[%s4950 + $0x30] sm:$0xff]
        %v4958 = vld [vmem:[%s4950 + $0x38] sm:$0xff]
        %v4959 = vld [vmem:[%s4950 + $0x40] sm:$0xff]
        %v4960 = vld [vmem:[%s4950 + $0x48] sm:$0xff]
        %v4961 = vld [vmem:[%s4950 + $0x50] sm:$0xff]
        %v4962 = vld [vmem:[%s4950 + $0x58] sm:$0xff]
        %v4963 = vld [vmem:[%s4950 + $0x60] sm:$0xff]
        %v4964 = vld [vmem:[%s4950 + $0x68] sm:$0xff]
        %v4965 = vld [vmem:[%s4950 + $0x70] sm:$0xff]
        %v4966 = vld [vmem:[%s4950 + $0x78] sm:$0xff]
        %4967 = vmatpush.msra.mxu0 %v4966
        %4968 = vmatpush.msra.mxu0 %v4965
        %4969 = vmatpush.msra.mxu0 %v4964
        %4970 = vmatpush.msra.mxu0 %v4963
        %4971 = vmatpush.msra.mxu0 %v4962
        %4972 = vmatpush.msra.mxu0 %v4961
        %4973 = vmatpush.msra.mxu0 %v4960
        %4974 = vmatpush.msra.mxu0 %v4959
        %4975 = vmatpush.msra.mxu0 %v4958
        %4976 = vmatpush.msra.mxu0 %v4957
        %4977 = vmatpush.msra.mxu0 %v4956
        %4978 = vmatpush.msra.mxu0 %v4955
        %4979 = vmatpush.msra.mxu0 %v4954
        %4980 = vmatpush.msra.mxu0 %v4953
        %4981 = vmatpush.msra.mxu0 %v4952
        %4982 = vmatpush.msra.mxu0 %v4951
        %4983 = vmatmul.f32.gmra.mxu0 %v4948
        %v4984 = vpop.f32.mrf.mxu0
        %v4985 = vadd.f32 0.0, %v4984
        %4986 = vmatmul.f32.gmra.mxu0 %v4949
        %v4987 = vpop.f32.mrf.mxu0
        %v4988 = vadd.f32 0.0, %v4987
        %4989 = vdwg.mxu0
        %v4990 = vadd.f32 %v4944, %v4985
        %v4991 = vadd.f32 %v4945, %v4988
        %v4992 = vld [vmem:[#allocation4 + $0x8] sm:$0xff]
        %v4993 = vld [vmem:[#allocation4 + $0x10] sm:$0xff]
        %v4994 = vsel %vm4721, %v4992, 0.0
        %v4995 = vsel %vm4722, %v4993, 0.0
        %s4996 = scalar_lea.vmem [#allocation8], 768
        %v4997 = vld [vmem:[%s4996] sm:$0xff]
        %v4998 = vld [vmem:[%s4996 + $0x8] sm:$0xff]
        %v4999 = vld [vmem:[%s4996 + $0x10] sm:$0xff]
        %v5000 = vld [vmem:[%s4996 + $0x18] sm:$0xff]
        %v5001 = vld [vmem:[%s4996 + $0x20] sm:$0xff]
        %v5002 = vld [vmem:[%s4996 + $0x28] sm:$0xff]
        %v5003 = vld [vmem:[%s4996 + $0x30] sm:$0xff]
        %v5004 = vld [vmem:[%s4996 + $0x38] sm:$0xff]
        %v5005 = vld [vmem:[%s4996 + $0x40] sm:$0xff]
        %v5006 = vld [vmem:[%s4996 + $0x48] sm:$0xff]
        %v5007 = vld [vmem:[%s4996 + $0x50] sm:$0xff]
        %v5008 = vld [vmem:[%s4996 + $0x58] sm:$0xff]
        %v5009 = vld [vmem:[%s4996 + $0x60] sm:$0xff]
        %v5010 = vld [vmem:[%s4996 + $0x68] sm:$0xff]
        %v5011 = vld [vmem:[%s4996 + $0x70] sm:$0xff]
        %v5012 = vld [vmem:[%s4996 + $0x78] sm:$0xff]
        %5013 = vmatpush.msra.mxu0 %v5012
        %5014 = vmatpush.msra.mxu0 %v5011
        %5015 = vmatpush.msra.mxu0 %v5010
        %5016 = vmatpush.msra.mxu0 %v5009
        %5017 = vmatpush.msra.mxu0 %v5008
        %5018 = vmatpush.msra.mxu0 %v5007
        %5019 = vmatpush.msra.mxu0 %v5006
        %5020 = vmatpush.msra.mxu0 %v5005
        %5021 = vmatpush.msra.mxu0 %v5004
        %5022 = vmatpush.msra.mxu0 %v5003
        %5023 = vmatpush.msra.mxu0 %v5002
        %5024 = vmatpush.msra.mxu0 %v5001
        %5025 = vmatpush.msra.mxu0 %v5000
        %5026 = vmatpush.msra.mxu0 %v4999
        %5027 = vmatpush.msra.mxu0 %v4998
        %5028 = vmatpush.msra.mxu0 %v4997
        %5029 = vmatmul.f32.gmra.mxu0 %v4994
        %v5030 = vpop.f32.mrf.mxu0
        %v5031 = vadd.f32 0.0, %v5030
        %5032 = vmatmul.f32.gmra.mxu0 %v4995
        %v5033 = vpop.f32.mrf.mxu0
        %v5034 = vadd.f32 0.0, %v5033
        %5035 = vdwg.mxu0
        %v5036 = vadd.f32 %v4990, %v5031
        %v5037 = vadd.f32 %v4991, %v5034
        %v5038 = vld [vmem:[#allocation4 + $0x9] sm:$0xff]
        %v5039 = vld [vmem:[#allocation4 + $0x11] sm:$0xff]
        %s5040 = scalar_lea.vmem [#allocation8], 896
        %v5041 = vld [vmem:[%s5040] sm:$0xff]
        %v5042 = vld [vmem:[%s5040 + $0x8] sm:$0xff]
        %v5043 = vld [vmem:[%s5040 + $0x10] sm:$0xff]
        %v5044 = vld [vmem:[%s5040 + $0x18] sm:$0xff]
        %v5045 = vld [vmem:[%s5040 + $0x20] sm:$0xff]
        %v5046 = vld [vmem:[%s5040 + $0x28] sm:$0xff]
        %v5047 = vld [vmem:[%s5040 + $0x30] sm:$0xff]
        %v5048 = vld [vmem:[%s5040 + $0x38] sm:$0xff]
        %v5049 = vld [vmem:[%s5040 + $0x40] sm:$0xff]
        %v5050 = vld [vmem:[%s5040 + $0x48] sm:$0xff]
        %v5051 = vld [vmem:[%s5040 + $0x50] sm:$0xff]
        %v5052 = vld [vmem:[%s5040 + $0x58] sm:$0xff]
        %v5053 = vld [vmem:[%s5040 + $0x60] sm:$0xff]
        %v5054 = vld [vmem:[%s5040 + $0x68] sm:$0xff]
        %v5055 = vld [vmem:[%s5040 + $0x70] sm:$0xff]
        %v5056 = vld [vmem:[%s5040 + $0x78] sm:$0xff]
        %5057 = vmatpush.msra.mxu0 %v5056
        %5058 = vmatpush.msra.mxu0 %v5055
        %5059 = vmatpush.msra.mxu0 %v5054
        %5060 = vmatpush.msra.mxu0 %v5053
        %5061 = vmatpush.msra.mxu0 %v5052
        %5062 = vmatpush.msra.mxu0 %v5051
        %5063 = vmatpush.msra.mxu0 %v5050
        %5064 = vmatpush.msra.mxu0 %v5049
        %5065 = vmatpush.msra.mxu0 %v5048
        %5066 = vmatpush.msra.mxu0 %v5047
        %5067 = vmatpush.msra.mxu0 %v5046
        %5068 = vmatpush.msra.mxu0 %v5045
        %5069 = vmatpush.msra.mxu0 %v5044
        %5070 = vmatpush.msra.mxu0 %v5043
        %5071 = vmatpush.msra.mxu0 %v5042
        %5072 = vmatpush.msra.mxu0 %v5041
        %5073 = vmatmul.f32.gmra.mxu0 %v5038
        %v5074 = vpop.f32.mrf.mxu0
        %v5075 = vadd.f32 0.0, %v5074
        %5076 = vmatmul.f32.gmra.mxu0 %v5039
        %v5077 = vpop.f32.mrf.mxu0
        %v5078 = vadd.f32 0.0, %v5077
        %5079 = vdwg.mxu0
        %v5080 = vadd.f32 %v5036, %v5075
        %v5081 = vadd.f32 %v5037, %v5078
        %v5082 = vld [vmem:[#allocation4 + $0xa] sm:$0xff]
        %v5083 = vld [vmem:[#allocation4 + $0x12] sm:$0xff]
        %v5084 = vsel %vm4723, %v5082, 0.0
        %v5085 = vsel %vm4724, %v5083, 0.0
        %s5086 = scalar_lea.vmem [#allocation8], 1024
        %v5087 = vld [vmem:[%s5086] sm:$0xff]
        %v5088 = vld [vmem:[%s5086 + $0x8] sm:$0xff]
        %v5089 = vld [vmem:[%s5086 + $0x10] sm:$0xff]
        %v5090 = vld [vmem:[%s5086 + $0x18] sm:$0xff]
        %v5091 = vld [vmem:[%s5086 + $0x20] sm:$0xff]
        %v5092 = vld [vmem:[%s5086 + $0x28] sm:$0xff]
        %v5093 = vld [vmem:[%s5086 + $0x30] sm:$0xff]
        %v5094 = vld [vmem:[%s5086 + $0x38] sm:$0xff]
        %v5095 = vld [vmem:[%s5086 + $0x40] sm:$0xff]
        %v5096 = vld [vmem:[%s5086 + $0x48] sm:$0xff]
        %v5097 = vld [vmem:[%s5086 + $0x50] sm:$0xff]
        %v5098 = vld [vmem:[%s5086 + $0x58] sm:$0xff]
        %v5099 = vld [vmem:[%s5086 + $0x60] sm:$0xff]
        %v5100 = vld [vmem:[%s5086 + $0x68] sm:$0xff]
        %v5101 = vld [vmem:[%s5086 + $0x70] sm:$0xff]
        %v5102 = vld [vmem:[%s5086 + $0x78] sm:$0xff]
        %5103 = vmatpush.msra.mxu0 %v5102
        %5104 = vmatpush.msra.mxu0 %v5101
        %5105 = vmatpush.msra.mxu0 %v5100
        %5106 = vmatpush.msra.mxu0 %v5099
        %5107 = vmatpush.msra.mxu0 %v5098
        %5108 = vmatpush.msra.mxu0 %v5097
        %5109 = vmatpush.msra.mxu0 %v5096
        %5110 = vmatpush.msra.mxu0 %v5095
        %5111 = vmatpush.msra.mxu0 %v5094
        %5112 = vmatpush.msra.mxu0 %v5093
        %5113 = vmatpush.msra.mxu0 %v5092
        %5114 = vmatpush.msra.mxu0 %v5091
        %5115 = vmatpush.msra.mxu0 %v5090
        %5116 = vmatpush.msra.mxu0 %v5089
        %5117 = vmatpush.msra.mxu0 %v5088
        %5118 = vmatpush.msra.mxu0 %v5087
        %5119 = vmatmul.f32.gmra.mxu0 %v5084
        %v5120 = vpop.f32.mrf.mxu0
        %v5121 = vadd.f32 0.0, %v5120
        %5122 = vmatmul.f32.gmra.mxu0 %v5085
        %v5123 = vpop.f32.mrf.mxu0
        %v5124 = vadd.f32 0.0, %v5123
        %5125 = vdwg.mxu0
        %v5126 = vadd.f32 %v5080, %v5121
        %v5127 = vadd.f32 %v5081, %v5124
        %v5129 = vperm.slane %v4720, 0
        %v5131 = vadd.f32 %v5126, %v5129
        %v5132 = vadd.f32 %v5127, %v5129
        %v5133 = vmax.f32 %v5131, 0.0
        %v5134 = vmax.f32 %v5132, 0.0
        %v5135 = vshra.s32 %v484, 1
        %v5136 = vmul.u32 %v5135, 2
        %v5137 = vmul.u32 %v5136, 4
        %v5138 = vand.u32 %v484, 1
        %v5139 = vmul.u32 %v5138, 2
        %v5140 = vadd.s32 %v5137, %v5139
        %vm5141 = vcmp.eq.s32.totalorder %v3194, %v5140
        %v5142 = vsel %vm5141, 1, 0
        %v5143 = vcvt.s32.f32 %v5142
        %vm5144 = vcmask 130048
        %v5146 = vsel %vm5144, %v5143, 0
        %5148 = vmatpush.msra.mxu0 0.0
        %5149 = vmatpush.msra.mxu0 0.0
        %5150 = vmatpush.msra.mxu0 0.0
        %5151 = vmatpush.msra.mxu0 0.0
        %5152 = vmatpush.msra.mxu0 0.0
        %5153 = vmatpush.msra.mxu0 0.0
        %5154 = vmatpush.msra.mxu0 0.0
        %5155 = vmatpush.msra.mxu0 0.0
        %5156 = vmatpush.msra.mxu0 0.0
        %5157 = vmatpush.msra.mxu0 0.0
        %5158 = vmatpush.msra.mxu0 0.0
        %5159 = vmatpush.msra.mxu0 0.0
        %5160 = vmatpush.msra.mxu0 0.0
        %5161 = vmatpush.msra.mxu0 0.0
        %5162 = vmatpush.msra.mxu0 %v5134
        %5163 = vmatpush.msra.mxu0 %v5133
        %5164 = vmatmul.f32.gmra.mxu0 %v5146
        %v5165 = vpop.f32.mrf.mxu0
        %v5166 = vadd.f32 0.0, %v5165
        %5167 = vdwg.mxu0
        %v5168 = vadd.s32 %v5140, 1
        %vm5169 = vcmp.eq.s32.totalorder %v3194, %v5168
        %v5170 = vsel %vm5169, 1, 0
        %v5171 = vcvt.s32.f32 %v5170
        %v5173 = vsel %vm5144, %v5171, 0
        %5175 = vmatpush.msra.mxu0 0.0
        %5176 = vmatpush.msra.mxu0 0.0
        %5177 = vmatpush.msra.mxu0 0.0
        %5178 = vmatpush.msra.mxu0 0.0
        %5179 = vmatpush.msra.mxu0 0.0
        %5180 = vmatpush.msra.mxu0 0.0
        %5181 = vmatpush.msra.mxu0 0.0
        %5182 = vmatpush.msra.mxu0 0.0
        %5183 = vmatpush.msra.mxu0 0.0
        %5184 = vmatpush.msra.mxu0 0.0
        %5185 = vmatpush.msra.mxu0 0.0
        %5186 = vmatpush.msra.mxu0 0.0
        %5187 = vmatpush.msra.mxu0 0.0
        %5188 = vmatpush.msra.mxu0 0.0
        %5189 = vmatpush.msra.mxu0 %v5134
        %5190 = vmatpush.msra.mxu0 %v5133
        %5191 = vmatmul.f32.gmra.mxu0 %v5173
        %v5192 = vpop.f32.mrf.mxu0
        %v5193 = vadd.f32 0.0, %v5192
        %5194 = vdwg.mxu0
        %v5195 = vmax.f32 %v5166, %v5193
        %v5196 = vadd.s32 %v5140, 4
        %vm5197 = vcmp.eq.s32.totalorder %v3194, %v5196
        %v5198 = vsel %vm5197, 1, 0
        %v5199 = vcvt.s32.f32 %v5198
        %v5201 = vsel %vm5144, %v5199, 0
        %5203 = vmatpush.msra.mxu0 0.0
        %5204 = vmatpush.msra.mxu0 0.0
        %5205 = vmatpush.msra.mxu0 0.0
        %5206 = vmatpush.msra.mxu0 0.0
        %5207 = vmatpush.msra.mxu0 0.0
        %5208 = vmatpush.msra.mxu0 0.0
        %5209 = vmatpush.msra.mxu0 0.0
        %5210 = vmatpush.msra.mxu0 0.0
        %5211 = vmatpush.msra.mxu0 0.0
        %5212 = vmatpush.msra.mxu0 0.0
        %5213 = vmatpush.msra.mxu0 0.0
        %5214 = vmatpush.msra.mxu0 0.0
        %5215 = vmatpush.msra.mxu0 0.0
        %5216 = vmatpush.msra.mxu0 0.0
        %5217 = vmatpush.msra.mxu0 %v5134
        %5218 = vmatpush.msra.mxu0 %v5133
        %5219 = vmatmul.f32.gmra.mxu0 %v5201
        %v5220 = vpop.f32.mrf.mxu0
        %v5221 = vadd.f32 0.0, %v5220
        %5222 = vdwg.mxu0
        %v5223 = vadd.s32 %v5140, 5
        %vm5224 = vcmp.eq.s32.totalorder %v3194, %v5223
        %v5225 = vsel %vm5224, 1, 0
        %v5226 = vcvt.s32.f32 %v5225
        %v5228 = vsel %vm5144, %v5226, 0
        %5230 = vmatpush.msra.mxu0 0.0
        %5231 = vmatpush.msra.mxu0 0.0
        %5232 = vmatpush.msra.mxu0 0.0
        %5233 = vmatpush.msra.mxu0 0.0
        %5234 = vmatpush.msra.mxu0 0.0
        %5235 = vmatpush.msra.mxu0 0.0
        %5236 = vmatpush.msra.mxu0 0.0
        %5237 = vmatpush.msra.mxu0 0.0
        %5238 = vmatpush.msra.mxu0 0.0
        %5239 = vmatpush.msra.mxu0 0.0
        %5240 = vmatpush.msra.mxu0 0.0
        %5241 = vmatpush.msra.mxu0 0.0
        %5242 = vmatpush.msra.mxu0 0.0
        %5243 = vmatpush.msra.mxu0 0.0
        %5244 = vmatpush.msra.mxu0 %v5134
        %5245 = vmatpush.msra.mxu0 %v5133
        %5246 = vmatmul.f32.gmra.mxu0 %v5228
        %v5247 = vpop.f32.mrf.mxu0
        %v5248 = vadd.f32 0.0, %v5247
        %5249 = vdwg.mxu0
        %v5250 = vmax.f32 %v5221, %v5248
        %v5251 = vmax.f32 %v5195, %v5250
        %v5253 = vrot.slane %v5251, 1
        %v5255 = vadd.f32 %v5251, %v5253
        %v5256 = vrot.slane %v5251, 2
        %v5258 = vadd.f32 %v5255, %v5256
        %v5259 = vrot.slane %v5251, 3
        %v5261 = vadd.f32 %v5258, %v5259
        %v5262 = vmul.f32 %v5261, 0.25
        %v5263 = vld [vmem:[%s7] sm:$0xff]
        %v5264 = vld [vmem:[%s7 + $0x8] sm:$0xff]
        %v5265 = vld [vmem:[%s7 + $0x10] sm:$0xff]
        %v5266 = vld [vmem:[%s7 + $0x18] sm:$0xff]
        %v5267 = vld [vmem:[%s7 + $0x20] sm:$0xff]
        %v5268 = vld [vmem:[%s7 + $0x28] sm:$0xff]
        %v5269 = vld [vmem:[%s7 + $0x30] sm:$0xff]
        %v5270 = vld [vmem:[%s7 + $0x38] sm:$0xff]
        %v5271 = vld [vmem:[%s7 + $0x40] sm:$0xff]
        %v5272 = vld [vmem:[%s7 + $0x48] sm:$0xff]
        %v5273 = vld [vmem:[%s7 + $0x50] sm:$0xff]
        %v5274 = vld [vmem:[%s7 + $0x58] sm:$0xff]
        %v5275 = vld [vmem:[%s7 + $0x60] sm:$0xff]
        %v5276 = vld [vmem:[%s7 + $0x68] sm:$0xff]
        %v5277 = vld [vmem:[%s7 + $0x70] sm:$0xff]
        %v5278 = vld [vmem:[%s7 + $0x78] sm:$0xff]
        %v5279 = vld [vmem:[%s8] sm:$0x1]
        %5280 = vmatpush.msra.mxu0 %v5278
        %5281 = vmatpush.msra.mxu0 %v5277
        %5282 = vmatpush.msra.mxu0 %v5276
        %5283 = vmatpush.msra.mxu0 %v5275
        %5284 = vmatpush.msra.mxu0 %v5274
        %5285 = vmatpush.msra.mxu0 %v5273
        %5286 = vmatpush.msra.mxu0 %v5272
        %5287 = vmatpush.msra.mxu0 %v5271
        %5288 = vmatpush.msra.mxu0 %v5270
        %5289 = vmatpush.msra.mxu0 %v5269
        %5290 = vmatpush.msra.mxu0 %v5268
        %5291 = vmatpush.msra.mxu0 %v5267
        %5292 = vmatpush.msra.mxu0 %v5266
        %5293 = vmatpush.msra.mxu0 %v5265
        %5294 = vmatpush.msra.mxu0 %v5264
        %5295 = vmatpush.msra.mxu0 %v5263
        %5296 = vmatmul.f32.gmra.mxu0 %v5262
        %v5297 = vpop.f32.mrf.mxu0
        %v5298 = vadd.f32 %v5279, %v5297
        %5299 = vdwg.mxu0
        %vm5300 = vcmask 73728
        %5301 = vst.msk [vmem:[%s358] sm:$0x1] %vm5300, %v5298
        %s5302 = sand.u32 %s227, 1
        %s5303 = scalar_lea.sflag [#allocation7], %s5302
        %s5304 = sand.u32 %s227, 1
        %s5305 = scalar_lea.vmem [#allocation10], %s5304
        // Predicated region
        $region65: #{tpu_custom_call.1} parent=55 // pred_check
          %p5306 = pneg %p237
        $region66: #{tpu_custom_call.1} parent=55 // pred_check_branch
          %5308 = sbr.rel (%p5306) target = $region68
        $region67: #{tpu_custom_call.1} parent=55 // pred_region
          %5310 = vsyncadd %s5303, 0
          %s5311 = scalar_lea.hbm %s9, %s25
          %s5313 = sshll.u32 %s5305, 4
          %s5314 = int_to_ptr.vmem [resolvable:$true] %s5313
          %s5315 = sshll.u32 %s5311, 4
          %s5316 = int_to_ptr.hbm [resolvable:$true] %s5315
          %5318 = dma.vmem_to_hbm [thread:$0]  %s5314, 16, %s5316, %s5303
        $region68: #{tpu_custom_call.1} parent=55 // pred_fallthru
          _
      $region56: #{tpu_custom_call.1} parent=5 // pred_fallthru
        _
      %p5319 = scmp.le.s32.totalorder 2, %s20
      // Predicated region
      $region69: #{tpu_custom_call.1} parent=5 // pred_check
        %p5320 = pneg %p5319
      $region70: #{tpu_custom_call.1} parent=5 // pred_check_branch
        %5322 = sbr.rel (%p5320) target = $region72
      $region71: #{tpu_custom_call.1} parent=5 // pred_region
        %s5323 = ssub.s32 %s20, 2
        // Predicated region
        $region73: #{tpu_custom_call.1} parent=71 // pred_check
          %p5324 = pneg %p243
        $region74: #{tpu_custom_call.1} parent=71 // pred_check_branch
          %5326 = sbr.rel (%p5324) target = $region76
        $region75: #{tpu_custom_call.1} parent=71 // pred_region
          %s5327 = sand.u32 %s228, 1
          %s5328 = scalar_lea.sflag [#allocation7], %s5327
          %s5329 = sand.u32 %s228, 1
          %s5330 = scalar_lea.vmem [#allocation10], %s5329
          %5332 = dma.done %s5328, 16
        $region76: #{tpu_custom_call.1} parent=71 // pred_fallthru
          _
      $region72: #{tpu_custom_call.1} parent=5 // pred_fallthru
        _
    $region6: #{tpu_custom_call.1} parent=1 // loop_footer
      %s24 = sadd.s32 1, %s20
    $region7: #{tpu_custom_call.1} parent=1 // loop_footer_branch
      %19 = sbr.rel target = $region3
    $region8: #{tpu_custom_call.1} parent=1 // loop_exit
      _
    %5333 = vsyncpa [#allocation6], 1
    %s5334 = scalar_lea.sflag [#allocation6], 1
    %5335 = vsyncpa %s5334, 1
    %5336 = vsyncpa [#allocation9], 1
    %5337 = vsyncpa [#allocation7], 1
    %s5338 = scalar_lea.sflag [#allocation7], 1
    %5339 = vsyncpa %s5338, 1

</llo_original>
